<compile_context>
chip_gen: v5e
topology: v5e:2x2
jax: 0.10.0
libtpu: 0.0.40
codegen_flags: <defaults>
</compile_context>

<pallas_src>
import functools
import math

import numpy as np

import jax
import jax.numpy as jnp
from jax.experimental import pallas as pl
from jax.experimental.pallas import tpu as pltpu

_EPS = 1e-5


# ----------------------------------------------------------------------------
# Fused whole-network kernel
# ----------------------------------------------------------------------------
def _dqn_fused_kernel(*refs, n_layers):
    """refs = [x, (S, M, scale, shift) * n_layers, out].

    x            : (B*H, W*Cin)            bf16   rows=(b,h), cols=(w,ci)
    S (per layer): (taps, N_out, N_in)     bf16   0/1 row-selection matrices
    M (per layer): (taps, Win*Cin, Wout*Cout) bf16 unfolded tap weights
    scale/shift  : (1, Wout*Cout)          f32    folded conv-bias + BatchNorm
    out          : (B, outputs)            f32
    """
    x_ref = refs[0]
    o_ref = refs[-1]
    layer_refs = refs[1:-1]

    x = x_ref[...]  # bf16
    for i in range(n_layers):
        s_ref, m_ref, sc_ref, sh_ref = layer_refs[4 * i: 4 * i + 4]
        taps = s_ref.shape[0]
        n_out = s_ref.shape[1]
        k_out = m_ref.shape[2]

        acc = jnp.zeros((n_out, k_out), jnp.float32)
        for t in range(taps):  # static unroll (<=5)
            # Strided row selection done as an exact 0/1 matmul on the MXU.
            rows = jnp.dot(s_ref[t], x, preferred_element_type=jnp.float32)
            acc = acc + jnp.dot(rows.astype(jnp.bfloat16), m_ref[t],
                                preferred_element_type=jnp.float32)

        y = acc * sc_ref[...] + sh_ref[...]          # f32 epilogue
        if i < n_layers - 1:
            y = jnp.maximum(y, 0.0)                  # ReLU
            x = y.astype(jnp.bfloat16)               # feed next layer
        else:
            o_ref[...] = y                           # head output (no ReLU)


def dqn_forward(plan, x_nchw):
    """Pallas implementation of DQN.forward. Input is NCHW like PyTorch."""
    b, c, h, w = x_nchw.shape
    # NCHW -> NHWC -> (B*H, W*C); the only plain-JAX glue op at runtime.
    x = jnp.transpose(x_nchw, (0, 2, 3, 1)).reshape(b * h, w * c)
    x = x.astype(jnp.bfloat16)

    n_layers = len(plan["mats"])
    operands = [x]
    for i in range(n_layers):
        operands += [plan["sels"][i], plan["mats"][i],
                     plan["scales"][i], plan["shifts"][i]]

    n_outputs = plan["mats"][-1].shape[-1]

    def full_spec(a):
        nd = a.ndim
        return pl.BlockSpec(a.shape, lambda i, _nd=nd: (0,) * _nd)

    kernel = functools.partial(_dqn_fused_kernel, n_layers=n_layers)
    return pl.pallas_call(
        kernel,
        grid=(1,),
        in_specs=[full_spec(a) for a in operands],
        out_specs=pl.BlockSpec((b, n_outputs), lambda i: (0, 0)),
        out_shape=jax.ShapeDtypeStruct((b, n_outputs), jnp.float32),
        compiler_params=pltpu.CompilerParams(
            dimension_semantics=("arbitrary",)),
    )(*operands)


# ----------------------------------------------------------------------------
# Init-time parameter preparation (all plain JAX / numpy, done once)
# ----------------------------------------------------------------------------
def _conv_out(size, k=5, stride=2):
    return (size - (k - 1) - 1) // stride + 1


def _build_sel(taps, batch, out_rows, in_rows, stride):
    """S[t, b*out_rows + r, b*in_rows + stride*r + t] = 1 (0/1, exact in bf16)."""
    s = np.zeros((taps, batch * out_rows, batch * in_rows), np.float32)
    for t in range(taps):
        for b in range(batch):
            for r in range(out_rows):
                s[t, b * out_rows + r, b * in_rows + stride * r + t] = 1.0
    return jnp.asarray(s, jnp.bfloat16)


def _build_conv_m(w_khkwcico, w_in, w_out, stride):
    """M[t, (w_in*Cin+ci), (wo*Cout+co)] = W[t, kw, ci, co] with w_in=stride*wo+kw."""
    kh, kw, cin, cout = w_khkwcico.shape
    m = np.zeros((kh, w_in, cin, w_out, cout), np.float32)
    for t in range(kh):
        for j in range(kw):
            for wo in range(w_out):
                m[t, stride * wo + j, :, wo, :] = w_khkwcico[t, j]
    return jnp.asarray(m.reshape(kh, w_in * cin, w_out * cout), jnp.bfloat16)


def prepare_plan(raw, h, w, outputs, batch):
    """Fold BN + bias, unfold conv taps, fold the torch flatten order into the head."""
    plan = {"sels": [], "mats": [], "scales": [], "shifts": []}
    h_in, w_in = h, w
    for (wpt, bias, gamma, beta, rmean, rvar) in raw["conv"]:
        cout, cin, kh, kw = wpt.shape
        oh, ow = _conv_out(h_in), _conv_out(w_in)
        # (Cout,Cin,KH,KW) -> (KH,KW,Cin,Cout)
        w_t = np.transpose(np.asarray(wpt, np.float32), (2, 3, 1, 0))
        plan["sels"].append(_build_sel(kh, batch, oh, h_in, 2))
        plan["mats"].append(_build_conv_m(w_t, w_in, ow, 2))
        scale_c = gamma / jnp.sqrt(rvar + _EPS)
        shift_c = beta + scale_c * (bias - rmean)
        plan["scales"].append(jnp.tile(scale_c, ow).reshape(1, ow * cout)
                              .astype(jnp.float32))
        plan["shifts"].append(jnp.tile(shift_c, ow).reshape(1, ow * cout)
                              .astype(jnp.float32))
        h_in, w_in = oh, ow

    # Head as one more "layer": taps over the conv3 output rows (oh3), with the
    # PyTorch x.view(N,-1) flatten order (C,H,W) folded into the matrices.
    convh, convw = h_in, w_in
    c3 = raw["conv"][-1][0].shape[0]
    head_w = np.asarray(raw["head_w"], np.float32)          # (outputs, c3*convh*convw)
    whr = head_w.reshape(outputs, c3, convh, convw)          # (o, c, h, w)
    m_head = np.stack(
        [np.transpose(whr[:, :, t, :], (2, 1, 0)).reshape(convw * c3, outputs)
         for t in range(convh)], axis=0)                     # (convh, convw*c3, outputs)
    plan["sels"].append(_build_sel(convh, batch, 1, convh, convh))
    plan["mats"].append(jnp.asarray(m_head, jnp.bfloat16))
    plan["scales"].append(jnp.ones((1, outputs), jnp.float32))
    plan["shifts"].append(jnp.asarray(raw["head_b"], jnp.float32).reshape(1, outputs))
    return plan


# ----------------------------------------------------------------------------
# Deterministic PyTorch-shaped parameter init
# ----------------------------------------------------------------------------
def init_raw_params(key, h, w, outputs):
    convw = _conv_out(_conv_out(_conv_out(w)))
    convh = _conv_out(_conv_out(_conv_out(h)))
    lin_in = convw * convh * 32

    keys = jax.random.split(key, 20)
    ki = 0

    def nxt():
        nonlocal ki
        k_ = keys[ki]
        ki += 1
        return k_

    def unif(k_, shape, fan_in):
        b = 1.0 / math.sqrt(fan_in)
        return jax.random.uniform(k_, shape, jnp.float32, -b, b)

    raw = {"conv": []}
    for cin, cout in [(3, 16), (16, 32), (32, 32)]:
        fan = cin * 25
        wpt = unif(nxt(), (cout, cin, 5, 5), fan)           # PyTorch OIHW
        bias = unif(nxt(), (cout,), fan)
        gamma = jax.random.uniform(nxt(), (cout,), jnp.float32, 0.5, 1.5)
        beta = 0.1 * jax.random.normal(nxt(), (cout,), jnp.float32)
        rmean = 0.1 * jax.random.normal(nxt(), (cout,), jnp.float32)
        rvar = jax.random.uniform(nxt(), (cout,), jnp.float32, 0.5, 1.5)
        raw["conv"].append((wpt, bias, gamma, beta, rmean, rvar))

    raw["head_w"] = unif(nxt(), (outputs, lin_in), lin_in)   # PyTorch (out, in)
    raw["head_b"] = unif(nxt(), (outputs,), lin_in)
    return raw


# ----------------------------------------------------------------------------
# Pure-JAX fp32 reference (lax.conv) for correctness check
# ----------------------------------------------------------------------------
def reference_forward(raw, x_nchw):
    x = x_nchw.astype(jnp.float32)
    for wpt, bias, gamma, beta, rmean, rvar in raw["conv"]:
        x = jax.lax.conv_general_dilated(
            x, wpt, window_strides=(2, 2), padding="VALID",
            dimension_numbers=("NCHW", "OIHW", "NCHW"),
            precision=jax.lax.Precision.HIGHEST,
        )
        x = x + bias[None, :, None, None]
        x = gamma[None, :, None, None] * (x - rmean[None, :, None, None]) / jnp.sqrt(
            rvar[None, :, None, None] + _EPS
        ) + beta[None, :, None, None]
        x = jnp.maximum(x, 0.0)
    n = x.shape[0]
    x = x.reshape(n, -1)
    return jnp.dot(x, raw["head_w"].T,
                   precision=jax.lax.Precision.HIGHEST) + raw["head_b"]


# ----------------------------------------------------------------------------
if __name__ == "__main__":
    H, W, OUTPUTS, BATCH = 40, 40, 2, 2   # 40 -> 18 -> 7 -> 2; head_in = 2*2*32 = 128

    key = jax.random.PRNGKey(0)
    k_param, k_x = jax.random.split(key)
    raw = init_raw_params(k_param, H, W, OUTPUTS)
    plan = prepare_plan(raw, H, W, OUTPUTS, BATCH)

    x = jax.random.normal(k_x, (BATCH, 3, H, W), jnp.float32)   # NCHW like PyTorch

    fwd = jax.jit(dqn_forward)
    out = jax.block_until_ready(fwd(plan, x))

    ref = jax.block_until_ready(reference_forward(raw, x))
    assert out.shape == (BATCH, OUTPUTS), out.shape
    # bf16 MXU operands (f32 accumulate) vs the fp32-HIGHEST reference: use a
    # looser tolerance than the old fp32 path, as flagged in the review.
    rel_err = jnp.linalg.norm(out - ref) / (jnp.linalg.norm(ref) + 1e-6)
    assert rel_err < 0.1, (out, ref, rel_err)
    assert jnp.allclose(out, ref, rtol=5e-2, atol=5e-2), (out, ref)

    print("KERNEL_OK")
</pallas_src>

<mosaic_0001>
module attributes {stable_mosaic.version = 11 : i64} {
  func.func @_dqn_fused_kernel(%arg0: i32, %arg1: memref<80x120xbf16, #tpu.memory_space<vmem>>, %arg2: memref<5x36x80xbf16, #tpu.memory_space<vmem>>, %arg3: memref<5x120x288xbf16, #tpu.memory_space<vmem>>, %arg4: memref<1x288xf32, #tpu.memory_space<vmem>>, %arg5: memref<1x288xf32, #tpu.memory_space<vmem>>, %arg6: memref<5x14x36xbf16, #tpu.memory_space<vmem>>, %arg7: memref<5x288x224xbf16, #tpu.memory_space<vmem>>, %arg8: memref<1x224xf32, #tpu.memory_space<vmem>>, %arg9: memref<1x224xf32, #tpu.memory_space<vmem>>, %arg10: memref<5x4x14xbf16, #tpu.memory_space<vmem>>, %arg11: memref<5x224x64xbf16, #tpu.memory_space<vmem>>, %arg12: memref<1x64xf32, #tpu.memory_space<vmem>>, %arg13: memref<1x64xf32, #tpu.memory_space<vmem>>, %arg14: memref<2x2x4xbf16, #tpu.memory_space<vmem>>, %arg15: memref<2x64x2xbf16, #tpu.memory_space<vmem>>, %arg16: memref<1x2xf32, #tpu.memory_space<vmem>>, %arg17: memref<1x2xf32, #tpu.memory_space<vmem>>, %arg18: memref<2x2xf32, #tpu.memory_space<vmem>>) attributes {dimension_semantics = [#tpu.dimension_semantics<arbitrary>], iteration_bounds = array<i64: 1>, scalar_prefetch = 0 : i64, scratch_operands = 0 : i64, tpu.core_type = #tpu.core_type<tc>, window_params = [{pipeline_mode = #tpu.pipeline_mode<synchronous>, transform_indices = @transform_0, window_bounds = array<i64: 80, 120>}, {pipeline_mode = #tpu.pipeline_mode<synchronous>, transform_indices = @transform_1, window_bounds = array<i64: 5, 36, 80>}, {pipeline_mode = #tpu.pipeline_mode<synchronous>, transform_indices = @transform_2, window_bounds = array<i64: 5, 120, 288>}, {pipeline_mode = #tpu.pipeline_mode<synchronous>, transform_indices = @transform_3, window_bounds = array<i64: 1, 288>}, {pipeline_mode = #tpu.pipeline_mode<synchronous>, transform_indices = @transform_4, window_bounds = array<i64: 1, 288>}, {pipeline_mode = #tpu.pipeline_mode<synchronous>, transform_indices = @transform_5, window_bounds = array<i64: 5, 14, 36>}, {pipeline_mode = #tpu.pipeline_mode<synchronous>, transform_indices = @transform_6, window_bounds = array<i64: 5, 288, 224>}, {pipeline_mode = #tpu.pipeline_mode<synchronous>, transform_indices = @transform_7, window_bounds = array<i64: 1, 224>}, {pipeline_mode = #tpu.pipeline_mode<synchronous>, transform_indices = @transform_8, window_bounds = array<i64: 1, 224>}, {pipeline_mode = #tpu.pipeline_mode<synchronous>, transform_indices = @transform_9, window_bounds = array<i64: 5, 4, 14>}, {pipeline_mode = #tpu.pipeline_mode<synchronous>, transform_indices = @transform_10, window_bounds = array<i64: 5, 224, 64>}, {pipeline_mode = #tpu.pipeline_mode<synchronous>, transform_indices = @transform_11, window_bounds = array<i64: 1, 64>}, {pipeline_mode = #tpu.pipeline_mode<synchronous>, transform_indices = @transform_12, window_bounds = array<i64: 1, 64>}, {pipeline_mode = #tpu.pipeline_mode<synchronous>, transform_indices = @transform_13, window_bounds = array<i64: 2, 2, 4>}, {pipeline_mode = #tpu.pipeline_mode<synchronous>, transform_indices = @transform_14, window_bounds = array<i64: 2, 64, 2>}, {pipeline_mode = #tpu.pipeline_mode<synchronous>, transform_indices = @transform_15, window_bounds = array<i64: 1, 2>}, {pipeline_mode = #tpu.pipeline_mode<synchronous>, transform_indices = @transform_16, window_bounds = array<i64: 1, 2>}, {pipeline_mode = #tpu.pipeline_mode<synchronous>, transform_indices = @transform_17, window_bounds = array<i64: 2, 2>}]} {
    %c0 = arith.constant 0 : index
    %c0_0 = arith.constant 0 : index
    %0 = vector.load %arg1[%c0, %c0_0] : memref<80x120xbf16, #tpu.memory_space<vmem>>, vector<80x120xbf16>
    %cst = arith.constant 0.000000e+00 : f32
    %1 = vector.broadcast %cst : f32 to vector<36x288xf32>
    %c0_1 = arith.constant 0 : index
    %c0_2 = arith.constant 0 : index
    %c0_3 = arith.constant 0 : index
    %2 = vector.load %arg2[%c0_1, %c0_2, %c0_3] : memref<5x36x80xbf16, #tpu.memory_space<vmem>>, vector<1x36x80xbf16>
    %3 = vector.shape_cast %2 : vector<1x36x80xbf16> to vector<36x80xbf16>
    %cst_4 = arith.constant dense<0.000000e+00> : vector<36x120xf32>
    %4 = tpu.matmul %3, %0, %cst_4 {dimension_numbers = #tpu.dot_dimension_numbers<[1], [0], [0], [1], [0, 0, 1, 1], [], []>} : vector<36x80xbf16>, vector<80x120xbf16>, vector<36x120xf32> -> vector<36x120xf32>
    %5 = arith.truncf %4 : vector<36x120xf32> to vector<36x120xbf16>
    %c0_5 = arith.constant 0 : index
    %c0_6 = arith.constant 0 : index
    %c0_7 = arith.constant 0 : index
    %6 = vector.load %arg3[%c0_5, %c0_6, %c0_7] : memref<5x120x288xbf16, #tpu.memory_space<vmem>>, vector<1x120x288xbf16>
    %7 = vector.shape_cast %6 : vector<1x120x288xbf16> to vector<120x288xbf16>
    %cst_8 = arith.constant dense<0.000000e+00> : vector<36x288xf32>
    %8 = tpu.matmul %5, %7, %cst_8 {dimension_numbers = #tpu.dot_dimension_numbers<[1], [0], [0], [1], [0, 0, 1, 1], [], []>} : vector<36x120xbf16>, vector<120x288xbf16>, vector<36x288xf32> -> vector<36x288xf32>
    %9 = arith.addf %1, %8 : vector<36x288xf32>
    %c1 = arith.constant 1 : index
    %c0_9 = arith.constant 0 : index
    %c0_10 = arith.constant 0 : index
    %10 = vector.load %arg2[%c1, %c0_9, %c0_10] : memref<5x36x80xbf16, #tpu.memory_space<vmem>>, vector<1x36x80xbf16>
    %11 = vector.shape_cast %10 : vector<1x36x80xbf16> to vector<36x80xbf16>
    %cst_11 = arith.constant dense<0.000000e+00> : vector<36x120xf32>
    %12 = tpu.matmul %11, %0, %cst_11 {dimension_numbers = #tpu.dot_dimension_numbers<[1], [0], [0], [1], [0, 0, 1, 1], [], []>} : vector<36x80xbf16>, vector<80x120xbf16>, vector<36x120xf32> -> vector<36x120xf32>
    %13 = arith.truncf %12 : vector<36x120xf32> to vector<36x120xbf16>
    %c1_12 = arith.constant 1 : index
    %c0_13 = arith.constant 0 : index
    %c0_14 = arith.constant 0 : index
    %14 = vector.load %arg3[%c1_12, %c0_13, %c0_14] : memref<5x120x288xbf16, #tpu.memory_space<vmem>>, vector<1x120x288xbf16>
    %15 = vector.shape_cast %14 : vector<1x120x288xbf16> to vector<120x288xbf16>
    %cst_15 = arith.constant dense<0.000000e+00> : vector<36x288xf32>
    %16 = tpu.matmul %13, %15, %cst_15 {dimension_numbers = #tpu.dot_dimension_numbers<[1], [0], [0], [1], [0, 0, 1, 1], [], []>} : vector<36x120xbf16>, vector<120x288xbf16>, vector<36x288xf32> -> vector<36x288xf32>
    %17 = arith.addf %9, %16 : vector<36x288xf32>
    %c2 = arith.constant 2 : index
    %c0_16 = arith.constant 0 : index
    %c0_17 = arith.constant 0 : index
    %18 = vector.load %arg2[%c2, %c0_16, %c0_17] : memref<5x36x80xbf16, #tpu.memory_space<vmem>>, vector<1x36x80xbf16>
    %19 = vector.shape_cast %18 : vector<1x36x80xbf16> to vector<36x80xbf16>
    %cst_18 = arith.constant dense<0.000000e+00> : vector<36x120xf32>
    %20 = tpu.matmul %19, %0, %cst_18 {dimension_numbers = #tpu.dot_dimension_numbers<[1], [0], [0], [1], [0, 0, 1, 1], [], []>} : vector<36x80xbf16>, vector<80x120xbf16>, vector<36x120xf32> -> vector<36x120xf32>
    %21 = arith.truncf %20 : vector<36x120xf32> to vector<36x120xbf16>
    %c2_19 = arith.constant 2 : index
    %c0_20 = arith.constant 0 : index
    %c0_21 = arith.constant 0 : index
    %22 = vector.load %arg3[%c2_19, %c0_20, %c0_21] : memref<5x120x288xbf16, #tpu.memory_space<vmem>>, vector<1x120x288xbf16>
    %23 = vector.shape_cast %22 : vector<1x120x288xbf16> to vector<120x288xbf16>
    %cst_22 = arith.constant dense<0.000000e+00> : vector<36x288xf32>
    %24 = tpu.matmul %21, %23, %cst_22 {dimension_numbers = #tpu.dot_dimension_numbers<[1], [0], [0], [1], [0, 0, 1, 1], [], []>} : vector<36x120xbf16>, vector<120x288xbf16>, vector<36x288xf32> -> vector<36x288xf32>
    %25 = arith.addf %17, %24 : vector<36x288xf32>
    %c3 = arith.constant 3 : index
    %c0_23 = arith.constant 0 : index
    %c0_24 = arith.constant 0 : index
    %26 = vector.load %arg2[%c3, %c0_23, %c0_24] : memref<5x36x80xbf16, #tpu.memory_space<vmem>>, vector<1x36x80xbf16>
    %27 = vector.shape_cast %26 : vector<1x36x80xbf16> to vector<36x80xbf16>
    %cst_25 = arith.constant dense<0.000000e+00> : vector<36x120xf32>
    %28 = tpu.matmul %27, %0, %cst_25 {dimension_numbers = #tpu.dot_dimension_numbers<[1], [0], [0], [1], [0, 0, 1, 1], [], []>} : vector<36x80xbf16>, vector<80x120xbf16>, vector<36x120xf32> -> vector<36x120xf32>
    %29 = arith.truncf %28 : vector<36x120xf32> to vector<36x120xbf16>
    %c3_26 = arith.constant 3 : index
    %c0_27 = arith.constant 0 : index
    %c0_28 = arith.constant 0 : index
    %30 = vector.load %arg3[%c3_26, %c0_27, %c0_28] : memref<5x120x288xbf16, #tpu.memory_space<vmem>>, vector<1x120x288xbf16>
    %31 = vector.shape_cast %30 : vector<1x120x288xbf16> to vector<120x288xbf16>
    %cst_29 = arith.constant dense<0.000000e+00> : vector<36x288xf32>
    %32 = tpu.matmul %29, %31, %cst_29 {dimension_numbers = #tpu.dot_dimension_numbers<[1], [0], [0], [1], [0, 0, 1, 1], [], []>} : vector<36x120xbf16>, vector<120x288xbf16>, vector<36x288xf32> -> vector<36x288xf32>
    %33 = arith.addf %25, %32 : vector<36x288xf32>
    %c4 = arith.constant 4 : index
    %c0_30 = arith.constant 0 : index
    %c0_31 = arith.constant 0 : index
    %34 = vector.load %arg2[%c4, %c0_30, %c0_31] : memref<5x36x80xbf16, #tpu.memory_space<vmem>>, vector<1x36x80xbf16>
    %35 = vector.shape_cast %34 : vector<1x36x80xbf16> to vector<36x80xbf16>
    %cst_32 = arith.constant dense<0.000000e+00> : vector<36x120xf32>
    %36 = tpu.matmul %35, %0, %cst_32 {dimension_numbers = #tpu.dot_dimension_numbers<[1], [0], [0], [1], [0, 0, 1, 1], [], []>} : vector<36x80xbf16>, vector<80x120xbf16>, vector<36x120xf32> -> vector<36x120xf32>
    %37 = arith.truncf %36 : vector<36x120xf32> to vector<36x120xbf16>
    %c4_33 = arith.constant 4 : index
    %c0_34 = arith.constant 0 : index
    %c0_35 = arith.constant 0 : index
    %38 = vector.load %arg3[%c4_33, %c0_34, %c0_35] : memref<5x120x288xbf16, #tpu.memory_space<vmem>>, vector<1x120x288xbf16>
    %39 = vector.shape_cast %38 : vector<1x120x288xbf16> to vector<120x288xbf16>
    %cst_36 = arith.constant dense<0.000000e+00> : vector<36x288xf32>
    %40 = tpu.matmul %37, %39, %cst_36 {dimension_numbers = #tpu.dot_dimension_numbers<[1], [0], [0], [1], [0, 0, 1, 1], [], []>} : vector<36x120xbf16>, vector<120x288xbf16>, vector<36x288xf32> -> vector<36x288xf32>
    %41 = arith.addf %33, %40 : vector<36x288xf32>
    %c0_37 = arith.constant 0 : index
    %c0_38 = arith.constant 0 : index
    %42 = vector.load %arg4[%c0_37, %c0_38] : memref<1x288xf32, #tpu.memory_space<vmem>>, vector<1x288xf32>
    %43 = vector.broadcast %42 : vector<1x288xf32> to vector<36x288xf32>
    %44 = arith.mulf %41, %43 : vector<36x288xf32>
    %c0_39 = arith.constant 0 : index
    %c0_40 = arith.constant 0 : index
    %45 = vector.load %arg5[%c0_39, %c0_40] : memref<1x288xf32, #tpu.memory_space<vmem>>, vector<1x288xf32>
    %46 = vector.broadcast %45 : vector<1x288xf32> to vector<36x288xf32>
    %47 = arith.addf %44, %46 : vector<36x288xf32>
    %cst_41 = arith.constant 0.000000e+00 : f32
    %48 = vector.broadcast %cst_41 : f32 to vector<36x288xf32>
    %49 = arith.maximumf %47, %48 : vector<36x288xf32>
    %50 = arith.truncf %49 : vector<36x288xf32> to vector<36x288xbf16>
    %cst_42 = arith.constant 0.000000e+00 : f32
    %51 = vector.broadcast %cst_42 : f32 to vector<14x224xf32>
    %c0_43 = arith.constant 0 : index
    %c0_44 = arith.constant 0 : index
    %c0_45 = arith.constant 0 : index
    %52 = vector.load %arg6[%c0_43, %c0_44, %c0_45] : memref<5x14x36xbf16, #tpu.memory_space<vmem>>, vector<1x14x36xbf16>
    %53 = vector.shape_cast %52 : vector<1x14x36xbf16> to vector<14x36xbf16>
    %cst_46 = arith.constant dense<0.000000e+00> : vector<14x288xf32>
    %54 = tpu.matmul %53, %50, %cst_46 {dimension_numbers = #tpu.dot_dimension_numbers<[1], [0], [0], [1], [0, 0, 1, 1], [], []>} : vector<14x36xbf16>, vector<36x288xbf16>, vector<14x288xf32> -> vector<14x288xf32>
    %55 = arith.truncf %54 : vector<14x288xf32> to vector<14x288xbf16>
    %c0_47 = arith.constant 0 : index
    %c0_48 = arith.constant 0 : index
    %c0_49 = arith.constant 0 : index
    %56 = vector.load %arg7[%c0_47, %c0_48, %c0_49] : memref<5x288x224xbf16, #tpu.memory_space<vmem>>, vector<1x288x224xbf16>
    %57 = vector.shape_cast %56 : vector<1x288x224xbf16> to vector<288x224xbf16>
    %cst_50 = arith.constant dense<0.000000e+00> : vector<14x224xf32>
    %58 = tpu.matmul %55, %57, %cst_50 {dimension_numbers = #tpu.dot_dimension_numbers<[1], [0], [0], [1], [0, 0, 1, 1], [], []>} : vector<14x288xbf16>, vector<288x224xbf16>, vector<14x224xf32> -> vector<14x224xf32>
    %59 = arith.addf %51, %58 : vector<14x224xf32>
    %c1_51 = arith.constant 1 : index
    %c0_52 = arith.constant 0 : index
    %c0_53 = arith.constant 0 : index
    %60 = vector.load %arg6[%c1_51, %c0_52, %c0_53] : memref<5x14x36xbf16, #tpu.memory_space<vmem>>, vector<1x14x36xbf16>
    %61 = vector.shape_cast %60 : vector<1x14x36xbf16> to vector<14x36xbf16>
    %cst_54 = arith.constant dense<0.000000e+00> : vector<14x288xf32>
    %62 = tpu.matmul %61, %50, %cst_54 {dimension_numbers = #tpu.dot_dimension_numbers<[1], [0], [0], [1], [0, 0, 1, 1], [], []>} : vector<14x36xbf16>, vector<36x288xbf16>, vector<14x288xf32> -> vector<14x288xf32>
    %63 = arith.truncf %62 : vector<14x288xf32> to vector<14x288xbf16>
    %c1_55 = arith.constant 1 : index
    %c0_56 = arith.constant 0 : index
    %c0_57 = arith.constant 0 : index
    %64 = vector.load %arg7[%c1_55, %c0_56, %c0_57] : memref<5x288x224xbf16, #tpu.memory_space<vmem>>, vector<1x288x224xbf16>
    %65 = vector.shape_cast %64 : vector<1x288x224xbf16> to vector<288x224xbf16>
    %cst_58 = arith.constant dense<0.000000e+00> : vector<14x224xf32>
    %66 = tpu.matmul %63, %65, %cst_58 {dimension_numbers = #tpu.dot_dimension_numbers<[1], [0], [0], [1], [0, 0, 1, 1], [], []>} : vector<14x288xbf16>, vector<288x224xbf16>, vector<14x224xf32> -> vector<14x224xf32>
    %67 = arith.addf %59, %66 : vector<14x224xf32>
    %c2_59 = arith.constant 2 : index
    %c0_60 = arith.constant 0 : index
    %c0_61 = arith.constant 0 : index
    %68 = vector.load %arg6[%c2_59, %c0_60, %c0_61] : memref<5x14x36xbf16, #tpu.memory_space<vmem>>, vector<1x14x36xbf16>
    %69 = vector.shape_cast %68 : vector<1x14x36xbf16> to vector<14x36xbf16>
    %cst_62 = arith.constant dense<0.000000e+00> : vector<14x288xf32>
    %70 = tpu.matmul %69, %50, %cst_62 {dimension_numbers = #tpu.dot_dimension_numbers<[1], [0], [0], [1], [0, 0, 1, 1], [], []>} : vector<14x36xbf16>, vector<36x288xbf16>, vector<14x288xf32> -> vector<14x288xf32>
    %71 = arith.truncf %70 : vector<14x288xf32> to vector<14x288xbf16>
    %c2_63 = arith.constant 2 : index
    %c0_64 = arith.constant 0 : index
    %c0_65 = arith.constant 0 : index
    %72 = vector.load %arg7[%c2_63, %c0_64, %c0_65] : memref<5x288x224xbf16, #tpu.memory_space<vmem>>, vector<1x288x224xbf16>
    %73 = vector.shape_cast %72 : vector<1x288x224xbf16> to vector<288x224xbf16>
    %cst_66 = arith.constant dense<0.000000e+00> : vector<14x224xf32>
    %74 = tpu.matmul %71, %73, %cst_66 {dimension_numbers = #tpu.dot_dimension_numbers<[1], [0], [0], [1], [0, 0, 1, 1], [], []>} : vector<14x288xbf16>, vector<288x224xbf16>, vector<14x224xf32> -> vector<14x224xf32>
    %75 = arith.addf %67, %74 : vector<14x224xf32>
    %c3_67 = arith.constant 3 : index
    %c0_68 = arith.constant 0 : index
    %c0_69 = arith.constant 0 : index
    %76 = vector.load %arg6[%c3_67, %c0_68, %c0_69] : memref<5x14x36xbf16, #tpu.memory_space<vmem>>, vector<1x14x36xbf16>
    %77 = vector.shape_cast %76 : vector<1x14x36xbf16> to vector<14x36xbf16>
    %cst_70 = arith.constant dense<0.000000e+00> : vector<14x288xf32>
    %78 = tpu.matmul %77, %50, %cst_70 {dimension_numbers = #tpu.dot_dimension_numbers<[1], [0], [0], [1], [0, 0, 1, 1], [], []>} : vector<14x36xbf16>, vector<36x288xbf16>, vector<14x288xf32> -> vector<14x288xf32>
    %79 = arith.truncf %78 : vector<14x288xf32> to vector<14x288xbf16>
    %c3_71 = arith.constant 3 : index
    %c0_72 = arith.constant 0 : index
    %c0_73 = arith.constant 0 : index
    %80 = vector.load %arg7[%c3_71, %c0_72, %c0_73] : memref<5x288x224xbf16, #tpu.memory_space<vmem>>, vector<1x288x224xbf16>
    %81 = vector.shape_cast %80 : vector<1x288x224xbf16> to vector<288x224xbf16>
    %cst_74 = arith.constant dense<0.000000e+00> : vector<14x224xf32>
    %82 = tpu.matmul %79, %81, %cst_74 {dimension_numbers = #tpu.dot_dimension_numbers<[1], [0], [0], [1], [0, 0, 1, 1], [], []>} : vector<14x288xbf16>, vector<288x224xbf16>, vector<14x224xf32> -> vector<14x224xf32>
    %83 = arith.addf %75, %82 : vector<14x224xf32>
    %c4_75 = arith.constant 4 : index
    %c0_76 = arith.constant 0 : index
    %c0_77 = arith.constant 0 : index
    %84 = vector.load %arg6[%c4_75, %c0_76, %c0_77] : memref<5x14x36xbf16, #tpu.memory_space<vmem>>, vector<1x14x36xbf16>
    %85 = vector.shape_cast %84 : vector<1x14x36xbf16> to vector<14x36xbf16>
    %cst_78 = arith.constant dense<0.000000e+00> : vector<14x288xf32>
    %86 = tpu.matmul %85, %50, %cst_78 {dimension_numbers = #tpu.dot_dimension_numbers<[1], [0], [0], [1], [0, 0, 1, 1], [], []>} : vector<14x36xbf16>, vector<36x288xbf16>, vector<14x288xf32> -> vector<14x288xf32>
    %87 = arith.truncf %86 : vector<14x288xf32> to vector<14x288xbf16>
    %c4_79 = arith.constant 4 : index
    %c0_80 = arith.constant 0 : index
    %c0_81 = arith.constant 0 : index
    %88 = vector.load %arg7[%c4_79, %c0_80, %c0_81] : memref<5x288x224xbf16, #tpu.memory_space<vmem>>, vector<1x288x224xbf16>
    %89 = vector.shape_cast %88 : vector<1x288x224xbf16> to vector<288x224xbf16>
    %cst_82 = arith.constant dense<0.000000e+00> : vector<14x224xf32>
    %90 = tpu.matmul %87, %89, %cst_82 {dimension_numbers = #tpu.dot_dimension_numbers<[1], [0], [0], [1], [0, 0, 1, 1], [], []>} : vector<14x288xbf16>, vector<288x224xbf16>, vector<14x224xf32> -> vector<14x224xf32>
    %91 = arith.addf %83, %90 : vector<14x224xf32>
    %c0_83 = arith.constant 0 : index
    %c0_84 = arith.constant 0 : index
    %92 = vector.load %arg8[%c0_83, %c0_84] : memref<1x224xf32, #tpu.memory_space<vmem>>, vector<1x224xf32>
    %93 = vector.broadcast %92 : vector<1x224xf32> to vector<14x224xf32>
    %94 = arith.mulf %91, %93 : vector<14x224xf32>
    %c0_85 = arith.constant 0 : index
    %c0_86 = arith.constant 0 : index
    %95 = vector.load %arg9[%c0_85, %c0_86] : memref<1x224xf32, #tpu.memory_space<vmem>>, vector<1x224xf32>
    %96 = vector.broadcast %95 : vector<1x224xf32> to vector<14x224xf32>
    %97 = arith.addf %94, %96 : vector<14x224xf32>
    %cst_87 = arith.constant 0.000000e+00 : f32
    %98 = vector.broadcast %cst_87 : f32 to vector<14x224xf32>
    %99 = arith.maximumf %97, %98 : vector<14x224xf32>
    %100 = arith.truncf %99 : vector<14x224xf32> to vector<14x224xbf16>
    %cst_88 = arith.constant 0.000000e+00 : f32
    %101 = vector.broadcast %cst_88 : f32 to vector<4x64xf32>
    %c0_89 = arith.constant 0 : index
    %c0_90 = arith.constant 0 : index
    %c0_91 = arith.constant 0 : index
    %102 = vector.load %arg10[%c0_89, %c0_90, %c0_91] : memref<5x4x14xbf16, #tpu.memory_space<vmem>>, vector<1x4x14xbf16>
    %103 = vector.shape_cast %102 : vector<1x4x14xbf16> to vector<4x14xbf16>
    %cst_92 = arith.constant dense<0.000000e+00> : vector<4x224xf32>
    %104 = tpu.matmul %103, %100, %cst_92 {dimension_numbers = #tpu.dot_dimension_numbers<[1], [0], [0], [1], [0, 0, 1, 1], [], []>} : vector<4x14xbf16>, vector<14x224xbf16>, vector<4x224xf32> -> vector<4x224xf32>
    %105 = arith.truncf %104 : vector<4x224xf32> to vector<4x224xbf16>
    %c0_93 = arith.constant 0 : index
    %c0_94 = arith.constant 0 : index
    %c0_95 = arith.constant 0 : index
    %106 = vector.load %arg11[%c0_93, %c0_94, %c0_95] : memref<5x224x64xbf16, #tpu.memory_space<vmem>>, vector<1x224x64xbf16>
    %107 = vector.shape_cast %106 : vector<1x224x64xbf16> to vector<224x64xbf16>
    %cst_96 = arith.constant dense<0.000000e+00> : vector<4x64xf32>
    %108 = tpu.matmul %105, %107, %cst_96 {dimension_numbers = #tpu.dot_dimension_numbers<[1], [0], [0], [1], [0, 0, 1, 1], [], []>} : vector<4x224xbf16>, vector<224x64xbf16>, vector<4x64xf32> -> vector<4x64xf32>
    %109 = arith.addf %101, %108 : vector<4x64xf32>
    %c1_97 = arith.constant 1 : index
    %c0_98 = arith.constant 0 : index
    %c0_99 = arith.constant 0 : index
    %110 = vector.load %arg10[%c1_97, %c0_98, %c0_99] : memref<5x4x14xbf16, #tpu.memory_space<vmem>>, vector<1x4x14xbf16>
    %111 = vector.shape_cast %110 : vector<1x4x14xbf16> to vector<4x14xbf16>
    %cst_100 = arith.constant dense<0.000000e+00> : vector<4x224xf32>
    %112 = tpu.matmul %111, %100, %cst_100 {dimension_numbers = #tpu.dot_dimension_numbers<[1], [0], [0], [1], [0, 0, 1, 1], [], []>} : vector<4x14xbf16>, vector<14x224xbf16>, vector<4x224xf32> -> vector<4x224xf32>
    %113 = arith.truncf %112 : vector<4x224xf32> to vector<4x224xbf16>
    %c1_101 = arith.constant 1 : index
    %c0_102 = arith.constant 0 : index
    %c0_103 = arith.constant 0 : index
    %114 = vector.load %arg11[%c1_101, %c0_102, %c0_103] : memref<5x224x64xbf16, #tpu.memory_space<vmem>>, vector<1x224x64xbf16>
    %115 = vector.shape_cast %114 : vector<1x224x64xbf16> to vector<224x64xbf16>
    %cst_104 = arith.constant dense<0.000000e+00> : vector<4x64xf32>
    %116 = tpu.matmul %113, %115, %cst_104 {dimension_numbers = #tpu.dot_dimension_numbers<[1], [0], [0], [1], [0, 0, 1, 1], [], []>} : vector<4x224xbf16>, vector<224x64xbf16>, vector<4x64xf32> -> vector<4x64xf32>
    %117 = arith.addf %109, %116 : vector<4x64xf32>
    %c2_105 = arith.constant 2 : index
    %c0_106 = arith.constant 0 : index
    %c0_107 = arith.constant 0 : index
    %118 = vector.load %arg10[%c2_105, %c0_106, %c0_107] : memref<5x4x14xbf16, #tpu.memory_space<vmem>>, vector<1x4x14xbf16>
    %119 = vector.shape_cast %118 : vector<1x4x14xbf16> to vector<4x14xbf16>
    %cst_108 = arith.constant dense<0.000000e+00> : vector<4x224xf32>
    %120 = tpu.matmul %119, %100, %cst_108 {dimension_numbers = #tpu.dot_dimension_numbers<[1], [0], [0], [1], [0, 0, 1, 1], [], []>} : vector<4x14xbf16>, vector<14x224xbf16>, vector<4x224xf32> -> vector<4x224xf32>
    %121 = arith.truncf %120 : vector<4x224xf32> to vector<4x224xbf16>
    %c2_109 = arith.constant 2 : index
    %c0_110 = arith.constant 0 : index
    %c0_111 = arith.constant 0 : index
    %122 = vector.load %arg11[%c2_109, %c0_110, %c0_111] : memref<5x224x64xbf16, #tpu.memory_space<vmem>>, vector<1x224x64xbf16>
    %123 = vector.shape_cast %122 : vector<1x224x64xbf16> to vector<224x64xbf16>
    %cst_112 = arith.constant dense<0.000000e+00> : vector<4x64xf32>
    %124 = tpu.matmul %121, %123, %cst_112 {dimension_numbers = #tpu.dot_dimension_numbers<[1], [0], [0], [1], [0, 0, 1, 1], [], []>} : vector<4x224xbf16>, vector<224x64xbf16>, vector<4x64xf32> -> vector<4x64xf32>
    %125 = arith.addf %117, %124 : vector<4x64xf32>
    %c3_113 = arith.constant 3 : index
    %c0_114 = arith.constant 0 : index
    %c0_115 = arith.constant 0 : index
    %126 = vector.load %arg10[%c3_113, %c0_114, %c0_115] : memref<5x4x14xbf16, #tpu.memory_space<vmem>>, vector<1x4x14xbf16>
    %127 = vector.shape_cast %126 : vector<1x4x14xbf16> to vector<4x14xbf16>
    %cst_116 = arith.constant dense<0.000000e+00> : vector<4x224xf32>
    %128 = tpu.matmul %127, %100, %cst_116 {dimension_numbers = #tpu.dot_dimension_numbers<[1], [0], [0], [1], [0, 0, 1, 1], [], []>} : vector<4x14xbf16>, vector<14x224xbf16>, vector<4x224xf32> -> vector<4x224xf32>
    %129 = arith.truncf %128 : vector<4x224xf32> to vector<4x224xbf16>
    %c3_117 = arith.constant 3 : index
    %c0_118 = arith.constant 0 : index
    %c0_119 = arith.constant 0 : index
    %130 = vector.load %arg11[%c3_117, %c0_118, %c0_119] : memref<5x224x64xbf16, #tpu.memory_space<vmem>>, vector<1x224x64xbf16>
    %131 = vector.shape_cast %130 : vector<1x224x64xbf16> to vector<224x64xbf16>
    %cst_120 = arith.constant dense<0.000000e+00> : vector<4x64xf32>
    %132 = tpu.matmul %129, %131, %cst_120 {dimension_numbers = #tpu.dot_dimension_numbers<[1], [0], [0], [1], [0, 0, 1, 1], [], []>} : vector<4x224xbf16>, vector<224x64xbf16>, vector<4x64xf32> -> vector<4x64xf32>
    %133 = arith.addf %125, %132 : vector<4x64xf32>
    %c4_121 = arith.constant 4 : index
    %c0_122 = arith.constant 0 : index
    %c0_123 = arith.constant 0 : index
    %134 = vector.load %arg10[%c4_121, %c0_122, %c0_123] : memref<5x4x14xbf16, #tpu.memory_space<vmem>>, vector<1x4x14xbf16>
    %135 = vector.shape_cast %134 : vector<1x4x14xbf16> to vector<4x14xbf16>
    %cst_124 = arith.constant dense<0.000000e+00> : vector<4x224xf32>
    %136 = tpu.matmul %135, %100, %cst_124 {dimension_numbers = #tpu.dot_dimension_numbers<[1], [0], [0], [1], [0, 0, 1, 1], [], []>} : vector<4x14xbf16>, vector<14x224xbf16>, vector<4x224xf32> -> vector<4x224xf32>
    %137 = arith.truncf %136 : vector<4x224xf32> to vector<4x224xbf16>
    %c4_125 = arith.constant 4 : index
    %c0_126 = arith.constant 0 : index
    %c0_127 = arith.constant 0 : index
    %138 = vector.load %arg11[%c4_125, %c0_126, %c0_127] : memref<5x224x64xbf16, #tpu.memory_space<vmem>>, vector<1x224x64xbf16>
    %139 = vector.shape_cast %138 : vector<1x224x64xbf16> to vector<224x64xbf16>
    %cst_128 = arith.constant dense<0.000000e+00> : vector<4x64xf32>
    %140 = tpu.matmul %137, %139, %cst_128 {dimension_numbers = #tpu.dot_dimension_numbers<[1], [0], [0], [1], [0, 0, 1, 1], [], []>} : vector<4x224xbf16>, vector<224x64xbf16>, vector<4x64xf32> -> vector<4x64xf32>
    %141 = arith.addf %133, %140 : vector<4x64xf32>
    %c0_129 = arith.constant 0 : index
    %c0_130 = arith.constant 0 : index
    %142 = vector.load %arg12[%c0_129, %c0_130] : memref<1x64xf32, #tpu.memory_space<vmem>>, vector<1x64xf32>
    %143 = vector.broadcast %142 : vector<1x64xf32> to vector<4x64xf32>
    %144 = arith.mulf %141, %143 : vector<4x64xf32>
    %c0_131 = arith.constant 0 : index
    %c0_132 = arith.constant 0 : index
    %145 = vector.load %arg13[%c0_131, %c0_132] : memref<1x64xf32, #tpu.memory_space<vmem>>, vector<1x64xf32>
    %146 = vector.broadcast %145 : vector<1x64xf32> to vector<4x64xf32>
    %147 = arith.addf %144, %146 : vector<4x64xf32>
    %cst_133 = arith.constant 0.000000e+00 : f32
    %148 = vector.broadcast %cst_133 : f32 to vector<4x64xf32>
    %149 = arith.maximumf %147, %148 : vector<4x64xf32>
    %150 = arith.truncf %149 : vector<4x64xf32> to vector<4x64xbf16>
    %cst_134 = arith.constant 0.000000e+00 : f32
    %151 = vector.broadcast %cst_134 : f32 to vector<2x2xf32>
    %c0_135 = arith.constant 0 : index
    %c0_136 = arith.constant 0 : index
    %c0_137 = arith.constant 0 : index
    %152 = vector.load %arg14[%c0_135, %c0_136, %c0_137] : memref<2x2x4xbf16, #tpu.memory_space<vmem>>, vector<1x2x4xbf16>
    %153 = vector.shape_cast %152 : vector<1x2x4xbf16> to vector<2x4xbf16>
    %cst_138 = arith.constant dense<0.000000e+00> : vector<2x64xf32>
    %154 = tpu.matmul %153, %150, %cst_138 {dimension_numbers = #tpu.dot_dimension_numbers<[1], [0], [0], [1], [0, 0, 1, 1], [], []>} : vector<2x4xbf16>, vector<4x64xbf16>, vector<2x64xf32> -> vector<2x64xf32>
    %155 = arith.truncf %154 : vector<2x64xf32> to vector<2x64xbf16>
    %c0_139 = arith.constant 0 : index
    %c0_140 = arith.constant 0 : index
    %c0_141 = arith.constant 0 : index
    %156 = vector.load %arg15[%c0_139, %c0_140, %c0_141] : memref<2x64x2xbf16, #tpu.memory_space<vmem>>, vector<1x64x2xbf16>
    %157 = vector.shape_cast %156 : vector<1x64x2xbf16> to vector<64x2xbf16>
    %cst_142 = arith.constant dense<0.000000e+00> : vector<2x2xf32>
    %158 = tpu.matmul %155, %157, %cst_142 {dimension_numbers = #tpu.dot_dimension_numbers<[1], [0], [0], [1], [0, 0, 1, 1], [], []>} : vector<2x64xbf16>, vector<64x2xbf16>, vector<2x2xf32> -> vector<2x2xf32>
    %159 = arith.addf %151, %158 : vector<2x2xf32>
    %c1_143 = arith.constant 1 : index
    %c0_144 = arith.constant 0 : index
    %c0_145 = arith.constant 0 : index
    %160 = vector.load %arg14[%c1_143, %c0_144, %c0_145] : memref<2x2x4xbf16, #tpu.memory_space<vmem>>, vector<1x2x4xbf16>
    %161 = vector.shape_cast %160 : vector<1x2x4xbf16> to vector<2x4xbf16>
    %cst_146 = arith.constant dense<0.000000e+00> : vector<2x64xf32>
    %162 = tpu.matmul %161, %150, %cst_146 {dimension_numbers = #tpu.dot_dimension_numbers<[1], [0], [0], [1], [0, 0, 1, 1], [], []>} : vector<2x4xbf16>, vector<4x64xbf16>, vector<2x64xf32> -> vector<2x64xf32>
    %163 = arith.truncf %162 : vector<2x64xf32> to vector<2x64xbf16>
    %c1_147 = arith.constant 1 : index
    %c0_148 = arith.constant 0 : index
    %c0_149 = arith.constant 0 : index
    %164 = vector.load %arg15[%c1_147, %c0_148, %c0_149] : memref<2x64x2xbf16, #tpu.memory_space<vmem>>, vector<1x64x2xbf16>
    %165 = vector.shape_cast %164 : vector<1x64x2xbf16> to vector<64x2xbf16>
    %cst_150 = arith.constant dense<0.000000e+00> : vector<2x2xf32>
    %166 = tpu.matmul %163, %165, %cst_150 {dimension_numbers = #tpu.dot_dimension_numbers<[1], [0], [0], [1], [0, 0, 1, 1], [], []>} : vector<2x64xbf16>, vector<64x2xbf16>, vector<2x2xf32> -> vector<2x2xf32>
    %167 = arith.addf %159, %166 : vector<2x2xf32>
    %c0_151 = arith.constant 0 : index
    %c0_152 = arith.constant 0 : index
    %168 = vector.load %arg16[%c0_151, %c0_152] : memref<1x2xf32, #tpu.memory_space<vmem>>, vector<1x2xf32>
    %169 = vector.broadcast %168 : vector<1x2xf32> to vector<2x2xf32>
    %170 = arith.mulf %167, %169 : vector<2x2xf32>
    %c0_153 = arith.constant 0 : index
    %c0_154 = arith.constant 0 : index
    %171 = vector.load %arg17[%c0_153, %c0_154] : memref<1x2xf32, #tpu.memory_space<vmem>>, vector<1x2xf32>
    %172 = vector.broadcast %171 : vector<1x2xf32> to vector<2x2xf32>
    %173 = arith.addf %170, %172 : vector<2x2xf32>
    %c0_155 = arith.constant 0 : index
    %c0_156 = arith.constant 0 : index
    %174 = vector.load %arg18[%c0_155, %c0_156] : memref<2x2xf32, #tpu.memory_space<vmem>>, vector<2x2xf32>
    tpu.vector_store %arg18[%c0_155, %c0_156], %173 {strides = array<i32>} : memref<2x2xf32, #tpu.memory_space<vmem>>, vector<2x2xf32>,
    return
  }
  func.func @transform_0(%arg0: i32) -> (i32, i32) {
    %c0_i32 = arith.constant 0 : i32
    %c0_i32_0 = arith.constant 0 : i32
    %c0_i32_1 = arith.constant 0 : i32
    return %c0_i32, %c0_i32_0 : i32, i32
  }
  func.func @transform_1(%arg0: i32) -> (i32, i32, i32) {
    %c0_i32 = arith.constant 0 : i32
    %c0_i32_0 = arith.constant 0 : i32
    %c0_i32_1 = arith.constant 0 : i32
    %c0_i32_2 = arith.constant 0 : i32
    return %c0_i32, %c0_i32_0, %c0_i32_1 : i32, i32, i32
  }
  func.func @transform_2(%arg0: i32) -> (i32, i32, i32) {
    %c0_i32 = arith.constant 0 : i32
    %c0_i32_0 = arith.constant 0 : i32
    %c0_i32_1 = arith.constant 0 : i32
    %c0_i32_2 = arith.constant 0 : i32
    return %c0_i32, %c0_i32_0, %c0_i32_1 : i32, i32, i32
  }
  func.func @transform_3(%arg0: i32) -> (i32, i32) {
    %c0_i32 = arith.constant 0 : i32
    %c0_i32_0 = arith.constant 0 : i32
    %c0_i32_1 = arith.constant 0 : i32
    return %c0_i32, %c0_i32_0 : i32, i32
  }
  func.func @transform_4(%arg0: i32) -> (i32, i32) {
    %c0_i32 = arith.constant 0 : i32
    %c0_i32_0 = arith.constant 0 : i32
    %c0_i32_1 = arith.constant 0 : i32
    return %c0_i32, %c0_i32_0 : i32, i32
  }
  func.func @transform_5(%arg0: i32) -> (i32, i32, i32) {
    %c0_i32 = arith.constant 0 : i32
    %c0_i32_0 = arith.constant 0 : i32
    %c0_i32_1 = arith.constant 0 : i32
    %c0_i32_2 = arith.constant 0 : i32
    return %c0_i32, %c0_i32_0, %c0_i32_1 : i32, i32, i32
  }
  func.func @transform_6(%arg0: i32) -> (i32, i32, i32) {
    %c0_i32 = arith.constant 0 : i32
    %c0_i32_0 = arith.constant 0 : i32
    %c0_i32_1 = arith.constant 0 : i32
    %c0_i32_2 = arith.constant 0 : i32
    return %c0_i32, %c0_i32_0, %c0_i32_1 : i32, i32, i32
  }
  func.func @transform_7(%arg0: i32) -> (i32, i32) {
    %c0_i32 = arith.constant 0 : i32
    %c0_i32_0 = arith.constant 0 : i32
    %c0_i32_1 = arith.constant 0 : i32
    return %c0_i32, %c0_i32_0 : i32, i32
  }
  func.func @transform_8(%arg0: i32) -> (i32, i32) {
    %c0_i32 = arith.constant 0 : i32
    %c0_i32_0 = arith.constant 0 : i32
    %c0_i32_1 = arith.constant 0 : i32
    return %c0_i32, %c0_i32_0 : i32, i32
  }
  func.func @transform_9(%arg0: i32) -> (i32, i32, i32) {
    %c0_i32 = arith.constant 0 : i32
    %c0_i32_0 = arith.constant 0 : i32
    %c0_i32_1 = arith.constant 0 : i32
    %c0_i32_2 = arith.constant 0 : i32
    return %c0_i32, %c0_i32_0, %c0_i32_1 : i32, i32, i32
  }
  func.func @transform_10(%arg0: i32) -> (i32, i32, i32) {
    %c0_i32 = arith.constant 0 : i32
    %c0_i32_0 = arith.constant 0 : i32
    %c0_i32_1 = arith.constant 0 : i32
    %c0_i32_2 = arith.constant 0 : i32
    return %c0_i32, %c0_i32_0, %c0_i32_1 : i32, i32, i32
  }
  func.func @transform_11(%arg0: i32) -> (i32, i32) {
    %c0_i32 = arith.constant 0 : i32
    %c0_i32_0 = arith.constant 0 : i32
    %c0_i32_1 = arith.constant 0 : i32
    return %c0_i32, %c0_i32_0 : i32, i32
  }
  func.func @transform_12(%arg0: i32) -> (i32, i32) {
    %c0_i32 = arith.constant 0 : i32
    %c0_i32_0 = arith.constant 0 : i32
    %c0_i32_1 = arith.constant 0 : i32
    return %c0_i32, %c0_i32_0 : i32, i32
  }
  func.func @transform_13(%arg0: i32) -> (i32, i32, i32) {
    %c0_i32 = arith.constant 0 : i32
    %c0_i32_0 = arith.constant 0 : i32
    %c0_i32_1 = arith.constant 0 : i32
    %c0_i32_2 = arith.constant 0 : i32
    return %c0_i32, %c0_i32_0, %c0_i32_1 : i32, i32, i32
  }
  func.func @transform_14(%arg0: i32) -> (i32, i32, i32) {
    %c0_i32 = arith.constant 0 : i32
    %c0_i32_0 = arith.constant 0 : i32
    %c0_i32_1 = arith.constant 0 : i32
    %c0_i32_2 = arith.constant 0 : i32
    return %c0_i32, %c0_i32_0, %c0_i32_1 : i32, i32, i32
  }
  func.func @transform_15(%arg0: i32) -> (i32, i32) {
    %c0_i32 = arith.constant 0 : i32
    %c0_i32_0 = arith.constant 0 : i32
    %c0_i32_1 = arith.constant 0 : i32
    return %c0_i32, %c0_i32_0 : i32, i32
  }
  func.func @transform_16(%arg0: i32) -> (i32, i32) {
    %c0_i32 = arith.constant 0 : i32
    %c0_i32_0 = arith.constant 0 : i32
    %c0_i32_1 = arith.constant 0 : i32
    return %c0_i32, %c0_i32_0 : i32, i32
  }
  func.func @transform_17(%arg0: i32) -> (i32, i32) {
    %c0_i32 = arith.constant 0 : i32
    %c0_i32_0 = arith.constant 0 : i32
    %c0_i32_1 = arith.constant 0 : i32
    return %c0_i32, %c0_i32_0 : i32, i32
  }
}

</mosaic_0001>

<llo_original>
// kernel: dqn_forward.1
$region0: #{dqn_forward.1}
  #allocation0 [shape = 'u32[]', space=smem, size = 0x4, offset = 0x4, fixed_abs, tag = 'smem constant byte address 0x4 - core index']
  #allocation1 [shape = 'u32[72,128]{1,0:T(1,128)}', space=vmem, size = 0x9000, scoped, tag = 'internal scratch']
  %s0 = inlined_call_operand.vmem [shape: bf16[80,120], index: 0, kind: input, shape index: {}]
  %s1 = inlined_call_operand.vmem [shape: bf16[5,36,80], index: 1, kind: input, shape index: {}]
  %s2 = inlined_call_operand.vmem [shape: bf16[5,120,288], index: 2, kind: input, shape index: {}]
  %s3 = inlined_call_operand.vmem [shape: f32[1,288], index: 3, kind: input, shape index: {}]
  %s4 = inlined_call_operand.vmem [shape: f32[1,288], index: 4, kind: input, shape index: {}]
  %s5 = inlined_call_operand.vmem [shape: bf16[5,14,36], index: 5, kind: input, shape index: {}]
  %s6 = inlined_call_operand.vmem [shape: bf16[5,288,224], index: 6, kind: input, shape index: {}]
  %s7 = inlined_call_operand.vmem [shape: f32[1,224], index: 7, kind: input, shape index: {}]
  %s8 = inlined_call_operand.vmem [shape: f32[1,224], index: 8, kind: input, shape index: {}]
  %s9 = inlined_call_operand.vmem [shape: bf16[5,4,14], index: 9, kind: input, shape index: {}]
  %s10 = inlined_call_operand.vmem [shape: bf16[5,224,64], index: 10, kind: input, shape index: {}]
  %s11 = inlined_call_operand.vmem [shape: f32[1,64], index: 11, kind: input, shape index: {}]
  %s12 = inlined_call_operand.vmem [shape: f32[1,64], index: 12, kind: input, shape index: {}]
  %s13 = inlined_call_operand.vmem [shape: bf16[2,2,4], index: 13, kind: input, shape index: {}]
  %s14 = inlined_call_operand.vmem [shape: bf16[2,64,2], index: 14, kind: input, shape index: {}]
  %s15 = inlined_call_operand.vmem [shape: f32[1,2], index: 15, kind: input, shape index: {}]
  %s16 = inlined_call_operand.vmem [shape: f32[1,2], index: 16, kind: input, shape index: {}]
  %s17 = inlined_call_operand.hbm [shape: f32[2,2], index: 17, kind: output, shape index: {}]
  %s18 = sld [smem:[#allocation0]]
  $region78: #{dqn_forward.1} parent=0
    _
  %s20 = ssub.s32 1, %s18
  %s21 = scalar_select 0, %s20, %s18
  $region1: #{dqn_forward.1} parent=0
    #allocation2 [shape = 'u8[1024]{0}', space=vmem, size = 0x400, scoped, tag = 'output window, operand 0, single buffered']
    #allocation3 [shape = 's32[1]{0}', space=sflag, size = 0x4, scoped, tag = 'scoped memory for dqn_forward.1']
    %22 = vsyncpa [#allocation3], 0
    // Predicated region
    $region2: #{dqn_forward.1} parent=1 // pred_check
      _
    $region3: #{dqn_forward.1} parent=1 // pred_check_branch
      %24 = sbr.rel (0) target = $region5
    $region4: #{dqn_forward.1} parent=1 // pred_region
      _
    $region5: #{dqn_forward.1} parent=1 // pred_fallthru
      _
    // Predicated region
    $region6: #{dqn_forward.1} parent=1 // pred_check
      _
    $region7: #{dqn_forward.1} parent=1 // pred_check_branch
      %26 = sbr.rel (0) target = $region9
    $region8: #{dqn_forward.1} parent=1 // pred_region
      _
    $region9: #{dqn_forward.1} parent=1 // pred_fallthru
      _
    // Predicated region
    $region10: #{dqn_forward.1} parent=1 // pred_check
      _
    $region11: #{dqn_forward.1} parent=1 // pred_check_branch
      %28 = sbr.rel (0) target = $region13
    $region12: #{dqn_forward.1} parent=1 // pred_region
      _
    $region13: #{dqn_forward.1} parent=1 // pred_fallthru
      _
    // Predicated region
    $region14: #{dqn_forward.1} parent=1 // pred_check
      _
    $region15: #{dqn_forward.1} parent=1 // pred_check_branch
      %30 = sbr.rel (0) target = $region17
    $region16: #{dqn_forward.1} parent=1 // pred_region
      _
    $region17: #{dqn_forward.1} parent=1 // pred_fallthru
      _
    // Predicated region
    $region18: #{dqn_forward.1} parent=1 // pred_check
      _
    $region19: #{dqn_forward.1} parent=1 // pred_check_branch
      %32 = sbr.rel (0) target = $region21
    $region20: #{dqn_forward.1} parent=1 // pred_region
      _
    $region21: #{dqn_forward.1} parent=1 // pred_fallthru
      _
    // Predicated region
    $region22: #{dqn_forward.1} parent=1 // pred_check
      _
    $region23: #{dqn_forward.1} parent=1 // pred_check_branch
      %34 = sbr.rel (0) target = $region25
    $region24: #{dqn_forward.1} parent=1 // pred_region
      _
    $region25: #{dqn_forward.1} parent=1 // pred_fallthru
      _
    // Predicated region
    $region26: #{dqn_forward.1} parent=1 // pred_check
      _
    $region27: #{dqn_forward.1} parent=1 // pred_check_branch
      %36 = sbr.rel (0) target = $region29
    $region28: #{dqn_forward.1} parent=1 // pred_region
      _
    $region29: #{dqn_forward.1} parent=1 // pred_fallthru
      _
    // Predicated region
    $region30: #{dqn_forward.1} parent=1 // pred_check
      _
    $region31: #{dqn_forward.1} parent=1 // pred_check_branch
      %38 = sbr.rel (0) target = $region33
    $region32: #{dqn_forward.1} parent=1 // pred_region
      _
    $region33: #{dqn_forward.1} parent=1 // pred_fallthru
      _
    // Predicated region
    $region34: #{dqn_forward.1} parent=1 // pred_check
      _
    $region35: #{dqn_forward.1} parent=1 // pred_check_branch
      %40 = sbr.rel (0) target = $region37
    $region36: #{dqn_forward.1} parent=1 // pred_region
      _
    $region37: #{dqn_forward.1} parent=1 // pred_fallthru
      _
    // Predicated region
    $region38: #{dqn_forward.1} parent=1 // pred_check
      _
    $region39: #{dqn_forward.1} parent=1 // pred_check_branch
      %42 = sbr.rel (0) target = $region41
    $region40: #{dqn_forward.1} parent=1 // pred_region
      _
    $region41: #{dqn_forward.1} parent=1 // pred_fallthru
      _
    // Predicated region
    $region42: #{dqn_forward.1} parent=1 // pred_check
      _
    $region43: #{dqn_forward.1} parent=1 // pred_check_branch
      %44 = sbr.rel (0) target = $region45
    $region44: #{dqn_forward.1} parent=1 // pred_region
      _
    $region45: #{dqn_forward.1} parent=1 // pred_fallthru
      _
    // Predicated region
    $region46: #{dqn_forward.1} parent=1 // pred_check
      _
    $region47: #{dqn_forward.1} parent=1 // pred_check_branch
      %46 = sbr.rel (0) target = $region49
    $region48: #{dqn_forward.1} parent=1 // pred_region
      _
    $region49: #{dqn_forward.1} parent=1 // pred_fallthru
      _
    // Predicated region
    $region50: #{dqn_forward.1} parent=1 // pred_check
      _
    $region51: #{dqn_forward.1} parent=1 // pred_check_branch
      %48 = sbr.rel (0) target = $region53
    $region52: #{dqn_forward.1} parent=1 // pred_region
      _
    $region53: #{dqn_forward.1} parent=1 // pred_fallthru
      _
    // Predicated region
    $region54: #{dqn_forward.1} parent=1 // pred_check
      _
    $region55: #{dqn_forward.1} parent=1 // pred_check_branch
      %50 = sbr.rel (0) target = $region57
    $region56: #{dqn_forward.1} parent=1 // pred_region
      _
    $region57: #{dqn_forward.1} parent=1 // pred_fallthru
      _
    // Predicated region
    $region58: #{dqn_forward.1} parent=1 // pred_check
      _
    $region59: #{dqn_forward.1} parent=1 // pred_check_branch
      %52 = sbr.rel (0) target = $region61
    $region60: #{dqn_forward.1} parent=1 // pred_region
      _
    $region61: #{dqn_forward.1} parent=1 // pred_fallthru
      _
    // Predicated region
    $region62: #{dqn_forward.1} parent=1 // pred_check
      _
    $region63: #{dqn_forward.1} parent=1 // pred_check_branch
      %54 = sbr.rel (0) target = $region65
    $region64: #{dqn_forward.1} parent=1 // pred_region
      _
    $region65: #{dqn_forward.1} parent=1 // pred_fallthru
      _
    // Predicated region
    $region66: #{dqn_forward.1} parent=1 // pred_check
      _
    $region67: #{dqn_forward.1} parent=1 // pred_check_branch
      %56 = sbr.rel (0) target = $region69
    $region68: #{dqn_forward.1} parent=1 // pred_region
      _
    $region69: #{dqn_forward.1} parent=1 // pred_fallthru
      _
    %v58 = vld [vmem:[%s0] sm:$0xf]
    %v59 = vld [vmem:[%s0 + $0x4] sm:$0xf]
    %v60 = vld [vmem:[%s0 + $0x8] sm:$0xf]
    %v61 = vld [vmem:[%s0 + $0xc] sm:$0xf]
    %v62 = vld [vmem:[%s0 + $0x10] sm:$0xf]
    %v63 = vld [vmem:[%s0 + $0x14] sm:$0xf]
    %v64 = vld [vmem:[%s0 + $0x18] sm:$0xf]
    %v65 = vld [vmem:[%s0 + $0x1c] sm:$0xf]
    %v66 = vld [vmem:[%s0 + $0x20] sm:$0xf]
    %v67 = vld [vmem:[%s0 + $0x24] sm:$0xf]
    %v68 = vld [vmem:[%s1] sm:$0xf]
    %v69 = vld [vmem:[%s1 + $0x4] sm:$0xf]
    %v70 = vld [vmem:[%s1 + $0x8] sm:$0xf]
    %v71 = vld [vmem:[%s1 + $0xc] sm:$0xf]
    %v72 = vld [vmem:[%s1 + $0x10] sm:$0x3]
    %v78 = vunpack.c.l.b16 %v68
    %v79 = vunpack.c.l.b16 %v69
    %v80 = vunpack.c.l.b16 %v70
    %v81 = vunpack.c.l.b16 %v71
    %v82 = vunpack.c.l.b16 %v72
    %v83 = vpack.c.b16 %v79, %v78
    %v84 = vpack.c.b16 %v81, %v80
    %v85 = vpack.c.b16 %v82, %v82
    %v96 = vunpack.c.l.b16 %v58
    %v97 = vunpack.c.l.b16 %v59
    %v98 = vunpack.c.l.b16 %v60
    %v99 = vunpack.c.l.b16 %v61
    %v100 = vunpack.c.l.b16 %v62
    %v101 = vunpack.c.l.b16 %v63
    %v102 = vunpack.c.l.b16 %v64
    %v103 = vunpack.c.l.b16 %v65
    %v104 = vunpack.c.l.b16 %v66
    %v105 = vunpack.c.l.b16 %v67
    %v106 = vpack.c.b16 %v97, %v96
    %v107 = vpack.c.b16 %v99, %v98
    %v108 = vpack.c.b16 %v101, %v100
    %v109 = vpack.c.b16 %v103, %v102
    %v110 = vpack.c.b16 %v105, %v104
    %vm116 = vcmask 654336
    %v118 = vsel %vm116, %v83, 0
    %v121 = vsel %vm116, %v84, 0
    %v124 = vsel %vm116, %v85, 0
    %126 = vmatpush.bf16.msra.mxu0 0
    %127 = vmatpush.bf16.msra.mxu0 0
    %128 = vmatpush.bf16.msra.mxu0 0
    %129 = vmatpush.bf16.msra.mxu0 %v110
    %130 = vmatpush.bf16.msra.mxu0 %v109
    %131 = vmatpush.bf16.msra.mxu0 %v108
    %132 = vmatpush.bf16.msra.mxu0 %v107
    %133 = vmatpush.bf16.msra.mxu0 %v106
    %134 = vmatmul.bf16.gmra.mxu0 %v118
    %v135 = vpop.f32.mrf.mxu0
    %v136 = vadd.f32 0.0, %v135
    %v137 = vpop.f32.mrf.mxu0
    %v138 = vadd.f32 0.0, %v137
    %139 = vmatmul.bf16.gmra.mxu0 %v121
    %v140 = vpop.f32.mrf.mxu0
    %v141 = vadd.f32 0.0, %v140
    %v142 = vpop.f32.mrf.mxu0
    %v143 = vadd.f32 0.0, %v142
    %144 = vmatmul.bf16.gmra.mxu0 %v124
    %v145 = vpop.f32.mrf.mxu0
    %v146 = vadd.f32 0.0, %v145
    %v147 = vpop.f32.mrf.mxu0
    %148 = vdwg.mxu0
    %v149 = vpack.c.bf16 %v138, %v136
    %v150 = vpack.c.bf16 %v143, %v141
    %v151 = vpack.c.bf16 %v146, %v146
    %v152 = vld [vmem:[%s2] sm:$0xff]
    %v153 = vld [vmem:[%s2 + $0x8] sm:$0xf]
    %v154 = vld [vmem:[%s2 + $0xc] sm:$0xff]
    %v155 = vld [vmem:[%s2 + $0x14] sm:$0xf]
    %v156 = vld [vmem:[%s2 + $0x18] sm:$0xff]
    %v157 = vld [vmem:[%s2 + $0x20] sm:$0xf]
    %v158 = vld [vmem:[%s2 + $0x24] sm:$0xff]
    %v159 = vld [vmem:[%s2 + $0x2c] sm:$0xf]
    %v160 = vld [vmem:[%s2 + $0x30] sm:$0xff]
    %v161 = vld [vmem:[%s2 + $0x38] sm:$0xf]
    %v162 = vld [vmem:[%s2 + $0x3c] sm:$0xff]
    %v163 = vld [vmem:[%s2 + $0x44] sm:$0xf]
    %v164 = vld [vmem:[%s2 + $0x48] sm:$0xff]
    %v165 = vld [vmem:[%s2 + $0x50] sm:$0xf]
    %v166 = vld [vmem:[%s2 + $0x54] sm:$0xff]
    %v167 = vld [vmem:[%s2 + $0x5c] sm:$0xf]
    %v168 = vld [vmem:[%s2 + $0x60] sm:$0xff]
    %v169 = vld [vmem:[%s2 + $0x68] sm:$0xf]
    %v170 = vld [vmem:[%s2 + $0x6c] sm:$0xff]
    %v171 = vld [vmem:[%s2 + $0x74] sm:$0xf]
    %v172 = vld [vmem:[%s2 + $0x78] sm:$0xff]
    %v173 = vld [vmem:[%s2 + $0x80] sm:$0xf]
    %v174 = vld [vmem:[%s2 + $0x84] sm:$0xff]
    %v175 = vld [vmem:[%s2 + $0x8c] sm:$0xf]
    %v176 = vld [vmem:[%s2 + $0x90] sm:$0xff]
    %v177 = vld [vmem:[%s2 + $0x98] sm:$0xf]
    %v178 = vld [vmem:[%s2 + $0x9c] sm:$0xff]
    %v179 = vld [vmem:[%s2 + $0xa4] sm:$0xf]
    %v180 = vld [vmem:[%s2 + $0xa8] sm:$0xff]
    %v181 = vld [vmem:[%s2 + $0xb0] sm:$0xf]
    %s182 = scalar_lea.vmem %s1, 20
    %v183 = vld [vmem:[%s182] sm:$0xf]
    %v184 = vld [vmem:[%s182 + $0x4] sm:$0xf]
    %v185 = vld [vmem:[%s182 + $0x8] sm:$0xf]
    %v186 = vld [vmem:[%s182 + $0xc] sm:$0xf]
    %v187 = vld [vmem:[%s182 + $0x10] sm:$0x3]
    %v193 = vunpack.c.l.b16 %v183
    %v194 = vunpack.c.l.b16 %v184
    %v195 = vunpack.c.l.b16 %v185
    %v196 = vunpack.c.l.b16 %v186
    %v197 = vunpack.c.l.b16 %v187
    %v198 = vpack.c.b16 %v194, %v193
    %v199 = vpack.c.b16 %v196, %v195
    %v200 = vpack.c.b16 %v197, %v197
    %v202 = vsel %vm116, %v198, 0
    %v205 = vsel %vm116, %v199, 0
    %v208 = vsel %vm116, %v200, 0
    %210 = vmatpush.bf16.msra.mxu0 0
    %211 = vmatpush.bf16.msra.mxu0 0
    %212 = vmatpush.bf16.msra.mxu0 0
    %213 = vmatpush.bf16.msra.mxu0 %v110
    %214 = vmatpush.bf16.msra.mxu0 %v109
    %215 = vmatpush.bf16.msra.mxu0 %v108
    %216 = vmatpush.bf16.msra.mxu0 %v107
    %217 = vmatpush.bf16.msra.mxu0 %v106
    %218 = vmatmul.bf16.gmra.mxu0 %v202
    %v219 = vpop.f32.mrf.mxu0
    %v220 = vadd.f32 0.0, %v219
    %v221 = vpop.f32.mrf.mxu0
    %v222 = vadd.f32 0.0, %v221
    %223 = vmatmul.bf16.gmra.mxu0 %v205
    %v224 = vpop.f32.mrf.mxu0
    %v225 = vadd.f32 0.0, %v224
    %v226 = vpop.f32.mrf.mxu0
    %v227 = vadd.f32 0.0, %v226
    %228 = vmatmul.bf16.gmra.mxu0 %v208
    %v229 = vpop.f32.mrf.mxu0
    %v230 = vadd.f32 0.0, %v229
    %v231 = vpop.f32.mrf.mxu0
    %232 = vdwg.mxu0
    %v233 = vpack.c.bf16 %v222, %v220
    %v234 = vpack.c.bf16 %v227, %v225
    %v235 = vpack.c.bf16 %v230, %v230
    %s236 = scalar_lea.vmem %s2, 180
    %v237 = vld [vmem:[%s236] sm:$0xff]
    %v238 = vld [vmem:[%s236 + $0x8] sm:$0xf]
    %v239 = vld [vmem:[%s236 + $0xc] sm:$0xff]
    %v240 = vld [vmem:[%s236 + $0x14] sm:$0xf]
    %v241 = vld [vmem:[%s236 + $0x18] sm:$0xff]
    %v242 = vld [vmem:[%s236 + $0x20] sm:$0xf]
    %v243 = vld [vmem:[%s236 + $0x24] sm:$0xff]
    %v244 = vld [vmem:[%s236 + $0x2c] sm:$0xf]
    %v245 = vld [vmem:[%s236 + $0x30] sm:$0xff]
    %v246 = vld [vmem:[%s236 + $0x38] sm:$0xf]
    %v247 = vld [vmem:[%s236 + $0x3c] sm:$0xff]
    %v248 = vld [vmem:[%s236 + $0x44] sm:$0xf]
    %v249 = vld [vmem:[%s236 + $0x48] sm:$0xff]
    %v250 = vld [vmem:[%s236 + $0x50] sm:$0xf]
    %v251 = vld [vmem:[%s236 + $0x54] sm:$0xff]
    %v252 = vld [vmem:[%s236 + $0x5c] sm:$0xf]
    %v253 = vld [vmem:[%s236 + $0x60] sm:$0xff]
    %v254 = vld [vmem:[%s236 + $0x68] sm:$0xf]
    %v255 = vld [vmem:[%s236 + $0x6c] sm:$0xff]
    %v256 = vld [vmem:[%s236 + $0x74] sm:$0xf]
    %v257 = vld [vmem:[%s236 + $0x78] sm:$0xff]
    %v258 = vld [vmem:[%s236 + $0x80] sm:$0xf]
    %v259 = vld [vmem:[%s236 + $0x84] sm:$0xff]
    %v260 = vld [vmem:[%s236 + $0x8c] sm:$0xf]
    %v261 = vld [vmem:[%s236 + $0x90] sm:$0xff]
    %v262 = vld [vmem:[%s236 + $0x98] sm:$0xf]
    %v263 = vld [vmem:[%s236 + $0x9c] sm:$0xff]
    %v264 = vld [vmem:[%s236 + $0xa4] sm:$0xf]
    %v265 = vld [vmem:[%s236 + $0xa8] sm:$0xff]
    %v266 = vld [vmem:[%s236 + $0xb0] sm:$0xf]
    %v297 = vunpack.c.l.b16 %v237
    %v298 = vunpack.c.h.b16 %v237
    %v299 = vunpack.c.l.b16 %v238
    %v300 = vunpack.c.l.b16 %v239
    %v301 = vunpack.c.h.b16 %v239
    %v302 = vunpack.c.l.b16 %v240
    %v303 = vunpack.c.l.b16 %v241
    %v304 = vunpack.c.h.b16 %v241
    %v305 = vunpack.c.l.b16 %v242
    %v306 = vunpack.c.l.b16 %v243
    %v307 = vunpack.c.h.b16 %v243
    %v308 = vunpack.c.l.b16 %v244
    %v309 = vunpack.c.l.b16 %v245
    %v310 = vunpack.c.h.b16 %v245
    %v311 = vunpack.c.l.b16 %v246
    %v312 = vunpack.c.l.b16 %v247
    %v313 = vunpack.c.h.b16 %v247
    %v314 = vunpack.c.l.b16 %v248
    %v315 = vunpack.c.l.b16 %v249
    %v316 = vunpack.c.h.b16 %v249
    %v317 = vunpack.c.l.b16 %v250
    %v318 = vunpack.c.l.b16 %v251
    %v319 = vunpack.c.h.b16 %v251
    %v320 = vunpack.c.l.b16 %v252
    %v321 = vunpack.c.l.b16 %v253
    %v322 = vunpack.c.h.b16 %v253
    %v323 = vunpack.c.l.b16 %v254
    %v324 = vunpack.c.l.b16 %v255
    %v325 = vunpack.c.h.b16 %v255
    %v326 = vunpack.c.l.b16 %v256
    %v327 = vunpack.c.l.b16 %v257
    %v328 = vunpack.c.h.b16 %v257
    %v329 = vunpack.c.l.b16 %v258
    %v330 = vunpack.c.l.b16 %v259
    %v331 = vunpack.c.h.b16 %v259
    %v332 = vunpack.c.l.b16 %v260
    %v333 = vunpack.c.l.b16 %v261
    %v334 = vunpack.c.h.b16 %v261
    %v335 = vunpack.c.l.b16 %v262
    %v336 = vunpack.c.l.b16 %v263
    %v337 = vunpack.c.h.b16 %v263
    %v338 = vunpack.c.l.b16 %v264
    %v339 = vunpack.c.l.b16 %v265
    %v340 = vunpack.c.h.b16 %v265
    %v341 = vunpack.c.l.b16 %v266
    %v342 = vpack.c.b16 %v300, %v297
    %v343 = vpack.c.b16 %v301, %v298
    %v344 = vpack.c.b16 %v302, %v299
    %v345 = vpack.c.b16 %v306, %v303
    %v346 = vpack.c.b16 %v307, %v304
    %v347 = vpack.c.b16 %v308, %v305
    %v348 = vpack.c.b16 %v312, %v309
    %v349 = vpack.c.b16 %v313, %v310
    %v350 = vpack.c.b16 %v314, %v311
    %v351 = vpack.c.b16 %v318, %v315
    %v352 = vpack.c.b16 %v319, %v316
    %v353 = vpack.c.b16 %v320, %v317
    %v354 = vpack.c.b16 %v324, %v321
    %v355 = vpack.c.b16 %v325, %v322
    %v356 = vpack.c.b16 %v326, %v323
    %v357 = vpack.c.b16 %v330, %v327
    %v358 = vpack.c.b16 %v331, %v328
    %v359 = vpack.c.b16 %v332, %v329
    %v360 = vpack.c.b16 %v336, %v333
    %v361 = vpack.c.b16 %v337, %v334
    %v362 = vpack.c.b16 %v338, %v335
    %v363 = vpack.c.b16 %v339, %v339
    %v364 = vpack.c.b16 %v340, %v340
    %v365 = vpack.c.b16 %v341, %v341
    %vm387 = vcmask 982016
    %v389 = vsel %vm387, %v233, 0
    %v392 = vsel %vm387, %v234, 0
    %v395 = vsel %vm387, %v235, 0
    %vm397 = vcmask 1043456
    %v399 = vsel %vm397, %v363, 0
    %v402 = vsel %vm397, %v364, 0
    %v405 = vsel %vm397, %v365, 0
    %407 = vmatpush.bf16.msra.mxu0 %v399
    %408 = vmatpush.bf16.msra.mxu0 %v360
    %409 = vmatpush.bf16.msra.mxu0 %v357
    %410 = vmatpush.bf16.msra.mxu0 %v354
    %411 = vmatpush.bf16.msra.mxu0 %v351
    %412 = vmatpush.bf16.msra.mxu0 %v348
    %413 = vmatpush.bf16.msra.mxu0 %v345
    %414 = vmatpush.bf16.msra.mxu0 %v342
    %415 = vmatmul.bf16.gmra.mxu0 %v389
    %v416 = vpop.f32.mrf.mxu0
    %v417 = vadd.f32 0.0, %v416
    %v418 = vpop.f32.mrf.mxu0
    %v419 = vadd.f32 0.0, %v418
    %420 = vmatmul.bf16.gmra.mxu0 %v392
    %v421 = vpop.f32.mrf.mxu0
    %v422 = vadd.f32 0.0, %v421
    %v423 = vpop.f32.mrf.mxu0
    %v424 = vadd.f32 0.0, %v423
    %425 = vmatmul.bf16.gmra.mxu0 %v395
    %v426 = vpop.f32.mrf.mxu0
    %v427 = vadd.f32 0.0, %v426
    %v428 = vpop.f32.mrf.mxu0
    %429 = vdwg.mxu0
    %430 = vmatpush.bf16.msra.mxu0 %v402
    %431 = vmatpush.bf16.msra.mxu0 %v361
    %432 = vmatpush.bf16.msra.mxu0 %v358
    %433 = vmatpush.bf16.msra.mxu0 %v355
    %434 = vmatpush.bf16.msra.mxu0 %v352
    %435 = vmatpush.bf16.msra.mxu0 %v349
    %436 = vmatpush.bf16.msra.mxu0 %v346
    %437 = vmatpush.bf16.msra.mxu0 %v343
    %438 = vmatmul.bf16.gmra.mxu0 %v389
    %v439 = vpop.f32.mrf.mxu0
    %v440 = vadd.f32 0.0, %v439
    %v441 = vpop.f32.mrf.mxu0
    %v442 = vadd.f32 0.0, %v441
    %443 = vmatmul.bf16.gmra.mxu0 %v392
    %v444 = vpop.f32.mrf.mxu0
    %v445 = vadd.f32 0.0, %v444
    %v446 = vpop.f32.mrf.mxu0
    %v447 = vadd.f32 0.0, %v446
    %448 = vmatmul.bf16.gmra.mxu0 %v395
    %v449 = vpop.f32.mrf.mxu0
    %v450 = vadd.f32 0.0, %v449
    %v451 = vpop.f32.mrf.mxu0
    %452 = vdwg.mxu0
    %453 = vmatpush.bf16.msra.mxu0 %v405
    %454 = vmatpush.bf16.msra.mxu0 %v362
    %455 = vmatpush.bf16.msra.mxu0 %v359
    %456 = vmatpush.bf16.msra.mxu0 %v356
    %457 = vmatpush.bf16.msra.mxu0 %v353
    %458 = vmatpush.bf16.msra.mxu0 %v350
    %459 = vmatpush.bf16.msra.mxu0 %v347
    %460 = vmatpush.bf16.msra.mxu0 %v344
    %461 = vmatmul.bf16.gmra.mxu0 %v389
    %v462 = vpop.f32.mrf.mxu0
    %v463 = vadd.f32 0.0, %v462
    %v464 = vpop.f32.mrf.mxu0
    %v465 = vadd.f32 0.0, %v464
    %466 = vmatmul.bf16.gmra.mxu0 %v392
    %v467 = vpop.f32.mrf.mxu0
    %v468 = vadd.f32 0.0, %v467
    %v469 = vpop.f32.mrf.mxu0
    %v470 = vadd.f32 0.0, %v469
    %471 = vmatmul.bf16.gmra.mxu0 %v395
    %v472 = vpop.f32.mrf.mxu0
    %v473 = vadd.f32 0.0, %v472
    %v474 = vpop.f32.mrf.mxu0
    %475 = vdwg.mxu0
    %v506 = vunpack.c.l.b16 %v152
    %v507 = vunpack.c.h.b16 %v152
    %v508 = vunpack.c.l.b16 %v153
    %v509 = vunpack.c.l.b16 %v154
    %v510 = vunpack.c.h.b16 %v154
    %v511 = vunpack.c.l.b16 %v155
    %v512 = vunpack.c.l.b16 %v156
    %v513 = vunpack.c.h.b16 %v156
    %v514 = vunpack.c.l.b16 %v157
    %v515 = vunpack.c.l.b16 %v158
    %v516 = vunpack.c.h.b16 %v158
    %v517 = vunpack.c.l.b16 %v159
    %v518 = vunpack.c.l.b16 %v160
    %v519 = vunpack.c.h.b16 %v160
    %v520 = vunpack.c.l.b16 %v161
    %v521 = vunpack.c.l.b16 %v162
    %v522 = vunpack.c.h.b16 %v162
    %v523 = vunpack.c.l.b16 %v163
    %v524 = vunpack.c.l.b16 %v164
    %v525 = vunpack.c.h.b16 %v164
    %v526 = vunpack.c.l.b16 %v165
    %v527 = vunpack.c.l.b16 %v166
    %v528 = vunpack.c.h.b16 %v166
    %v529 = vunpack.c.l.b16 %v167
    %v530 = vunpack.c.l.b16 %v168
    %v531 = vunpack.c.h.b16 %v168
    %v532 = vunpack.c.l.b16 %v169
    %v533 = vunpack.c.l.b16 %v170
    %v534 = vunpack.c.h.b16 %v170
    %v535 = vunpack.c.l.b16 %v171
    %v536 = vunpack.c.l.b16 %v172
    %v537 = vunpack.c.h.b16 %v172
    %v538 = vunpack.c.l.b16 %v173
    %v539 = vunpack.c.l.b16 %v174
    %v540 = vunpack.c.h.b16 %v174
    %v541 = vunpack.c.l.b16 %v175
    %v542 = vunpack.c.l.b16 %v176
    %v543 = vunpack.c.h.b16 %v176
    %v544 = vunpack.c.l.b16 %v177
    %v545 = vunpack.c.l.b16 %v178
    %v546 = vunpack.c.h.b16 %v178
    %v547 = vunpack.c.l.b16 %v179
    %v548 = vunpack.c.l.b16 %v180
    %v549 = vunpack.c.h.b16 %v180
    %v550 = vunpack.c.l.b16 %v181
    %v551 = vpack.c.b16 %v509, %v506
    %v552 = vpack.c.b16 %v510, %v507
    %v553 = vpack.c.b16 %v511, %v508
    %v554 = vpack.c.b16 %v515, %v512
    %v555 = vpack.c.b16 %v516, %v513
    %v556 = vpack.c.b16 %v517, %v514
    %v557 = vpack.c.b16 %v521, %v518
    %v558 = vpack.c.b16 %v522, %v519
    %v559 = vpack.c.b16 %v523, %v520
    %v560 = vpack.c.b16 %v527, %v524
    %v561 = vpack.c.b16 %v528, %v525
    %v562 = vpack.c.b16 %v529, %v526
    %v563 = vpack.c.b16 %v533, %v530
    %v564 = vpack.c.b16 %v534, %v531
    %v565 = vpack.c.b16 %v535, %v532
    %v566 = vpack.c.b16 %v539, %v536
    %v567 = vpack.c.b16 %v540, %v537
    %v568 = vpack.c.b16 %v541, %v538
    %v569 = vpack.c.b16 %v545, %v542
    %v570 = vpack.c.b16 %v546, %v543
    %v571 = vpack.c.b16 %v547, %v544
    %v572 = vpack.c.b16 %v548, %v548
    %v573 = vpack.c.b16 %v549, %v549
    %v574 = vpack.c.b16 %v550, %v550
    %v597 = vsel %vm387, %v149, 0
    %v600 = vsel %vm387, %v150, 0
    %v603 = vsel %vm387, %v151, 0
    %v606 = vsel %vm397, %v572, 0
    %v609 = vsel %vm397, %v573, 0
    %v612 = vsel %vm397, %v574, 0
    %614 = vmatpush.bf16.msra.mxu0 %v606
    %615 = vmatpush.bf16.msra.mxu0 %v569
    %616 = vmatpush.bf16.msra.mxu0 %v566
    %617 = vmatpush.bf16.msra.mxu0 %v563
    %618 = vmatpush.bf16.msra.mxu0 %v560
    %619 = vmatpush.bf16.msra.mxu0 %v557
    %620 = vmatpush.bf16.msra.mxu0 %v554
    %621 = vmatpush.bf16.msra.mxu0 %v551
    %622 = vmatmul.bf16.gmra.mxu0 %v597
    %v623 = vpop.f32.mrf.mxu0
    %v624 = vadd.f32 %v417, %v623
    %v625 = vpop.f32.mrf.mxu0
    %v626 = vadd.f32 %v419, %v625
    %627 = vmatmul.bf16.gmra.mxu0 %v600
    %v628 = vpop.f32.mrf.mxu0
    %v629 = vadd.f32 %v422, %v628
    %v630 = vpop.f32.mrf.mxu0
    %v631 = vadd.f32 %v424, %v630
    %632 = vmatmul.bf16.gmra.mxu0 %v603
    %v633 = vpop.f32.mrf.mxu0
    %v634 = vadd.f32 %v427, %v633
    %v635 = vpop.f32.mrf.mxu0
    %636 = vdwg.mxu0
    %637 = vmatpush.bf16.msra.mxu0 %v609
    %638 = vmatpush.bf16.msra.mxu0 %v570
    %639 = vmatpush.bf16.msra.mxu0 %v567
    %640 = vmatpush.bf16.msra.mxu0 %v564
    %641 = vmatpush.bf16.msra.mxu0 %v561
    %642 = vmatpush.bf16.msra.mxu0 %v558
    %643 = vmatpush.bf16.msra.mxu0 %v555
    %644 = vmatpush.bf16.msra.mxu0 %v552
    %645 = vmatmul.bf16.gmra.mxu0 %v597
    %v646 = vpop.f32.mrf.mxu0
    %v647 = vadd.f32 %v440, %v646
    %v648 = vpop.f32.mrf.mxu0
    %v649 = vadd.f32 %v442, %v648
    %650 = vmatmul.bf16.gmra.mxu0 %v600
    %v651 = vpop.f32.mrf.mxu0
    %v652 = vadd.f32 %v445, %v651
    %v653 = vpop.f32.mrf.mxu0
    %v654 = vadd.f32 %v447, %v653
    %655 = vmatmul.bf16.gmra.mxu0 %v603
    %v656 = vpop.f32.mrf.mxu0
    %v657 = vadd.f32 %v450, %v656
    %v658 = vpop.f32.mrf.mxu0
    %659 = vdwg.mxu0
    %660 = vmatpush.bf16.msra.mxu0 %v612
    %661 = vmatpush.bf16.msra.mxu0 %v571
    %662 = vmatpush.bf16.msra.mxu0 %v568
    %663 = vmatpush.bf16.msra.mxu0 %v565
    %664 = vmatpush.bf16.msra.mxu0 %v562
    %665 = vmatpush.bf16.msra.mxu0 %v559
    %666 = vmatpush.bf16.msra.mxu0 %v556
    %667 = vmatpush.bf16.msra.mxu0 %v553
    %668 = vmatmul.bf16.gmra.mxu0 %v597
    %v669 = vpop.f32.mrf.mxu0
    %v670 = vadd.f32 %v463, %v669
    %v671 = vpop.f32.mrf.mxu0
    %v672 = vadd.f32 %v465, %v671
    %673 = vmatmul.bf16.gmra.mxu0 %v600
    %v674 = vpop.f32.mrf.mxu0
    %v675 = vadd.f32 %v468, %v674
    %v676 = vpop.f32.mrf.mxu0
    %v677 = vadd.f32 %v470, %v676
    %678 = vmatmul.bf16.gmra.mxu0 %v603
    %v679 = vpop.f32.mrf.mxu0
    %v680 = vadd.f32 %v473, %v679
    %v681 = vpop.f32.mrf.mxu0
    %682 = vdwg.mxu0
    %s683 = scalar_lea.vmem %s1, 40
    %v684 = vld [vmem:[%s683] sm:$0xf]
    %v685 = vld [vmem:[%s683 + $0x4] sm:$0xf]
    %v686 = vld [vmem:[%s683 + $0x8] sm:$0xf]
    %v687 = vld [vmem:[%s683 + $0xc] sm:$0xf]
    %v688 = vld [vmem:[%s683 + $0x10] sm:$0x3]
    %v694 = vunpack.c.l.b16 %v684
    %v695 = vunpack.c.l.b16 %v685
    %v696 = vunpack.c.l.b16 %v686
    %v697 = vunpack.c.l.b16 %v687
    %v698 = vunpack.c.l.b16 %v688
    %v699 = vpack.c.b16 %v695, %v694
    %v700 = vpack.c.b16 %v697, %v696
    %v701 = vpack.c.b16 %v698, %v698
    %v703 = vsel %vm116, %v699, 0
    %v706 = vsel %vm116, %v700, 0
    %v709 = vsel %vm116, %v701, 0
    %711 = vmatpush.bf16.msra.mxu0 0
    %712 = vmatpush.bf16.msra.mxu0 0
    %713 = vmatpush.bf16.msra.mxu0 0
    %714 = vmatpush.bf16.msra.mxu0 %v110
    %715 = vmatpush.bf16.msra.mxu0 %v109
    %716 = vmatpush.bf16.msra.mxu0 %v108
    %717 = vmatpush.bf16.msra.mxu0 %v107
    %718 = vmatpush.bf16.msra.mxu0 %v106
    %719 = vmatmul.bf16.gmra.mxu0 %v703
    %v720 = vpop.f32.mrf.mxu0
    %v721 = vadd.f32 0.0, %v720
    %v722 = vpop.f32.mrf.mxu0
    %v723 = vadd.f32 0.0, %v722
    %724 = vmatmul.bf16.gmra.mxu0 %v706
    %v725 = vpop.f32.mrf.mxu0
    %v726 = vadd.f32 0.0, %v725
    %v727 = vpop.f32.mrf.mxu0
    %v728 = vadd.f32 0.0, %v727
    %729 = vmatmul.bf16.gmra.mxu0 %v709
    %v730 = vpop.f32.mrf.mxu0
    %v731 = vadd.f32 0.0, %v730
    %v732 = vpop.f32.mrf.mxu0
    %733 = vdwg.mxu0
    %v734 = vpack.c.bf16 %v723, %v721
    %v735 = vpack.c.bf16 %v728, %v726
    %v736 = vpack.c.bf16 %v731, %v731
    %s737 = scalar_lea.vmem %s2, 360
    %v738 = vld [vmem:[%s737] sm:$0xff]
    %v739 = vld [vmem:[%s737 + $0x8] sm:$0xf]
    %v740 = vld [vmem:[%s737 + $0xc] sm:$0xff]
    %v741 = vld [vmem:[%s737 + $0x14] sm:$0xf]
    %v742 = vld [vmem:[%s737 + $0x18] sm:$0xff]
    %v743 = vld [vmem:[%s737 + $0x20] sm:$0xf]
    %v744 = vld [vmem:[%s737 + $0x24] sm:$0xff]
    %v745 = vld [vmem:[%s737 + $0x2c] sm:$0xf]
    %v746 = vld [vmem:[%s737 + $0x30] sm:$0xff]
    %v747 = vld [vmem:[%s737 + $0x38] sm:$0xf]
    %v748 = vld [vmem:[%s737 + $0x3c] sm:$0xff]
    %v749 = vld [vmem:[%s737 + $0x44] sm:$0xf]
    %v750 = vld [vmem:[%s737 + $0x48] sm:$0xff]
    %v751 = vld [vmem:[%s737 + $0x50] sm:$0xf]
    %v752 = vld [vmem:[%s737 + $0x54] sm:$0xff]
    %v753 = vld [vmem:[%s737 + $0x5c] sm:$0xf]
    %v754 = vld [vmem:[%s737 + $0x60] sm:$0xff]
    %v755 = vld [vmem:[%s737 + $0x68] sm:$0xf]
    %v756 = vld [vmem:[%s737 + $0x6c] sm:$0xff]
    %v757 = vld [vmem:[%s737 + $0x74] sm:$0xf]
    %v758 = vld [vmem:[%s737 + $0x78] sm:$0xff]
    %v759 = vld [vmem:[%s737 + $0x80] sm:$0xf]
    %v760 = vld [vmem:[%s737 + $0x84] sm:$0xff]
    %v761 = vld [vmem:[%s737 + $0x8c] sm:$0xf]
    %v762 = vld [vmem:[%s737 + $0x90] sm:$0xff]
    %v763 = vld [vmem:[%s737 + $0x98] sm:$0xf]
    %v764 = vld [vmem:[%s737 + $0x9c] sm:$0xff]
    %v765 = vld [vmem:[%s737 + $0xa4] sm:$0xf]
    %v766 = vld [vmem:[%s737 + $0xa8] sm:$0xff]
    %v767 = vld [vmem:[%s737 + $0xb0] sm:$0xf]
    %v798 = vunpack.c.l.b16 %v738
    %v799 = vunpack.c.h.b16 %v738
    %v800 = vunpack.c.l.b16 %v739
    %v801 = vunpack.c.l.b16 %v740
    %v802 = vunpack.c.h.b16 %v740
    %v803 = vunpack.c.l.b16 %v741
    %v804 = vunpack.c.l.b16 %v742
    %v805 = vunpack.c.h.b16 %v742
    %v806 = vunpack.c.l.b16 %v743
    %v807 = vunpack.c.l.b16 %v744
    %v808 = vunpack.c.h.b16 %v744
    %v809 = vunpack.c.l.b16 %v745
    %v810 = vunpack.c.l.b16 %v746
    %v811 = vunpack.c.h.b16 %v746
    %v812 = vunpack.c.l.b16 %v747
    %v813 = vunpack.c.l.b16 %v748
    %v814 = vunpack.c.h.b16 %v748
    %v815 = vunpack.c.l.b16 %v749
    %v816 = vunpack.c.l.b16 %v750
    %v817 = vunpack.c.h.b16 %v750
    %v818 = vunpack.c.l.b16 %v751
    %v819 = vunpack.c.l.b16 %v752
    %v820 = vunpack.c.h.b16 %v752
    %v821 = vunpack.c.l.b16 %v753
    %v822 = vunpack.c.l.b16 %v754
    %v823 = vunpack.c.h.b16 %v754
    %v824 = vunpack.c.l.b16 %v755
    %v825 = vunpack.c.l.b16 %v756
    %v826 = vunpack.c.h.b16 %v756
    %v827 = vunpack.c.l.b16 %v757
    %v828 = vunpack.c.l.b16 %v758
    %v829 = vunpack.c.h.b16 %v758
    %v830 = vunpack.c.l.b16 %v759
    %v831 = vunpack.c.l.b16 %v760
    %v832 = vunpack.c.h.b16 %v760
    %v833 = vunpack.c.l.b16 %v761
    %v834 = vunpack.c.l.b16 %v762
    %v835 = vunpack.c.h.b16 %v762
    %v836 = vunpack.c.l.b16 %v763
    %v837 = vunpack.c.l.b16 %v764
    %v838 = vunpack.c.h.b16 %v764
    %v839 = vunpack.c.l.b16 %v765
    %v840 = vunpack.c.l.b16 %v766
    %v841 = vunpack.c.h.b16 %v766
    %v842 = vunpack.c.l.b16 %v767
    %v843 = vpack.c.b16 %v801, %v798
    %v844 = vpack.c.b16 %v802, %v799
    %v845 = vpack.c.b16 %v803, %v800
    %v846 = vpack.c.b16 %v807, %v804
    %v847 = vpack.c.b16 %v808, %v805
    %v848 = vpack.c.b16 %v809, %v806
    %v849 = vpack.c.b16 %v813, %v810
    %v850 = vpack.c.b16 %v814, %v811
    %v851 = vpack.c.b16 %v815, %v812
    %v852 = vpack.c.b16 %v819, %v816
    %v853 = vpack.c.b16 %v820, %v817
    %v854 = vpack.c.b16 %v821, %v818
    %v855 = vpack.c.b16 %v825, %v822
    %v856 = vpack.c.b16 %v826, %v823
    %v857 = vpack.c.b16 %v827, %v824
    %v858 = vpack.c.b16 %v831, %v828
    %v859 = vpack.c.b16 %v832, %v829
    %v860 = vpack.c.b16 %v833, %v830
    %v861 = vpack.c.b16 %v837, %v834
    %v862 = vpack.c.b16 %v838, %v835
    %v863 = vpack.c.b16 %v839, %v836
    %v864 = vpack.c.b16 %v840, %v840
    %v865 = vpack.c.b16 %v841, %v841
    %v866 = vpack.c.b16 %v842, %v842
    %v889 = vsel %vm387, %v734, 0
    %v892 = vsel %vm387, %v735, 0
    %v895 = vsel %vm387, %v736, 0
    %v898 = vsel %vm397, %v864, 0
    %v901 = vsel %vm397, %v865, 0
    %v904 = vsel %vm397, %v866, 0
    %906 = vmatpush.bf16.msra.mxu0 %v898
    %907 = vmatpush.bf16.msra.mxu0 %v861
    %908 = vmatpush.bf16.msra.mxu0 %v858
    %909 = vmatpush.bf16.msra.mxu0 %v855
    %910 = vmatpush.bf16.msra.mxu0 %v852
    %911 = vmatpush.bf16.msra.mxu0 %v849
    %912 = vmatpush.bf16.msra.mxu0 %v846
    %913 = vmatpush.bf16.msra.mxu0 %v843
    %914 = vmatmul.bf16.gmra.mxu0 %v889
    %v915 = vpop.f32.mrf.mxu0
    %v916 = vadd.f32 0.0, %v915
    %v917 = vpop.f32.mrf.mxu0
    %v918 = vadd.f32 0.0, %v917
    %919 = vmatmul.bf16.gmra.mxu0 %v892
    %v920 = vpop.f32.mrf.mxu0
    %v921 = vadd.f32 0.0, %v920
    %v922 = vpop.f32.mrf.mxu0
    %v923 = vadd.f32 0.0, %v922
    %924 = vmatmul.bf16.gmra.mxu0 %v895
    %v925 = vpop.f32.mrf.mxu0
    %v926 = vadd.f32 0.0, %v925
    %v927 = vpop.f32.mrf.mxu0
    %928 = vdwg.mxu0
    %929 = vmatpush.bf16.msra.mxu0 %v901
    %930 = vmatpush.bf16.msra.mxu0 %v862
    %931 = vmatpush.bf16.msra.mxu0 %v859
    %932 = vmatpush.bf16.msra.mxu0 %v856
    %933 = vmatpush.bf16.msra.mxu0 %v853
    %934 = vmatpush.bf16.msra.mxu0 %v850
    %935 = vmatpush.bf16.msra.mxu0 %v847
    %936 = vmatpush.bf16.msra.mxu0 %v844
    %937 = vmatmul.bf16.gmra.mxu0 %v889
    %v938 = vpop.f32.mrf.mxu0
    %v939 = vadd.f32 0.0, %v938
    %v940 = vpop.f32.mrf.mxu0
    %v941 = vadd.f32 0.0, %v940
    %942 = vmatmul.bf16.gmra.mxu0 %v892
    %v943 = vpop.f32.mrf.mxu0
    %v944 = vadd.f32 0.0, %v943
    %v945 = vpop.f32.mrf.mxu0
    %v946 = vadd.f32 0.0, %v945
    %947 = vmatmul.bf16.gmra.mxu0 %v895
    %v948 = vpop.f32.mrf.mxu0
    %v949 = vadd.f32 0.0, %v948
    %v950 = vpop.f32.mrf.mxu0
    %951 = vdwg.mxu0
    %952 = vmatpush.bf16.msra.mxu0 %v904
    %953 = vmatpush.bf16.msra.mxu0 %v863
    %954 = vmatpush.bf16.msra.mxu0 %v860
    %955 = vmatpush.bf16.msra.mxu0 %v857
    %956 = vmatpush.bf16.msra.mxu0 %v854
    %957 = vmatpush.bf16.msra.mxu0 %v851
    %958 = vmatpush.bf16.msra.mxu0 %v848
    %959 = vmatpush.bf16.msra.mxu0 %v845
    %960 = vmatmul.bf16.gmra.mxu0 %v889
    %v961 = vpop.f32.mrf.mxu0
    %v962 = vadd.f32 0.0, %v961
    %v963 = vpop.f32.mrf.mxu0
    %v964 = vadd.f32 0.0, %v963
    %965 = vmatmul.bf16.gmra.mxu0 %v892
    %v966 = vpop.f32.mrf.mxu0
    %v967 = vadd.f32 0.0, %v966
    %v968 = vpop.f32.mrf.mxu0
    %v969 = vadd.f32 0.0, %v968
    %970 = vmatmul.bf16.gmra.mxu0 %v895
    %v971 = vpop.f32.mrf.mxu0
    %v972 = vadd.f32 0.0, %v971
    %v973 = vpop.f32.mrf.mxu0
    %974 = vdwg.mxu0
    %v975 = vadd.f32 %v624, %v916
    %v976 = vadd.f32 %v647, %v939
    %v977 = vadd.f32 %v670, %v962
    %v978 = vadd.f32 %v626, %v918
    %v979 = vadd.f32 %v649, %v941
    %v980 = vadd.f32 %v672, %v964
    %v981 = vadd.f32 %v629, %v921
    %v982 = vadd.f32 %v652, %v944
    %v983 = vadd.f32 %v675, %v967
    %v984 = vadd.f32 %v631, %v923
    %v985 = vadd.f32 %v654, %v946
    %v986 = vadd.f32 %v677, %v969
    %v987 = vadd.f32 %v634, %v926
    %v988 = vadd.f32 %v657, %v949
    %v989 = vadd.f32 %v680, %v972
    %s990 = scalar_lea.vmem %s1, 60
    %v991 = vld [vmem:[%s990] sm:$0xf]
    %v992 = vld [vmem:[%s990 + $0x4] sm:$0xf]
    %v993 = vld [vmem:[%s990 + $0x8] sm:$0xf]
    %v994 = vld [vmem:[%s990 + $0xc] sm:$0xf]
    %v995 = vld [vmem:[%s990 + $0x10] sm:$0x3]
    %v1001 = vunpack.c.l.b16 %v991
    %v1002 = vunpack.c.l.b16 %v992
    %v1003 = vunpack.c.l.b16 %v993
    %v1004 = vunpack.c.l.b16 %v994
    %v1005 = vunpack.c.l.b16 %v995
    %v1006 = vpack.c.b16 %v1002, %v1001
    %v1007 = vpack.c.b16 %v1004, %v1003
    %v1008 = vpack.c.b16 %v1005, %v1005
    %v1010 = vsel %vm116, %v1006, 0
    %v1013 = vsel %vm116, %v1007, 0
    %v1016 = vsel %vm116, %v1008, 0
    %1018 = vmatpush.bf16.msra.mxu0 0
    %1019 = vmatpush.bf16.msra.mxu0 0
    %1020 = vmatpush.bf16.msra.mxu0 0
    %1021 = vmatpush.bf16.msra.mxu0 %v110
    %1022 = vmatpush.bf16.msra.mxu0 %v109
    %1023 = vmatpush.bf16.msra.mxu0 %v108
    %1024 = vmatpush.bf16.msra.mxu0 %v107
    %1025 = vmatpush.bf16.msra.mxu0 %v106
    %1026 = vmatmul.bf16.gmra.mxu0 %v1010
    %v1027 = vpop.f32.mrf.mxu0
    %v1028 = vadd.f32 0.0, %v1027
    %v1029 = vpop.f32.mrf.mxu0
    %v1030 = vadd.f32 0.0, %v1029
    %1031 = vmatmul.bf16.gmra.mxu0 %v1013
    %v1032 = vpop.f32.mrf.mxu0
    %v1033 = vadd.f32 0.0, %v1032
    %v1034 = vpop.f32.mrf.mxu0
    %v1035 = vadd.f32 0.0, %v1034
    %1036 = vmatmul.bf16.gmra.mxu0 %v1016
    %v1037 = vpop.f32.mrf.mxu0
    %v1038 = vadd.f32 0.0, %v1037
    %v1039 = vpop.f32.mrf.mxu0
    %1040 = vdwg.mxu0
    %v1041 = vpack.c.bf16 %v1030, %v1028
    %v1042 = vpack.c.bf16 %v1035, %v1033
    %v1043 = vpack.c.bf16 %v1038, %v1038
    %s1044 = scalar_lea.vmem %s2, 540
    %v1045 = vld [vmem:[%s1044] sm:$0xff]
    %v1046 = vld [vmem:[%s1044 + $0x8] sm:$0xf]
    %v1047 = vld [vmem:[%s1044 + $0xc] sm:$0xff]
    %v1048 = vld [vmem:[%s1044 + $0x14] sm:$0xf]
    %v1049 = vld [vmem:[%s1044 + $0x18] sm:$0xff]
    %v1050 = vld [vmem:[%s1044 + $0x20] sm:$0xf]
    %v1051 = vld [vmem:[%s1044 + $0x24] sm:$0xff]
    %v1052 = vld [vmem:[%s1044 + $0x2c] sm:$0xf]
    %v1053 = vld [vmem:[%s1044 + $0x30] sm:$0xff]
    %v1054 = vld [vmem:[%s1044 + $0x38] sm:$0xf]
    %v1055 = vld [vmem:[%s1044 + $0x3c] sm:$0xff]
    %v1056 = vld [vmem:[%s1044 + $0x44] sm:$0xf]
    %v1057 = vld [vmem:[%s1044 + $0x48] sm:$0xff]
    %v1058 = vld [vmem:[%s1044 + $0x50] sm:$0xf]
    %v1059 = vld [vmem:[%s1044 + $0x54] sm:$0xff]
    %v1060 = vld [vmem:[%s1044 + $0x5c] sm:$0xf]
    %v1061 = vld [vmem:[%s1044 + $0x60] sm:$0xff]
    %v1062 = vld [vmem:[%s1044 + $0x68] sm:$0xf]
    %v1063 = vld [vmem:[%s1044 + $0x6c] sm:$0xff]
    %v1064 = vld [vmem:[%s1044 + $0x74] sm:$0xf]
    %v1065 = vld [vmem:[%s1044 + $0x78] sm:$0xff]
    %v1066 = vld [vmem:[%s1044 + $0x80] sm:$0xf]
    %v1067 = vld [vmem:[%s1044 + $0x84] sm:$0xff]
    %v1068 = vld [vmem:[%s1044 + $0x8c] sm:$0xf]
    %v1069 = vld [vmem:[%s1044 + $0x90] sm:$0xff]
    %v1070 = vld [vmem:[%s1044 + $0x98] sm:$0xf]
    %v1071 = vld [vmem:[%s1044 + $0x9c] sm:$0xff]
    %v1072 = vld [vmem:[%s1044 + $0xa4] sm:$0xf]
    %v1073 = vld [vmem:[%s1044 + $0xa8] sm:$0xff]
    %v1074 = vld [vmem:[%s1044 + $0xb0] sm:$0xf]
    %v1105 = vunpack.c.l.b16 %v1045
    %v1106 = vunpack.c.h.b16 %v1045
    %v1107 = vunpack.c.l.b16 %v1046
    %v1108 = vunpack.c.l.b16 %v1047
    %v1109 = vunpack.c.h.b16 %v1047
    %v1110 = vunpack.c.l.b16 %v1048
    %v1111 = vunpack.c.l.b16 %v1049
    %v1112 = vunpack.c.h.b16 %v1049
    %v1113 = vunpack.c.l.b16 %v1050
    %v1114 = vunpack.c.l.b16 %v1051
    %v1115 = vunpack.c.h.b16 %v1051
    %v1116 = vunpack.c.l.b16 %v1052
    %v1117 = vunpack.c.l.b16 %v1053
    %v1118 = vunpack.c.h.b16 %v1053
    %v1119 = vunpack.c.l.b16 %v1054
    %v1120 = vunpack.c.l.b16 %v1055
    %v1121 = vunpack.c.h.b16 %v1055
    %v1122 = vunpack.c.l.b16 %v1056
    %v1123 = vunpack.c.l.b16 %v1057
    %v1124 = vunpack.c.h.b16 %v1057
    %v1125 = vunpack.c.l.b16 %v1058
    %v1126 = vunpack.c.l.b16 %v1059
    %v1127 = vunpack.c.h.b16 %v1059
    %v1128 = vunpack.c.l.b16 %v1060
    %v1129 = vunpack.c.l.b16 %v1061
    %v1130 = vunpack.c.h.b16 %v1061
    %v1131 = vunpack.c.l.b16 %v1062
    %v1132 = vunpack.c.l.b16 %v1063
    %v1133 = vunpack.c.h.b16 %v1063
    %v1134 = vunpack.c.l.b16 %v1064
    %v1135 = vunpack.c.l.b16 %v1065
    %v1136 = vunpack.c.h.b16 %v1065
    %v1137 = vunpack.c.l.b16 %v1066
    %v1138 = vunpack.c.l.b16 %v1067
    %v1139 = vunpack.c.h.b16 %v1067
    %v1140 = vunpack.c.l.b16 %v1068
    %v1141 = vunpack.c.l.b16 %v1069
    %v1142 = vunpack.c.h.b16 %v1069
    %v1143 = vunpack.c.l.b16 %v1070
    %v1144 = vunpack.c.l.b16 %v1071
    %v1145 = vunpack.c.h.b16 %v1071
    %v1146 = vunpack.c.l.b16 %v1072
    %v1147 = vunpack.c.l.b16 %v1073
    %v1148 = vunpack.c.h.b16 %v1073
    %v1149 = vunpack.c.l.b16 %v1074
    %v1150 = vpack.c.b16 %v1108, %v1105
    %v1151 = vpack.c.b16 %v1109, %v1106
    %v1152 = vpack.c.b16 %v1110, %v1107
    %v1153 = vpack.c.b16 %v1114, %v1111
    %v1154 = vpack.c.b16 %v1115, %v1112
    %v1155 = vpack.c.b16 %v1116, %v1113
    %v1156 = vpack.c.b16 %v1120, %v1117
    %v1157 = vpack.c.b16 %v1121, %v1118
    %v1158 = vpack.c.b16 %v1122, %v1119
    %v1159 = vpack.c.b16 %v1126, %v1123
    %v1160 = vpack.c.b16 %v1127, %v1124
    %v1161 = vpack.c.b16 %v1128, %v1125
    %v1162 = vpack.c.b16 %v1132, %v1129
    %v1163 = vpack.c.b16 %v1133, %v1130
    %v1164 = vpack.c.b16 %v1134, %v1131
    %v1165 = vpack.c.b16 %v1138, %v1135
    %v1166 = vpack.c.b16 %v1139, %v1136
    %v1167 = vpack.c.b16 %v1140, %v1137
    %v1168 = vpack.c.b16 %v1144, %v1141
    %v1169 = vpack.c.b16 %v1145, %v1142
    %v1170 = vpack.c.b16 %v1146, %v1143
    %v1171 = vpack.c.b16 %v1147, %v1147
    %v1172 = vpack.c.b16 %v1148, %v1148
    %v1173 = vpack.c.b16 %v1149, %v1149
    %v1196 = vsel %vm387, %v1041, 0
    %v1199 = vsel %vm387, %v1042, 0
    %v1202 = vsel %vm387, %v1043, 0
    %v1205 = vsel %vm397, %v1171, 0
    %v1208 = vsel %vm397, %v1172, 0
    %v1211 = vsel %vm397, %v1173, 0
    %1213 = vmatpush.bf16.msra.mxu0 %v1205
    %1214 = vmatpush.bf16.msra.mxu0 %v1168
    %1215 = vmatpush.bf16.msra.mxu0 %v1165
    %1216 = vmatpush.bf16.msra.mxu0 %v1162
    %1217 = vmatpush.bf16.msra.mxu0 %v1159
    %1218 = vmatpush.bf16.msra.mxu0 %v1156
    %1219 = vmatpush.bf16.msra.mxu0 %v1153
    %1220 = vmatpush.bf16.msra.mxu0 %v1150
    %1221 = vmatmul.bf16.gmra.mxu0 %v1196
    %v1222 = vpop.f32.mrf.mxu0
    %v1223 = vadd.f32 0.0, %v1222
    %v1224 = vpop.f32.mrf.mxu0
    %v1225 = vadd.f32 0.0, %v1224
    %1226 = vmatmul.bf16.gmra.mxu0 %v1199
    %v1227 = vpop.f32.mrf.mxu0
    %v1228 = vadd.f32 0.0, %v1227
    %v1229 = vpop.f32.mrf.mxu0
    %v1230 = vadd.f32 0.0, %v1229
    %1231 = vmatmul.bf16.gmra.mxu0 %v1202
    %v1232 = vpop.f32.mrf.mxu0
    %v1233 = vadd.f32 0.0, %v1232
    %v1234 = vpop.f32.mrf.mxu0
    %1235 = vdwg.mxu0
    %1236 = vmatpush.bf16.msra.mxu0 %v1208
    %1237 = vmatpush.bf16.msra.mxu0 %v1169
    %1238 = vmatpush.bf16.msra.mxu0 %v1166
    %1239 = vmatpush.bf16.msra.mxu0 %v1163
    %1240 = vmatpush.bf16.msra.mxu0 %v1160
    %1241 = vmatpush.bf16.msra.mxu0 %v1157
    %1242 = vmatpush.bf16.msra.mxu0 %v1154
    %1243 = vmatpush.bf16.msra.mxu0 %v1151
    %1244 = vmatmul.bf16.gmra.mxu0 %v1196
    %v1245 = vpop.f32.mrf.mxu0
    %v1246 = vadd.f32 0.0, %v1245
    %v1247 = vpop.f32.mrf.mxu0
    %v1248 = vadd.f32 0.0, %v1247
    %1249 = vmatmul.bf16.gmra.mxu0 %v1199
    %v1250 = vpop.f32.mrf.mxu0
    %v1251 = vadd.f32 0.0, %v1250
    %v1252 = vpop.f32.mrf.mxu0
    %v1253 = vadd.f32 0.0, %v1252
    %1254 = vmatmul.bf16.gmra.mxu0 %v1202
    %v1255 = vpop.f32.mrf.mxu0
    %v1256 = vadd.f32 0.0, %v1255
    %v1257 = vpop.f32.mrf.mxu0
    %1258 = vdwg.mxu0
    %1259 = vmatpush.bf16.msra.mxu0 %v1211
    %1260 = vmatpush.bf16.msra.mxu0 %v1170
    %1261 = vmatpush.bf16.msra.mxu0 %v1167
    %1262 = vmatpush.bf16.msra.mxu0 %v1164
    %1263 = vmatpush.bf16.msra.mxu0 %v1161
    %1264 = vmatpush.bf16.msra.mxu0 %v1158
    %1265 = vmatpush.bf16.msra.mxu0 %v1155
    %1266 = vmatpush.bf16.msra.mxu0 %v1152
    %1267 = vmatmul.bf16.gmra.mxu0 %v1196
    %v1268 = vpop.f32.mrf.mxu0
    %v1269 = vadd.f32 0.0, %v1268
    %v1270 = vpop.f32.mrf.mxu0
    %v1271 = vadd.f32 0.0, %v1270
    %1272 = vmatmul.bf16.gmra.mxu0 %v1199
    %v1273 = vpop.f32.mrf.mxu0
    %v1274 = vadd.f32 0.0, %v1273
    %v1275 = vpop.f32.mrf.mxu0
    %v1276 = vadd.f32 0.0, %v1275
    %1277 = vmatmul.bf16.gmra.mxu0 %v1202
    %v1278 = vpop.f32.mrf.mxu0
    %v1279 = vadd.f32 0.0, %v1278
    %v1280 = vpop.f32.mrf.mxu0
    %1281 = vdwg.mxu0
    %v1282 = vadd.f32 %v975, %v1223
    %v1283 = vadd.f32 %v976, %v1246
    %v1284 = vadd.f32 %v977, %v1269
    %v1285 = vadd.f32 %v978, %v1225
    %v1286 = vadd.f32 %v979, %v1248
    %v1287 = vadd.f32 %v980, %v1271
    %v1288 = vadd.f32 %v981, %v1228
    %v1289 = vadd.f32 %v982, %v1251
    %v1290 = vadd.f32 %v983, %v1274
    %v1291 = vadd.f32 %v984, %v1230
    %v1292 = vadd.f32 %v985, %v1253
    %v1293 = vadd.f32 %v986, %v1276
    %v1294 = vadd.f32 %v987, %v1233
    %v1295 = vadd.f32 %v988, %v1256
    %v1296 = vadd.f32 %v989, %v1279
    %s1297 = scalar_lea.vmem %s1, 80
    %v1298 = vld [vmem:[%s1297] sm:$0xf]
    %v1299 = vld [vmem:[%s1297 + $0x4] sm:$0xf]
    %v1300 = vld [vmem:[%s1297 + $0x8] sm:$0xf]
    %v1301 = vld [vmem:[%s1297 + $0xc] sm:$0xf]
    %v1302 = vld [vmem:[%s1297 + $0x10] sm:$0x3]
    %v1308 = vunpack.c.l.b16 %v1298
    %v1309 = vunpack.c.l.b16 %v1299
    %v1310 = vunpack.c.l.b16 %v1300
    %v1311 = vunpack.c.l.b16 %v1301
    %v1312 = vunpack.c.l.b16 %v1302
    %v1313 = vpack.c.b16 %v1309, %v1308
    %v1314 = vpack.c.b16 %v1311, %v1310
    %v1315 = vpack.c.b16 %v1312, %v1312
    %v1317 = vsel %vm116, %v1313, 0
    %v1320 = vsel %vm116, %v1314, 0
    %v1323 = vsel %vm116, %v1315, 0
    %1325 = vmatpush.bf16.msra.mxu0 0
    %1326 = vmatpush.bf16.msra.mxu0 0
    %1327 = vmatpush.bf16.msra.mxu0 0
    %1328 = vmatpush.bf16.msra.mxu0 %v110
    %1329 = vmatpush.bf16.msra.mxu0 %v109
    %1330 = vmatpush.bf16.msra.mxu0 %v108
    %1331 = vmatpush.bf16.msra.mxu0 %v107
    %1332 = vmatpush.bf16.msra.mxu0 %v106
    %1333 = vmatmul.bf16.gmra.mxu0 %v1317
    %v1334 = vpop.f32.mrf.mxu0
    %v1335 = vadd.f32 0.0, %v1334
    %v1336 = vpop.f32.mrf.mxu0
    %v1337 = vadd.f32 0.0, %v1336
    %1338 = vmatmul.bf16.gmra.mxu0 %v1320
    %v1339 = vpop.f32.mrf.mxu0
    %v1340 = vadd.f32 0.0, %v1339
    %v1341 = vpop.f32.mrf.mxu0
    %v1342 = vadd.f32 0.0, %v1341
    %1343 = vmatmul.bf16.gmra.mxu0 %v1323
    %v1344 = vpop.f32.mrf.mxu0
    %v1345 = vadd.f32 0.0, %v1344
    %v1346 = vpop.f32.mrf.mxu0
    %1347 = vdwg.mxu0
    %v1348 = vpack.c.bf16 %v1337, %v1335
    %v1349 = vpack.c.bf16 %v1342, %v1340
    %v1350 = vpack.c.bf16 %v1345, %v1345
    %s1351 = scalar_lea.vmem %s2, 720
    %v1352 = vld [vmem:[%s1351] sm:$0xff]
    %v1353 = vld [vmem:[%s1351 + $0x8] sm:$0xf]
    %v1354 = vld [vmem:[%s1351 + $0xc] sm:$0xff]
    %v1355 = vld [vmem:[%s1351 + $0x14] sm:$0xf]
    %v1356 = vld [vmem:[%s1351 + $0x18] sm:$0xff]
    %v1357 = vld [vmem:[%s1351 + $0x20] sm:$0xf]
    %v1358 = vld [vmem:[%s1351 + $0x24] sm:$0xff]
    %v1359 = vld [vmem:[%s1351 + $0x2c] sm:$0xf]
    %v1360 = vld [vmem:[%s1351 + $0x30] sm:$0xff]
    %v1361 = vld [vmem:[%s1351 + $0x38] sm:$0xf]
    %v1362 = vld [vmem:[%s1351 + $0x3c] sm:$0xff]
    %v1363 = vld [vmem:[%s1351 + $0x44] sm:$0xf]
    %v1364 = vld [vmem:[%s1351 + $0x48] sm:$0xff]
    %v1365 = vld [vmem:[%s1351 + $0x50] sm:$0xf]
    %v1366 = vld [vmem:[%s1351 + $0x54] sm:$0xff]
    %v1367 = vld [vmem:[%s1351 + $0x5c] sm:$0xf]
    %v1368 = vld [vmem:[%s1351 + $0x60] sm:$0xff]
    %v1369 = vld [vmem:[%s1351 + $0x68] sm:$0xf]
    %v1370 = vld [vmem:[%s1351 + $0x6c] sm:$0xff]
    %v1371 = vld [vmem:[%s1351 + $0x74] sm:$0xf]
    %v1372 = vld [vmem:[%s1351 + $0x78] sm:$0xff]
    %v1373 = vld [vmem:[%s1351 + $0x80] sm:$0xf]
    %v1374 = vld [vmem:[%s1351 + $0x84] sm:$0xff]
    %v1375 = vld [vmem:[%s1351 + $0x8c] sm:$0xf]
    %v1376 = vld [vmem:[%s1351 + $0x90] sm:$0xff]
    %v1377 = vld [vmem:[%s1351 + $0x98] sm:$0xf]
    %v1378 = vld [vmem:[%s1351 + $0x9c] sm:$0xff]
    %v1379 = vld [vmem:[%s1351 + $0xa4] sm:$0xf]
    %v1380 = vld [vmem:[%s1351 + $0xa8] sm:$0xff]
    %v1381 = vld [vmem:[%s1351 + $0xb0] sm:$0xf]
    %v1412 = vunpack.c.l.b16 %v1352
    %v1413 = vunpack.c.h.b16 %v1352
    %v1414 = vunpack.c.l.b16 %v1353
    %v1415 = vunpack.c.l.b16 %v1354
    %v1416 = vunpack.c.h.b16 %v1354
    %v1417 = vunpack.c.l.b16 %v1355
    %v1418 = vunpack.c.l.b16 %v1356
    %v1419 = vunpack.c.h.b16 %v1356
    %v1420 = vunpack.c.l.b16 %v1357
    %v1421 = vunpack.c.l.b16 %v1358
    %v1422 = vunpack.c.h.b16 %v1358
    %v1423 = vunpack.c.l.b16 %v1359
    %v1424 = vunpack.c.l.b16 %v1360
    %v1425 = vunpack.c.h.b16 %v1360
    %v1426 = vunpack.c.l.b16 %v1361
    %v1427 = vunpack.c.l.b16 %v1362
    %v1428 = vunpack.c.h.b16 %v1362
    %v1429 = vunpack.c.l.b16 %v1363
    %v1430 = vunpack.c.l.b16 %v1364
    %v1431 = vunpack.c.h.b16 %v1364
    %v1432 = vunpack.c.l.b16 %v1365
    %v1433 = vunpack.c.l.b16 %v1366
    %v1434 = vunpack.c.h.b16 %v1366
    %v1435 = vunpack.c.l.b16 %v1367
    %v1436 = vunpack.c.l.b16 %v1368
    %v1437 = vunpack.c.h.b16 %v1368
    %v1438 = vunpack.c.l.b16 %v1369
    %v1439 = vunpack.c.l.b16 %v1370
    %v1440 = vunpack.c.h.b16 %v1370
    %v1441 = vunpack.c.l.b16 %v1371
    %v1442 = vunpack.c.l.b16 %v1372
    %v1443 = vunpack.c.h.b16 %v1372
    %v1444 = vunpack.c.l.b16 %v1373
    %v1445 = vunpack.c.l.b16 %v1374
    %v1446 = vunpack.c.h.b16 %v1374
    %v1447 = vunpack.c.l.b16 %v1375
    %v1448 = vunpack.c.l.b16 %v1376
    %v1449 = vunpack.c.h.b16 %v1376
    %v1450 = vunpack.c.l.b16 %v1377
    %v1451 = vunpack.c.l.b16 %v1378
    %v1452 = vunpack.c.h.b16 %v1378
    %v1453 = vunpack.c.l.b16 %v1379
    %v1454 = vunpack.c.l.b16 %v1380
    %v1455 = vunpack.c.h.b16 %v1380
    %v1456 = vunpack.c.l.b16 %v1381
    %v1457 = vpack.c.b16 %v1415, %v1412
    %v1458 = vpack.c.b16 %v1416, %v1413
    %v1459 = vpack.c.b16 %v1417, %v1414
    %v1460 = vpack.c.b16 %v1421, %v1418
    %v1461 = vpack.c.b16 %v1422, %v1419
    %v1462 = vpack.c.b16 %v1423, %v1420
    %v1463 = vpack.c.b16 %v1427, %v1424
    %v1464 = vpack.c.b16 %v1428, %v1425
    %v1465 = vpack.c.b16 %v1429, %v1426
    %v1466 = vpack.c.b16 %v1433, %v1430
    %v1467 = vpack.c.b16 %v1434, %v1431
    %v1468 = vpack.c.b16 %v1435, %v1432
    %v1469 = vpack.c.b16 %v1439, %v1436
    %v1470 = vpack.c.b16 %v1440, %v1437
    %v1471 = vpack.c.b16 %v1441, %v1438
    %v1472 = vpack.c.b16 %v1445, %v1442
    %v1473 = vpack.c.b16 %v1446, %v1443
    %v1474 = vpack.c.b16 %v1447, %v1444
    %v1475 = vpack.c.b16 %v1451, %v1448
    %v1476 = vpack.c.b16 %v1452, %v1449
    %v1477 = vpack.c.b16 %v1453, %v1450
    %v1478 = vpack.c.b16 %v1454, %v1454
    %v1479 = vpack.c.b16 %v1455, %v1455
    %v1480 = vpack.c.b16 %v1456, %v1456
    %v1503 = vsel %vm387, %v1348, 0
    %v1506 = vsel %vm387, %v1349, 0
    %v1509 = vsel %vm387, %v1350, 0
    %v1512 = vsel %vm397, %v1478, 0
    %v1515 = vsel %vm397, %v1479, 0
    %v1518 = vsel %vm397, %v1480, 0
    %1520 = vmatpush.bf16.msra.mxu0 %v1512
    %1521 = vmatpush.bf16.msra.mxu0 %v1475
    %1522 = vmatpush.bf16.msra.mxu0 %v1472
    %1523 = vmatpush.bf16.msra.mxu0 %v1469
    %1524 = vmatpush.bf16.msra.mxu0 %v1466
    %1525 = vmatpush.bf16.msra.mxu0 %v1463
    %1526 = vmatpush.bf16.msra.mxu0 %v1460
    %1527 = vmatpush.bf16.msra.mxu0 %v1457
    %1528 = vmatmul.bf16.gmra.mxu0 %v1503
    %v1529 = vpop.f32.mrf.mxu0
    %v1530 = vadd.f32 0.0, %v1529
    %v1531 = vpop.f32.mrf.mxu0
    %v1532 = vadd.f32 0.0, %v1531
    %1533 = vmatmul.bf16.gmra.mxu0 %v1506
    %v1534 = vpop.f32.mrf.mxu0
    %v1535 = vadd.f32 0.0, %v1534
    %v1536 = vpop.f32.mrf.mxu0
    %v1537 = vadd.f32 0.0, %v1536
    %1538 = vmatmul.bf16.gmra.mxu0 %v1509
    %v1539 = vpop.f32.mrf.mxu0
    %v1540 = vadd.f32 0.0, %v1539
    %v1541 = vpop.f32.mrf.mxu0
    %1542 = vdwg.mxu0
    %1543 = vmatpush.bf16.msra.mxu0 %v1515
    %1544 = vmatpush.bf16.msra.mxu0 %v1476
    %1545 = vmatpush.bf16.msra.mxu0 %v1473
    %1546 = vmatpush.bf16.msra.mxu0 %v1470
    %1547 = vmatpush.bf16.msra.mxu0 %v1467
    %1548 = vmatpush.bf16.msra.mxu0 %v1464
    %1549 = vmatpush.bf16.msra.mxu0 %v1461
    %1550 = vmatpush.bf16.msra.mxu0 %v1458
    %1551 = vmatmul.bf16.gmra.mxu0 %v1503
    %v1552 = vpop.f32.mrf.mxu0
    %v1553 = vadd.f32 0.0, %v1552
    %v1554 = vpop.f32.mrf.mxu0
    %v1555 = vadd.f32 0.0, %v1554
    %1556 = vmatmul.bf16.gmra.mxu0 %v1506
    %v1557 = vpop.f32.mrf.mxu0
    %v1558 = vadd.f32 0.0, %v1557
    %v1559 = vpop.f32.mrf.mxu0
    %v1560 = vadd.f32 0.0, %v1559
    %1561 = vmatmul.bf16.gmra.mxu0 %v1509
    %v1562 = vpop.f32.mrf.mxu0
    %v1563 = vadd.f32 0.0, %v1562
    %v1564 = vpop.f32.mrf.mxu0
    %1565 = vdwg.mxu0
    %1566 = vmatpush.bf16.msra.mxu0 %v1518
    %1567 = vmatpush.bf16.msra.mxu0 %v1477
    %1568 = vmatpush.bf16.msra.mxu0 %v1474
    %1569 = vmatpush.bf16.msra.mxu0 %v1471
    %1570 = vmatpush.bf16.msra.mxu0 %v1468
    %1571 = vmatpush.bf16.msra.mxu0 %v1465
    %1572 = vmatpush.bf16.msra.mxu0 %v1462
    %1573 = vmatpush.bf16.msra.mxu0 %v1459
    %1574 = vmatmul.bf16.gmra.mxu0 %v1503
    %v1575 = vpop.f32.mrf.mxu0
    %v1576 = vadd.f32 0.0, %v1575
    %v1577 = vpop.f32.mrf.mxu0
    %v1578 = vadd.f32 0.0, %v1577
    %1579 = vmatmul.bf16.gmra.mxu0 %v1506
    %v1580 = vpop.f32.mrf.mxu0
    %v1581 = vadd.f32 0.0, %v1580
    %v1582 = vpop.f32.mrf.mxu0
    %v1583 = vadd.f32 0.0, %v1582
    %1584 = vmatmul.bf16.gmra.mxu0 %v1509
    %v1585 = vpop.f32.mrf.mxu0
    %v1586 = vadd.f32 0.0, %v1585
    %v1587 = vpop.f32.mrf.mxu0
    %1588 = vdwg.mxu0
    %v1589 = vadd.f32 %v1282, %v1530
    %v1590 = vadd.f32 %v1283, %v1553
    %v1591 = vadd.f32 %v1284, %v1576
    %v1592 = vadd.f32 %v1285, %v1532
    %v1593 = vadd.f32 %v1286, %v1555
    %v1594 = vadd.f32 %v1287, %v1578
    %v1595 = vadd.f32 %v1288, %v1535
    %v1596 = vadd.f32 %v1289, %v1558
    %v1597 = vadd.f32 %v1290, %v1581
    %v1598 = vadd.f32 %v1291, %v1537
    %v1599 = vadd.f32 %v1292, %v1560
    %v1600 = vadd.f32 %v1293, %v1583
    %v1601 = vadd.f32 %v1294, %v1540
    %v1602 = vadd.f32 %v1295, %v1563
    %v1603 = vadd.f32 %v1296, %v1586
    %v1604 = vld [vmem:[%s3] sm:$0x7]
    %v1606 = vperm.slane %v1604, 0
    %v1607 = vperm.slane %v1604, 1
    %v1608 = vperm.slane %v1604, 2
    %v1612 = vmul.f32 %v1589, %v1606
    %v1613 = vmul.f32 %v1590, %v1607
    %v1614 = vmul.f32 %v1591, %v1608
    %v1615 = vmul.f32 %v1592, %v1606
    %v1616 = vmul.f32 %v1593, %v1607
    %v1617 = vmul.f32 %v1594, %v1608
    %v1618 = vmul.f32 %v1595, %v1606
    %v1619 = vmul.f32 %v1596, %v1607
    %v1620 = vmul.f32 %v1597, %v1608
    %v1621 = vmul.f32 %v1598, %v1606
    %v1622 = vmul.f32 %v1599, %v1607
    %v1623 = vmul.f32 %v1600, %v1608
    %v1624 = vmul.f32 %v1601, %v1606
    %v1625 = vmul.f32 %v1602, %v1607
    %v1626 = vmul.f32 %v1603, %v1608
    %v1627 = vld [vmem:[%s4] sm:$0x7]
    %v1629 = vperm.slane %v1627, 0
    %v1630 = vperm.slane %v1627, 1
    %v1631 = vperm.slane %v1627, 2
    %v1635 = vadd.f32 %v1612, %v1629
    %v1636 = vadd.f32 %v1613, %v1630
    %v1637 = vadd.f32 %v1614, %v1631
    %v1638 = vadd.f32 %v1615, %v1629
    %v1639 = vadd.f32 %v1616, %v1630
    %v1640 = vadd.f32 %v1617, %v1631
    %v1641 = vadd.f32 %v1618, %v1629
    %v1642 = vadd.f32 %v1619, %v1630
    %v1643 = vadd.f32 %v1620, %v1631
    %v1644 = vadd.f32 %v1621, %v1629
    %v1645 = vadd.f32 %v1622, %v1630
    %v1646 = vadd.f32 %v1623, %v1631
    %v1647 = vadd.f32 %v1624, %v1629
    %v1648 = vadd.f32 %v1625, %v1630
    %v1649 = vadd.f32 %v1626, %v1631
    %v1650 = vmax.f32 %v1635, 0.0
    %v1651 = vmax.f32 %v1636, 0.0
    %v1652 = vmax.f32 %v1637, 0.0
    %v1653 = vmax.f32 %v1638, 0.0
    %v1654 = vmax.f32 %v1639, 0.0
    %v1655 = vmax.f32 %v1640, 0.0
    %v1656 = vmax.f32 %v1641, 0.0
    %v1657 = vmax.f32 %v1642, 0.0
    %v1658 = vmax.f32 %v1643, 0.0
    %v1659 = vmax.f32 %v1644, 0.0
    %v1660 = vmax.f32 %v1645, 0.0
    %v1661 = vmax.f32 %v1646, 0.0
    %v1662 = vmax.f32 %v1647, 0.0
    %v1663 = vmax.f32 %v1648, 0.0
    %v1664 = vmax.f32 %v1649, 0.0
    %v1665 = vpack.c.bf16 %v1653, %v1650
    %v1666 = vpack.c.bf16 %v1654, %v1651
    %v1667 = vpack.c.bf16 %v1655, %v1652
    %v1668 = vpack.c.bf16 %v1659, %v1656
    %v1669 = vpack.c.bf16 %v1660, %v1657
    %v1670 = vpack.c.bf16 %v1661, %v1658
    %v1671 = vpack.c.bf16 %v1662, %v1662
    %v1672 = vpack.c.bf16 %v1663, %v1663
    %v1673 = vpack.c.bf16 %v1664, %v1664
    %v1674 = vld [vmem:[%s5] sm:$0xf]
    %v1675 = vld [vmem:[%s5 + $0x4] sm:$0x7]
    %v1678 = vunpack.c.l.b16 %v1674
    %v1679 = vunpack.c.l.b16 %v1675
    %v1680 = vpack.c.b16 %v1679, %v1678
    %vm1681 = vcmask 293888
    %v1683 = vsel %vm1681, %v1680, 0
    %vm1685 = vcmask 1041408
    %v1687 = vsel %vm1685, %v1671, 0
    %v1690 = vsel %vm1685, %v1672, 0
    %v1693 = vsel %vm1685, %v1673, 0
    %1695 = vmatpush.bf16.msra.mxu0 0
    %1696 = vmatpush.bf16.msra.mxu0 0
    %1697 = vmatpush.bf16.msra.mxu0 0
    %1698 = vmatpush.bf16.msra.mxu0 0
    %1699 = vmatpush.bf16.msra.mxu0 0
    %1700 = vmatpush.bf16.msra.mxu0 %v1687
    %1701 = vmatpush.bf16.msra.mxu0 %v1668
    %1702 = vmatpush.bf16.msra.mxu0 %v1665
    %1703 = vmatmul.bf16.gmra.mxu0 %v1683
    %v1704 = vpop.f32.mrf.mxu0
    %v1705 = vadd.f32 0.0, %v1704
    %v1706 = vpop.f32.mrf.mxu0
    %v1707 = vadd.f32 0.0, %v1706
    %1708 = vdwg.mxu0
    %1709 = vmatpush.bf16.msra.mxu0 0
    %1710 = vmatpush.bf16.msra.mxu0 0
    %1711 = vmatpush.bf16.msra.mxu0 0
    %1712 = vmatpush.bf16.msra.mxu0 0
    %1713 = vmatpush.bf16.msra.mxu0 0
    %1714 = vmatpush.bf16.msra.mxu0 %v1690
    %1715 = vmatpush.bf16.msra.mxu0 %v1669
    %1716 = vmatpush.bf16.msra.mxu0 %v1666
    %1717 = vmatmul.bf16.gmra.mxu0 %v1683
    %v1718 = vpop.f32.mrf.mxu0
    %v1719 = vadd.f32 0.0, %v1718
    %v1720 = vpop.f32.mrf.mxu0
    %v1721 = vadd.f32 0.0, %v1720
    %1722 = vdwg.mxu0
    %1723 = vmatpush.bf16.msra.mxu0 0
    %1724 = vmatpush.bf16.msra.mxu0 0
    %1725 = vmatpush.bf16.msra.mxu0 0
    %1726 = vmatpush.bf16.msra.mxu0 0
    %1727 = vmatpush.bf16.msra.mxu0 0
    %1728 = vmatpush.bf16.msra.mxu0 %v1693
    %1729 = vmatpush.bf16.msra.mxu0 %v1670
    %1730 = vmatpush.bf16.msra.mxu0 %v1667
    %1731 = vmatmul.bf16.gmra.mxu0 %v1683
    %v1732 = vpop.f32.mrf.mxu0
    %v1733 = vadd.f32 0.0, %v1732
    %v1734 = vpop.f32.mrf.mxu0
    %v1735 = vadd.f32 0.0, %v1734
    %1736 = vdwg.mxu0
    %v1737 = vpack.c.bf16 %v1707, %v1705
    %v1738 = vpack.c.bf16 %v1721, %v1719
    %v1739 = vpack.c.bf16 %v1735, %v1733
    %v1740 = vld [vmem:[%s6] sm:$0xff]
    %v1741 = vld [vmem:[%s6 + $0x8] sm:$0xff]
    %v1742 = vld [vmem:[%s6 + $0x10] sm:$0xff]
    %v1743 = vld [vmem:[%s6 + $0x18] sm:$0xff]
    %v1744 = vld [vmem:[%s6 + $0x20] sm:$0xff]
    %v1745 = vld [vmem:[%s6 + $0x28] sm:$0xff]
    %v1746 = vld [vmem:[%s6 + $0x30] sm:$0xff]
    %v1747 = vld [vmem:[%s6 + $0x38] sm:$0xff]
    %v1748 = vld [vmem:[%s6 + $0x40] sm:$0xff]
    %v1749 = vld [vmem:[%s6 + $0x48] sm:$0xff]
    %v1750 = vld [vmem:[%s6 + $0x50] sm:$0xff]
    %v1751 = vld [vmem:[%s6 + $0x58] sm:$0xff]
    %v1752 = vld [vmem:[%s6 + $0x60] sm:$0xff]
    %v1753 = vld [vmem:[%s6 + $0x68] sm:$0xff]
    %v1754 = vld [vmem:[%s6 + $0x70] sm:$0xff]
    %v1755 = vld [vmem:[%s6 + $0x78] sm:$0xff]
    %v1756 = vld [vmem:[%s6 + $0x80] sm:$0xff]
    %v1757 = vld [vmem:[%s6 + $0x88] sm:$0xff]
    %v1758 = vld [vmem:[%s6 + $0x90] sm:$0xff]
    %v1759 = vld [vmem:[%s6 + $0x98] sm:$0xff]
    %v1760 = vld [vmem:[%s6 + $0xa0] sm:$0xff]
    %v1761 = vld [vmem:[%s6 + $0xa8] sm:$0xff]
    %v1762 = vld [vmem:[%s6 + $0xb0] sm:$0xff]
    %v1763 = vld [vmem:[%s6 + $0xb8] sm:$0xff]
    %v1764 = vld [vmem:[%s6 + $0xc0] sm:$0xff]
    %v1765 = vld [vmem:[%s6 + $0xc8] sm:$0xff]
    %v1766 = vld [vmem:[%s6 + $0xd0] sm:$0xff]
    %v1767 = vld [vmem:[%s6 + $0xd8] sm:$0xff]
    %v1768 = vld [vmem:[%s6 + $0xe0] sm:$0xff]
    %v1769 = vld [vmem:[%s6 + $0xe8] sm:$0xff]
    %v1770 = vld [vmem:[%s6 + $0xf0] sm:$0xff]
    %v1771 = vld [vmem:[%s6 + $0xf8] sm:$0xff]
    %v1772 = vld [vmem:[%s6 + $0x100] sm:$0xff]
    %v1773 = vld [vmem:[%s6 + $0x108] sm:$0xff]
    %v1774 = vld [vmem:[%s6 + $0x110] sm:$0xff]
    %v1775 = vld [vmem:[%s6 + $0x118] sm:$0xff]
    %s1776 = scalar_lea.vmem %s5, 8
    %v1777 = vld [vmem:[%s1776] sm:$0xf]
    %v1778 = vld [vmem:[%s1776 + $0x4] sm:$0x7]
    %v1781 = vunpack.c.l.b16 %v1777
    %v1782 = vunpack.c.l.b16 %v1778
    %v1783 = vpack.c.b16 %v1782, %v1781
    %v1785 = vsel %vm1681, %v1783, 0
    %1787 = vmatpush.bf16.msra.mxu0 0
    %1788 = vmatpush.bf16.msra.mxu0 0
    %1789 = vmatpush.bf16.msra.mxu0 0
    %1790 = vmatpush.bf16.msra.mxu0 0
    %1791 = vmatpush.bf16.msra.mxu0 0
    %1792 = vmatpush.bf16.msra.mxu0 %v1687
    %1793 = vmatpush.bf16.msra.mxu0 %v1668
    %1794 = vmatpush.bf16.msra.mxu0 %v1665
    %1795 = vmatmul.bf16.gmra.mxu0 %v1785
    %v1796 = vpop.f32.mrf.mxu0
    %v1797 = vadd.f32 0.0, %v1796
    %v1798 = vpop.f32.mrf.mxu0
    %v1799 = vadd.f32 0.0, %v1798
    %1800 = vdwg.mxu0
    %1801 = vmatpush.bf16.msra.mxu0 0
    %1802 = vmatpush.bf16.msra.mxu0 0
    %1803 = vmatpush.bf16.msra.mxu0 0
    %1804 = vmatpush.bf16.msra.mxu0 0
    %1805 = vmatpush.bf16.msra.mxu0 0
    %1806 = vmatpush.bf16.msra.mxu0 %v1690
    %1807 = vmatpush.bf16.msra.mxu0 %v1669
    %1808 = vmatpush.bf16.msra.mxu0 %v1666
    %1809 = vmatmul.bf16.gmra.mxu0 %v1785
    %v1810 = vpop.f32.mrf.mxu0
    %v1811 = vadd.f32 0.0, %v1810
    %v1812 = vpop.f32.mrf.mxu0
    %v1813 = vadd.f32 0.0, %v1812
    %1814 = vdwg.mxu0
    %1815 = vmatpush.bf16.msra.mxu0 0
    %1816 = vmatpush.bf16.msra.mxu0 0
    %1817 = vmatpush.bf16.msra.mxu0 0
    %1818 = vmatpush.bf16.msra.mxu0 0
    %1819 = vmatpush.bf16.msra.mxu0 0
    %1820 = vmatpush.bf16.msra.mxu0 %v1693
    %1821 = vmatpush.bf16.msra.mxu0 %v1670
    %1822 = vmatpush.bf16.msra.mxu0 %v1667
    %1823 = vmatmul.bf16.gmra.mxu0 %v1785
    %v1824 = vpop.f32.mrf.mxu0
    %v1825 = vadd.f32 0.0, %v1824
    %v1826 = vpop.f32.mrf.mxu0
    %v1827 = vadd.f32 0.0, %v1826
    %1828 = vdwg.mxu0
    %v1829 = vpack.c.bf16 %v1799, %v1797
    %v1830 = vpack.c.bf16 %v1813, %v1811
    %v1831 = vpack.c.bf16 %v1827, %v1825
    %s1832 = scalar_lea.vmem %s6, 288
    %v1833 = vld [vmem:[%s1832] sm:$0xff]
    %v1834 = vld [vmem:[%s1832 + $0x8] sm:$0xff]
    %v1835 = vld [vmem:[%s1832 + $0x10] sm:$0xff]
    %v1836 = vld [vmem:[%s1832 + $0x18] sm:$0xff]
    %v1837 = vld [vmem:[%s1832 + $0x20] sm:$0xff]
    %v1838 = vld [vmem:[%s1832 + $0x28] sm:$0xff]
    %v1839 = vld [vmem:[%s1832 + $0x30] sm:$0xff]
    %v1840 = vld [vmem:[%s1832 + $0x38] sm:$0xff]
    %v1841 = vld [vmem:[%s1832 + $0x40] sm:$0xff]
    %v1842 = vld [vmem:[%s1832 + $0x48] sm:$0xff]
    %v1843 = vld [vmem:[%s1832 + $0x50] sm:$0xff]
    %v1844 = vld [vmem:[%s1832 + $0x58] sm:$0xff]
    %v1845 = vld [vmem:[%s1832 + $0x60] sm:$0xff]
    %v1846 = vld [vmem:[%s1832 + $0x68] sm:$0xff]
    %v1847 = vld [vmem:[%s1832 + $0x70] sm:$0xff]
    %v1848 = vld [vmem:[%s1832 + $0x78] sm:$0xff]
    %v1849 = vld [vmem:[%s1832 + $0x80] sm:$0xff]
    %v1850 = vld [vmem:[%s1832 + $0x88] sm:$0xff]
    %v1851 = vld [vmem:[%s1832 + $0x90] sm:$0xff]
    %v1852 = vld [vmem:[%s1832 + $0x98] sm:$0xff]
    %v1853 = vld [vmem:[%s1832 + $0xa0] sm:$0xff]
    %v1854 = vld [vmem:[%s1832 + $0xa8] sm:$0xff]
    %v1855 = vld [vmem:[%s1832 + $0xb0] sm:$0xff]
    %v1856 = vld [vmem:[%s1832 + $0xb8] sm:$0xff]
    %v1857 = vld [vmem:[%s1832 + $0xc0] sm:$0xff]
    %v1858 = vld [vmem:[%s1832 + $0xc8] sm:$0xff]
    %v1859 = vld [vmem:[%s1832 + $0xd0] sm:$0xff]
    %v1860 = vld [vmem:[%s1832 + $0xd8] sm:$0xff]
    %v1861 = vld [vmem:[%s1832 + $0xe0] sm:$0xff]
    %v1862 = vld [vmem:[%s1832 + $0xe8] sm:$0xff]
    %v1863 = vld [vmem:[%s1832 + $0xf0] sm:$0xff]
    %v1864 = vld [vmem:[%s1832 + $0xf8] sm:$0xff]
    %v1865 = vld [vmem:[%s1832 + $0x100] sm:$0xff]
    %v1866 = vld [vmem:[%s1832 + $0x108] sm:$0xff]
    %v1867 = vld [vmem:[%s1832 + $0x110] sm:$0xff]
    %v1868 = vld [vmem:[%s1832 + $0x118] sm:$0xff]
    %v1905 = vunpack.c.l.b16 %v1833
    %v1906 = vunpack.c.h.b16 %v1833
    %v1907 = vunpack.c.l.b16 %v1834
    %v1908 = vunpack.c.h.b16 %v1834
    %v1909 = vunpack.c.l.b16 %v1835
    %v1910 = vunpack.c.h.b16 %v1835
    %v1911 = vunpack.c.l.b16 %v1836
    %v1912 = vunpack.c.h.b16 %v1836
    %v1913 = vunpack.c.l.b16 %v1837
    %v1914 = vunpack.c.h.b16 %v1837
    %v1915 = vunpack.c.l.b16 %v1838
    %v1916 = vunpack.c.h.b16 %v1838
    %v1917 = vunpack.c.l.b16 %v1839
    %v1918 = vunpack.c.h.b16 %v1839
    %v1919 = vunpack.c.l.b16 %v1840
    %v1920 = vunpack.c.h.b16 %v1840
    %v1921 = vunpack.c.l.b16 %v1841
    %v1922 = vunpack.c.h.b16 %v1841
    %v1923 = vunpack.c.l.b16 %v1842
    %v1924 = vunpack.c.h.b16 %v1842
    %v1925 = vunpack.c.l.b16 %v1843
    %v1926 = vunpack.c.h.b16 %v1843
    %v1927 = vunpack.c.l.b16 %v1844
    %v1928 = vunpack.c.h.b16 %v1844
    %v1929 = vunpack.c.l.b16 %v1845
    %v1930 = vunpack.c.h.b16 %v1845
    %v1931 = vunpack.c.l.b16 %v1846
    %v1932 = vunpack.c.h.b16 %v1846
    %v1933 = vunpack.c.l.b16 %v1847
    %v1934 = vunpack.c.h.b16 %v1847
    %v1935 = vunpack.c.l.b16 %v1848
    %v1936 = vunpack.c.h.b16 %v1848
    %v1937 = vunpack.c.l.b16 %v1849
    %v1938 = vunpack.c.h.b16 %v1849
    %v1939 = vunpack.c.l.b16 %v1850
    %v1940 = vunpack.c.h.b16 %v1850
    %v1941 = vunpack.c.l.b16 %v1851
    %v1942 = vunpack.c.h.b16 %v1851
    %v1943 = vunpack.c.l.b16 %v1852
    %v1944 = vunpack.c.h.b16 %v1852
    %v1945 = vunpack.c.l.b16 %v1853
    %v1946 = vunpack.c.h.b16 %v1853
    %v1947 = vunpack.c.l.b16 %v1854
    %v1948 = vunpack.c.h.b16 %v1854
    %v1949 = vunpack.c.l.b16 %v1855
    %v1950 = vunpack.c.h.b16 %v1855
    %v1951 = vunpack.c.l.b16 %v1856
    %v1952 = vunpack.c.h.b16 %v1856
    %v1953 = vunpack.c.l.b16 %v1857
    %v1954 = vunpack.c.h.b16 %v1857
    %v1955 = vunpack.c.l.b16 %v1858
    %v1956 = vunpack.c.h.b16 %v1858
    %v1957 = vunpack.c.l.b16 %v1859
    %v1958 = vunpack.c.h.b16 %v1859
    %v1959 = vunpack.c.l.b16 %v1860
    %v1960 = vunpack.c.h.b16 %v1860
    %v1961 = vunpack.c.l.b16 %v1861
    %v1962 = vunpack.c.h.b16 %v1861
    %v1963 = vunpack.c.l.b16 %v1862
    %v1964 = vunpack.c.h.b16 %v1862
    %v1965 = vunpack.c.l.b16 %v1863
    %v1966 = vunpack.c.h.b16 %v1863
    %v1967 = vunpack.c.l.b16 %v1864
    %v1968 = vunpack.c.h.b16 %v1864
    %v1969 = vunpack.c.l.b16 %v1865
    %v1970 = vunpack.c.h.b16 %v1865
    %v1971 = vunpack.c.l.b16 %v1866
    %v1972 = vunpack.c.h.b16 %v1866
    %v1973 = vunpack.c.l.b16 %v1867
    %v1974 = vunpack.c.h.b16 %v1867
    %v1975 = vunpack.c.l.b16 %v1868
    %v1976 = vunpack.c.h.b16 %v1868
    %v1977 = vpack.c.b16 %v1907, %v1905
    %v1978 = vpack.c.b16 %v1908, %v1906
    %v1979 = vpack.c.b16 %v1911, %v1909
    %v1980 = vpack.c.b16 %v1912, %v1910
    %v1981 = vpack.c.b16 %v1915, %v1913
    %v1982 = vpack.c.b16 %v1916, %v1914
    %v1983 = vpack.c.b16 %v1919, %v1917
    %v1984 = vpack.c.b16 %v1920, %v1918
    %v1985 = vpack.c.b16 %v1923, %v1921
    %v1986 = vpack.c.b16 %v1924, %v1922
    %v1987 = vpack.c.b16 %v1927, %v1925
    %v1988 = vpack.c.b16 %v1928, %v1926
    %v1989 = vpack.c.b16 %v1931, %v1929
    %v1990 = vpack.c.b16 %v1932, %v1930
    %v1991 = vpack.c.b16 %v1935, %v1933
    %v1992 = vpack.c.b16 %v1936, %v1934
    %v1993 = vpack.c.b16 %v1939, %v1937
    %v1994 = vpack.c.b16 %v1940, %v1938
    %v1995 = vpack.c.b16 %v1943, %v1941
    %v1996 = vpack.c.b16 %v1944, %v1942
    %v1997 = vpack.c.b16 %v1947, %v1945
    %v1998 = vpack.c.b16 %v1948, %v1946
    %v1999 = vpack.c.b16 %v1951, %v1949
    %v2000 = vpack.c.b16 %v1952, %v1950
    %v2001 = vpack.c.b16 %v1955, %v1953
    %v2002 = vpack.c.b16 %v1956, %v1954
    %v2003 = vpack.c.b16 %v1959, %v1957
    %v2004 = vpack.c.b16 %v1960, %v1958
    %v2005 = vpack.c.b16 %v1963, %v1961
    %v2006 = vpack.c.b16 %v1964, %v1962
    %v2007 = vpack.c.b16 %v1967, %v1965
    %v2008 = vpack.c.b16 %v1968, %v1966
    %v2009 = vpack.c.b16 %v1971, %v1969
    %v2010 = vpack.c.b16 %v1972, %v1970
    %v2011 = vpack.c.b16 %v1975, %v1973
    %v2012 = vpack.c.b16 %v1976, %v1974
    %vm2049 = vcmask 261120
    %v2051 = vsel %vm2049, %v1831, 0
    %2053 = vmatpush.bf16.msra.mxu0 %v1991
    %2054 = vmatpush.bf16.msra.mxu0 %v1989
    %2055 = vmatpush.bf16.msra.mxu0 %v1987
    %2056 = vmatpush.bf16.msra.mxu0 %v1985
    %2057 = vmatpush.bf16.msra.mxu0 %v1983
    %2058 = vmatpush.bf16.msra.mxu0 %v1981
    %2059 = vmatpush.bf16.msra.mxu0 %v1979
    %2060 = vmatpush.bf16.msra.mxu0 %v1977
    %2061 = vmatmul.bf16.gmra.mxu0 %v1829
    %v2062 = vpop.f32.mrf.mxu0
    %v2063 = vadd.f32 0.0, %v2062
    %v2064 = vpop.f32.mrf.mxu0
    %v2065 = vadd.f32 0.0, %v2064
    %2066 = vdwg.mxu0
    %2067 = vmatpush.bf16.msra.mxu0 %v2007
    %2068 = vmatpush.bf16.msra.mxu0 %v2005
    %2069 = vmatpush.bf16.msra.mxu0 %v2003
    %2070 = vmatpush.bf16.msra.mxu0 %v2001
    %2071 = vmatpush.bf16.msra.mxu0 %v1999
    %2072 = vmatpush.bf16.msra.mxu0 %v1997
    %2073 = vmatpush.bf16.msra.mxu0 %v1995
    %2074 = vmatpush.bf16.msra.mxu0 %v1993
    %2075 = vmatmul.bf16.gmra.mxu0 %v1830
    %v2076 = vpop.f32.mrf.mxu0
    %v2077 = vadd.f32 %v2063, %v2076
    %v2078 = vpop.f32.mrf.mxu0
    %v2079 = vadd.f32 %v2065, %v2078
    %2080 = vdwg.mxu0
    %2081 = vmatpush.bf16.msra.mxu0 0
    %2082 = vmatpush.bf16.msra.mxu0 0
    %2083 = vmatpush.bf16.msra.mxu0 0
    %2084 = vmatpush.bf16.msra.mxu0 0
    %2085 = vmatpush.bf16.msra.mxu0 0
    %2086 = vmatpush.bf16.msra.mxu0 0
    %2087 = vmatpush.bf16.msra.mxu0 %v2011
    %2088 = vmatpush.bf16.msra.mxu0 %v2009
    %2089 = vmatmul.bf16.gmra.mxu0 %v2051
    %v2090 = vpop.f32.mrf.mxu0
    %v2091 = vadd.f32 %v2077, %v2090
    %v2092 = vpop.f32.mrf.mxu0
    %v2093 = vadd.f32 %v2079, %v2092
    %2094 = vdwg.mxu0
    %2095 = vmatpush.bf16.msra.mxu0 %v1992
    %2096 = vmatpush.bf16.msra.mxu0 %v1990
    %2097 = vmatpush.bf16.msra.mxu0 %v1988
    %2098 = vmatpush.bf16.msra.mxu0 %v1986
    %2099 = vmatpush.bf16.msra.mxu0 %v1984
    %2100 = vmatpush.bf16.msra.mxu0 %v1982
    %2101 = vmatpush.bf16.msra.mxu0 %v1980
    %2102 = vmatpush.bf16.msra.mxu0 %v1978
    %2103 = vmatmul.bf16.gmra.mxu0 %v1829
    %v2104 = vpop.f32.mrf.mxu0
    %v2105 = vadd.f32 0.0, %v2104
    %v2106 = vpop.f32.mrf.mxu0
    %v2107 = vadd.f32 0.0, %v2106
    %2108 = vdwg.mxu0
    %2109 = vmatpush.bf16.msra.mxu0 %v2008
    %2110 = vmatpush.bf16.msra.mxu0 %v2006
    %2111 = vmatpush.bf16.msra.mxu0 %v2004
    %2112 = vmatpush.bf16.msra.mxu0 %v2002
    %2113 = vmatpush.bf16.msra.mxu0 %v2000
    %2114 = vmatpush.bf16.msra.mxu0 %v1998
    %2115 = vmatpush.bf16.msra.mxu0 %v1996
    %2116 = vmatpush.bf16.msra.mxu0 %v1994
    %2117 = vmatmul.bf16.gmra.mxu0 %v1830
    %v2118 = vpop.f32.mrf.mxu0
    %v2119 = vadd.f32 %v2105, %v2118
    %v2120 = vpop.f32.mrf.mxu0
    %v2121 = vadd.f32 %v2107, %v2120
    %2122 = vdwg.mxu0
    %2123 = vmatpush.bf16.msra.mxu0 0
    %2124 = vmatpush.bf16.msra.mxu0 0
    %2125 = vmatpush.bf16.msra.mxu0 0
    %2126 = vmatpush.bf16.msra.mxu0 0
    %2127 = vmatpush.bf16.msra.mxu0 0
    %2128 = vmatpush.bf16.msra.mxu0 0
    %2129 = vmatpush.bf16.msra.mxu0 %v2012
    %2130 = vmatpush.bf16.msra.mxu0 %v2010
    %2131 = vmatmul.bf16.gmra.mxu0 %v2051
    %v2132 = vpop.f32.mrf.mxu0
    %v2133 = vadd.f32 %v2119, %v2132
    %v2134 = vpop.f32.mrf.mxu0
    %v2135 = vadd.f32 %v2121, %v2134
    %2136 = vdwg.mxu0
    %v2173 = vunpack.c.l.b16 %v1740
    %v2174 = vunpack.c.h.b16 %v1740
    %v2175 = vunpack.c.l.b16 %v1741
    %v2176 = vunpack.c.h.b16 %v1741
    %v2177 = vunpack.c.l.b16 %v1742
    %v2178 = vunpack.c.h.b16 %v1742
    %v2179 = vunpack.c.l.b16 %v1743
    %v2180 = vunpack.c.h.b16 %v1743
    %v2181 = vunpack.c.l.b16 %v1744
    %v2182 = vunpack.c.h.b16 %v1744
    %v2183 = vunpack.c.l.b16 %v1745
    %v2184 = vunpack.c.h.b16 %v1745
    %v2185 = vunpack.c.l.b16 %v1746
    %v2186 = vunpack.c.h.b16 %v1746
    %v2187 = vunpack.c.l.b16 %v1747
    %v2188 = vunpack.c.h.b16 %v1747
    %v2189 = vunpack.c.l.b16 %v1748
    %v2190 = vunpack.c.h.b16 %v1748
    %v2191 = vunpack.c.l.b16 %v1749
    %v2192 = vunpack.c.h.b16 %v1749
    %v2193 = vunpack.c.l.b16 %v1750
    %v2194 = vunpack.c.h.b16 %v1750
    %v2195 = vunpack.c.l.b16 %v1751
    %v2196 = vunpack.c.h.b16 %v1751
    %v2197 = vunpack.c.l.b16 %v1752
    %v2198 = vunpack.c.h.b16 %v1752
    %v2199 = vunpack.c.l.b16 %v1753
    %v2200 = vunpack.c.h.b16 %v1753
    %v2201 = vunpack.c.l.b16 %v1754
    %v2202 = vunpack.c.h.b16 %v1754
    %v2203 = vunpack.c.l.b16 %v1755
    %v2204 = vunpack.c.h.b16 %v1755
    %v2205 = vunpack.c.l.b16 %v1756
    %v2206 = vunpack.c.h.b16 %v1756
    %v2207 = vunpack.c.l.b16 %v1757
    %v2208 = vunpack.c.h.b16 %v1757
    %v2209 = vunpack.c.l.b16 %v1758
    %v2210 = vunpack.c.h.b16 %v1758
    %v2211 = vunpack.c.l.b16 %v1759
    %v2212 = vunpack.c.h.b16 %v1759
    %v2213 = vunpack.c.l.b16 %v1760
    %v2214 = vunpack.c.h.b16 %v1760
    %v2215 = vunpack.c.l.b16 %v1761
    %v2216 = vunpack.c.h.b16 %v1761
    %v2217 = vunpack.c.l.b16 %v1762
    %v2218 = vunpack.c.h.b16 %v1762
    %v2219 = vunpack.c.l.b16 %v1763
    %v2220 = vunpack.c.h.b16 %v1763
    %v2221 = vunpack.c.l.b16 %v1764
    %v2222 = vunpack.c.h.b16 %v1764
    %v2223 = vunpack.c.l.b16 %v1765
    %v2224 = vunpack.c.h.b16 %v1765
    %v2225 = vunpack.c.l.b16 %v1766
    %v2226 = vunpack.c.h.b16 %v1766
    %v2227 = vunpack.c.l.b16 %v1767
    %v2228 = vunpack.c.h.b16 %v1767
    %v2229 = vunpack.c.l.b16 %v1768
    %v2230 = vunpack.c.h.b16 %v1768
    %v2231 = vunpack.c.l.b16 %v1769
    %v2232 = vunpack.c.h.b16 %v1769
    %v2233 = vunpack.c.l.b16 %v1770
    %v2234 = vunpack.c.h.b16 %v1770
    %v2235 = vunpack.c.l.b16 %v1771
    %v2236 = vunpack.c.h.b16 %v1771
    %v2237 = vunpack.c.l.b16 %v1772
    %v2238 = vunpack.c.h.b16 %v1772
    %v2239 = vunpack.c.l.b16 %v1773
    %v2240 = vunpack.c.h.b16 %v1773
    %v2241 = vunpack.c.l.b16 %v1774
    %v2242 = vunpack.c.h.b16 %v1774
    %v2243 = vunpack.c.l.b16 %v1775
    %v2244 = vunpack.c.h.b16 %v1775
    %v2245 = vpack.c.b16 %v2175, %v2173
    %v2246 = vpack.c.b16 %v2176, %v2174
    %v2247 = vpack.c.b16 %v2179, %v2177
    %v2248 = vpack.c.b16 %v2180, %v2178
    %v2249 = vpack.c.b16 %v2183, %v2181
    %v2250 = vpack.c.b16 %v2184, %v2182
    %v2251 = vpack.c.b16 %v2187, %v2185
    %v2252 = vpack.c.b16 %v2188, %v2186
    %v2253 = vpack.c.b16 %v2191, %v2189
    %v2254 = vpack.c.b16 %v2192, %v2190
    %v2255 = vpack.c.b16 %v2195, %v2193
    %v2256 = vpack.c.b16 %v2196, %v2194
    %v2257 = vpack.c.b16 %v2199, %v2197
    %v2258 = vpack.c.b16 %v2200, %v2198
    %v2259 = vpack.c.b16 %v2203, %v2201
    %v2260 = vpack.c.b16 %v2204, %v2202
    %v2261 = vpack.c.b16 %v2207, %v2205
    %v2262 = vpack.c.b16 %v2208, %v2206
    %v2263 = vpack.c.b16 %v2211, %v2209
    %v2264 = vpack.c.b16 %v2212, %v2210
    %v2265 = vpack.c.b16 %v2215, %v2213
    %v2266 = vpack.c.b16 %v2216, %v2214
    %v2267 = vpack.c.b16 %v2219, %v2217
    %v2268 = vpack.c.b16 %v2220, %v2218
    %v2269 = vpack.c.b16 %v2223, %v2221
    %v2270 = vpack.c.b16 %v2224, %v2222
    %v2271 = vpack.c.b16 %v2227, %v2225
    %v2272 = vpack.c.b16 %v2228, %v2226
    %v2273 = vpack.c.b16 %v2231, %v2229
    %v2274 = vpack.c.b16 %v2232, %v2230
    %v2275 = vpack.c.b16 %v2235, %v2233
    %v2276 = vpack.c.b16 %v2236, %v2234
    %v2277 = vpack.c.b16 %v2239, %v2237
    %v2278 = vpack.c.b16 %v2240, %v2238
    %v2279 = vpack.c.b16 %v2243, %v2241
    %v2280 = vpack.c.b16 %v2244, %v2242
    %v2318 = vsel %vm2049, %v1739, 0
    %2320 = vmatpush.bf16.msra.mxu0 %v2259
    %2321 = vmatpush.bf16.msra.mxu0 %v2257
    %2322 = vmatpush.bf16.msra.mxu0 %v2255
    %2323 = vmatpush.bf16.msra.mxu0 %v2253
    %2324 = vmatpush.bf16.msra.mxu0 %v2251
    %2325 = vmatpush.bf16.msra.mxu0 %v2249
    %2326 = vmatpush.bf16.msra.mxu0 %v2247
    %2327 = vmatpush.bf16.msra.mxu0 %v2245
    %2328 = vmatmul.bf16.gmra.mxu0 %v1737
    %v2329 = vpop.f32.mrf.mxu0
    %v2330 = vadd.f32 %v2091, %v2329
    %v2331 = vpop.f32.mrf.mxu0
    %v2332 = vadd.f32 %v2093, %v2331
    %2333 = vdwg.mxu0
    %2334 = vmatpush.bf16.msra.mxu0 %v2275
    %2335 = vmatpush.bf16.msra.mxu0 %v2273
    %2336 = vmatpush.bf16.msra.mxu0 %v2271
    %2337 = vmatpush.bf16.msra.mxu0 %v2269
    %2338 = vmatpush.bf16.msra.mxu0 %v2267
    %2339 = vmatpush.bf16.msra.mxu0 %v2265
    %2340 = vmatpush.bf16.msra.mxu0 %v2263
    %2341 = vmatpush.bf16.msra.mxu0 %v2261
    %2342 = vmatmul.bf16.gmra.mxu0 %v1738
    %v2343 = vpop.f32.mrf.mxu0
    %v2344 = vadd.f32 %v2330, %v2343
    %v2345 = vpop.f32.mrf.mxu0
    %v2346 = vadd.f32 %v2332, %v2345
    %2347 = vdwg.mxu0
    %2348 = vmatpush.bf16.msra.mxu0 0
    %2349 = vmatpush.bf16.msra.mxu0 0
    %2350 = vmatpush.bf16.msra.mxu0 0
    %2351 = vmatpush.bf16.msra.mxu0 0
    %2352 = vmatpush.bf16.msra.mxu0 0
    %2353 = vmatpush.bf16.msra.mxu0 0
    %2354 = vmatpush.bf16.msra.mxu0 %v2279
    %2355 = vmatpush.bf16.msra.mxu0 %v2277
    %2356 = vmatmul.bf16.gmra.mxu0 %v2318
    %v2357 = vpop.f32.mrf.mxu0
    %v2358 = vadd.f32 %v2344, %v2357
    %v2359 = vpop.f32.mrf.mxu0
    %v2360 = vadd.f32 %v2346, %v2359
    %2361 = vdwg.mxu0
    %2362 = vmatpush.bf16.msra.mxu0 %v2260
    %2363 = vmatpush.bf16.msra.mxu0 %v2258
    %2364 = vmatpush.bf16.msra.mxu0 %v2256
    %2365 = vmatpush.bf16.msra.mxu0 %v2254
    %2366 = vmatpush.bf16.msra.mxu0 %v2252
    %2367 = vmatpush.bf16.msra.mxu0 %v2250
    %2368 = vmatpush.bf16.msra.mxu0 %v2248
    %2369 = vmatpush.bf16.msra.mxu0 %v2246
    %2370 = vmatmul.bf16.gmra.mxu0 %v1737
    %v2371 = vpop.f32.mrf.mxu0
    %v2372 = vadd.f32 %v2133, %v2371
    %v2373 = vpop.f32.mrf.mxu0
    %v2374 = vadd.f32 %v2135, %v2373
    %2375 = vdwg.mxu0
    %2376 = vmatpush.bf16.msra.mxu0 %v2276
    %2377 = vmatpush.bf16.msra.mxu0 %v2274
    %2378 = vmatpush.bf16.msra.mxu0 %v2272
    %2379 = vmatpush.bf16.msra.mxu0 %v2270
    %2380 = vmatpush.bf16.msra.mxu0 %v2268
    %2381 = vmatpush.bf16.msra.mxu0 %v2266
    %2382 = vmatpush.bf16.msra.mxu0 %v2264
    %2383 = vmatpush.bf16.msra.mxu0 %v2262
    %2384 = vmatmul.bf16.gmra.mxu0 %v1738
    %v2385 = vpop.f32.mrf.mxu0
    %v2386 = vadd.f32 %v2372, %v2385
    %v2387 = vpop.f32.mrf.mxu0
    %v2388 = vadd.f32 %v2374, %v2387
    %2389 = vdwg.mxu0
    %2390 = vmatpush.bf16.msra.mxu0 0
    %2391 = vmatpush.bf16.msra.mxu0 0
    %2392 = vmatpush.bf16.msra.mxu0 0
    %2393 = vmatpush.bf16.msra.mxu0 0
    %2394 = vmatpush.bf16.msra.mxu0 0
    %2395 = vmatpush.bf16.msra.mxu0 0
    %2396 = vmatpush.bf16.msra.mxu0 %v2280
    %2397 = vmatpush.bf16.msra.mxu0 %v2278
    %2398 = vmatmul.bf16.gmra.mxu0 %v2318
    %v2399 = vpop.f32.mrf.mxu0
    %v2400 = vadd.f32 %v2386, %v2399
    %v2401 = vpop.f32.mrf.mxu0
    %v2402 = vadd.f32 %v2388, %v2401
    %2403 = vdwg.mxu0
    %s2404 = scalar_lea.vmem %s5, 16
    %v2405 = vld [vmem:[%s2404] sm:$0xf]
    %v2406 = vld [vmem:[%s2404 + $0x4] sm:$0x7]
    %v2409 = vunpack.c.l.b16 %v2405
    %v2410 = vunpack.c.l.b16 %v2406
    %v2411 = vpack.c.b16 %v2410, %v2409
    %v2413 = vsel %vm1681, %v2411, 0
    %2415 = vmatpush.bf16.msra.mxu0 0
    %2416 = vmatpush.bf16.msra.mxu0 0
    %2417 = vmatpush.bf16.msra.mxu0 0
    %2418 = vmatpush.bf16.msra.mxu0 0
    %2419 = vmatpush.bf16.msra.mxu0 0
    %2420 = vmatpush.bf16.msra.mxu0 %v1687
    %2421 = vmatpush.bf16.msra.mxu0 %v1668
    %2422 = vmatpush.bf16.msra.mxu0 %v1665
    %2423 = vmatmul.bf16.gmra.mxu0 %v2413
    %v2424 = vpop.f32.mrf.mxu0
    %v2425 = vadd.f32 0.0, %v2424
    %v2426 = vpop.f32.mrf.mxu0
    %v2427 = vadd.f32 0.0, %v2426
    %2428 = vdwg.mxu0
    %2429 = vmatpush.bf16.msra.mxu0 0
    %2430 = vmatpush.bf16.msra.mxu0 0
    %2431 = vmatpush.bf16.msra.mxu0 0
    %2432 = vmatpush.bf16.msra.mxu0 0
    %2433 = vmatpush.bf16.msra.mxu0 0
    %2434 = vmatpush.bf16.msra.mxu0 %v1690
    %2435 = vmatpush.bf16.msra.mxu0 %v1669
    %2436 = vmatpush.bf16.msra.mxu0 %v1666
    %2437 = vmatmul.bf16.gmra.mxu0 %v2413
    %v2438 = vpop.f32.mrf.mxu0
    %v2439 = vadd.f32 0.0, %v2438
    %v2440 = vpop.f32.mrf.mxu0
    %v2441 = vadd.f32 0.0, %v2440
    %2442 = vdwg.mxu0
    %2443 = vmatpush.bf16.msra.mxu0 0
    %2444 = vmatpush.bf16.msra.mxu0 0
    %2445 = vmatpush.bf16.msra.mxu0 0
    %2446 = vmatpush.bf16.msra.mxu0 0
    %2447 = vmatpush.bf16.msra.mxu0 0
    %2448 = vmatpush.bf16.msra.mxu0 %v1693
    %2449 = vmatpush.bf16.msra.mxu0 %v1670
    %2450 = vmatpush.bf16.msra.mxu0 %v1667
    %2451 = vmatmul.bf16.gmra.mxu0 %v2413
    %v2452 = vpop.f32.mrf.mxu0
    %v2453 = vadd.f32 0.0, %v2452
    %v2454 = vpop.f32.mrf.mxu0
    %v2455 = vadd.f32 0.0, %v2454
    %2456 = vdwg.mxu0
    %v2457 = vpack.c.bf16 %v2427, %v2425
    %v2458 = vpack.c.bf16 %v2441, %v2439
    %v2459 = vpack.c.bf16 %v2455, %v2453
    %s2460 = scalar_lea.vmem %s6, 576
    %v2461 = vld [vmem:[%s2460] sm:$0xff]
    %v2462 = vld [vmem:[%s2460 + $0x8] sm:$0xff]
    %v2463 = vld [vmem:[%s2460 + $0x10] sm:$0xff]
    %v2464 = vld [vmem:[%s2460 + $0x18] sm:$0xff]
    %v2465 = vld [vmem:[%s2460 + $0x20] sm:$0xff]
    %v2466 = vld [vmem:[%s2460 + $0x28] sm:$0xff]
    %v2467 = vld [vmem:[%s2460 + $0x30] sm:$0xff]
    %v2468 = vld [vmem:[%s2460 + $0x38] sm:$0xff]
    %v2469 = vld [vmem:[%s2460 + $0x40] sm:$0xff]
    %v2470 = vld [vmem:[%s2460 + $0x48] sm:$0xff]
    %v2471 = vld [vmem:[%s2460 + $0x50] sm:$0xff]
    %v2472 = vld [vmem:[%s2460 + $0x58] sm:$0xff]
    %v2473 = vld [vmem:[%s2460 + $0x60] sm:$0xff]
    %v2474 = vld [vmem:[%s2460 + $0x68] sm:$0xff]
    %v2475 = vld [vmem:[%s2460 + $0x70] sm:$0xff]
    %v2476 = vld [vmem:[%s2460 + $0x78] sm:$0xff]
    %v2477 = vld [vmem:[%s2460 + $0x80] sm:$0xff]
    %v2478 = vld [vmem:[%s2460 + $0x88] sm:$0xff]
    %v2479 = vld [vmem:[%s2460 + $0x90] sm:$0xff]
    %v2480 = vld [vmem:[%s2460 + $0x98] sm:$0xff]
    %v2481 = vld [vmem:[%s2460 + $0xa0] sm:$0xff]
    %v2482 = vld [vmem:[%s2460 + $0xa8] sm:$0xff]
    %v2483 = vld [vmem:[%s2460 + $0xb0] sm:$0xff]
    %v2484 = vld [vmem:[%s2460 + $0xb8] sm:$0xff]
    %v2485 = vld [vmem:[%s2460 + $0xc0] sm:$0xff]
    %v2486 = vld [vmem:[%s2460 + $0xc8] sm:$0xff]
    %v2487 = vld [vmem:[%s2460 + $0xd0] sm:$0xff]
    %v2488 = vld [vmem:[%s2460 + $0xd8] sm:$0xff]
    %v2489 = vld [vmem:[%s2460 + $0xe0] sm:$0xff]
    %v2490 = vld [vmem:[%s2460 + $0xe8] sm:$0xff]
    %v2491 = vld [vmem:[%s2460 + $0xf0] sm:$0xff]
    %v2492 = vld [vmem:[%s2460 + $0xf8] sm:$0xff]
    %v2493 = vld [vmem:[%s2460 + $0x100] sm:$0xff]
    %v2494 = vld [vmem:[%s2460 + $0x108] sm:$0xff]
    %v2495 = vld [vmem:[%s2460 + $0x110] sm:$0xff]
    %v2496 = vld [vmem:[%s2460 + $0x118] sm:$0xff]
    %v2533 = vunpack.c.l.b16 %v2461
    %v2534 = vunpack.c.h.b16 %v2461
    %v2535 = vunpack.c.l.b16 %v2462
    %v2536 = vunpack.c.h.b16 %v2462
    %v2537 = vunpack.c.l.b16 %v2463
    %v2538 = vunpack.c.h.b16 %v2463
    %v2539 = vunpack.c.l.b16 %v2464
    %v2540 = vunpack.c.h.b16 %v2464
    %v2541 = vunpack.c.l.b16 %v2465
    %v2542 = vunpack.c.h.b16 %v2465
    %v2543 = vunpack.c.l.b16 %v2466
    %v2544 = vunpack.c.h.b16 %v2466
    %v2545 = vunpack.c.l.b16 %v2467
    %v2546 = vunpack.c.h.b16 %v2467
    %v2547 = vunpack.c.l.b16 %v2468
    %v2548 = vunpack.c.h.b16 %v2468
    %v2549 = vunpack.c.l.b16 %v2469
    %v2550 = vunpack.c.h.b16 %v2469
    %v2551 = vunpack.c.l.b16 %v2470
    %v2552 = vunpack.c.h.b16 %v2470
    %v2553 = vunpack.c.l.b16 %v2471
    %v2554 = vunpack.c.h.b16 %v2471
    %v2555 = vunpack.c.l.b16 %v2472
    %v2556 = vunpack.c.h.b16 %v2472
    %v2557 = vunpack.c.l.b16 %v2473
    %v2558 = vunpack.c.h.b16 %v2473
    %v2559 = vunpack.c.l.b16 %v2474
    %v2560 = vunpack.c.h.b16 %v2474
    %v2561 = vunpack.c.l.b16 %v2475
    %v2562 = vunpack.c.h.b16 %v2475
    %v2563 = vunpack.c.l.b16 %v2476
    %v2564 = vunpack.c.h.b16 %v2476
    %v2565 = vunpack.c.l.b16 %v2477
    %v2566 = vunpack.c.h.b16 %v2477
    %v2567 = vunpack.c.l.b16 %v2478
    %v2568 = vunpack.c.h.b16 %v2478
    %v2569 = vunpack.c.l.b16 %v2479
    %v2570 = vunpack.c.h.b16 %v2479
    %v2571 = vunpack.c.l.b16 %v2480
    %v2572 = vunpack.c.h.b16 %v2480
    %v2573 = vunpack.c.l.b16 %v2481
    %v2574 = vunpack.c.h.b16 %v2481
    %v2575 = vunpack.c.l.b16 %v2482
    %v2576 = vunpack.c.h.b16 %v2482
    %v2577 = vunpack.c.l.b16 %v2483
    %v2578 = vunpack.c.h.b16 %v2483
    %v2579 = vunpack.c.l.b16 %v2484
    %v2580 = vunpack.c.h.b16 %v2484
    %v2581 = vunpack.c.l.b16 %v2485
    %v2582 = vunpack.c.h.b16 %v2485
    %v2583 = vunpack.c.l.b16 %v2486
    %v2584 = vunpack.c.h.b16 %v2486
    %v2585 = vunpack.c.l.b16 %v2487
    %v2586 = vunpack.c.h.b16 %v2487
    %v2587 = vunpack.c.l.b16 %v2488
    %v2588 = vunpack.c.h.b16 %v2488
    %v2589 = vunpack.c.l.b16 %v2489
    %v2590 = vunpack.c.h.b16 %v2489
    %v2591 = vunpack.c.l.b16 %v2490
    %v2592 = vunpack.c.h.b16 %v2490
    %v2593 = vunpack.c.l.b16 %v2491
    %v2594 = vunpack.c.h.b16 %v2491
    %v2595 = vunpack.c.l.b16 %v2492
    %v2596 = vunpack.c.h.b16 %v2492
    %v2597 = vunpack.c.l.b16 %v2493
    %v2598 = vunpack.c.h.b16 %v2493
    %v2599 = vunpack.c.l.b16 %v2494
    %v2600 = vunpack.c.h.b16 %v2494
    %v2601 = vunpack.c.l.b16 %v2495
    %v2602 = vunpack.c.h.b16 %v2495
    %v2603 = vunpack.c.l.b16 %v2496
    %v2604 = vunpack.c.h.b16 %v2496
    %v2605 = vpack.c.b16 %v2535, %v2533
    %v2606 = vpack.c.b16 %v2536, %v2534
    %v2607 = vpack.c.b16 %v2539, %v2537
    %v2608 = vpack.c.b16 %v2540, %v2538
    %v2609 = vpack.c.b16 %v2543, %v2541
    %v2610 = vpack.c.b16 %v2544, %v2542
    %v2611 = vpack.c.b16 %v2547, %v2545
    %v2612 = vpack.c.b16 %v2548, %v2546
    %v2613 = vpack.c.b16 %v2551, %v2549
    %v2614 = vpack.c.b16 %v2552, %v2550
    %v2615 = vpack.c.b16 %v2555, %v2553
    %v2616 = vpack.c.b16 %v2556, %v2554
    %v2617 = vpack.c.b16 %v2559, %v2557
    %v2618 = vpack.c.b16 %v2560, %v2558
    %v2619 = vpack.c.b16 %v2563, %v2561
    %v2620 = vpack.c.b16 %v2564, %v2562
    %v2621 = vpack.c.b16 %v2567, %v2565
    %v2622 = vpack.c.b16 %v2568, %v2566
    %v2623 = vpack.c.b16 %v2571, %v2569
    %v2624 = vpack.c.b16 %v2572, %v2570
    %v2625 = vpack.c.b16 %v2575, %v2573
    %v2626 = vpack.c.b16 %v2576, %v2574
    %v2627 = vpack.c.b16 %v2579, %v2577
    %v2628 = vpack.c.b16 %v2580, %v2578
    %v2629 = vpack.c.b16 %v2583, %v2581
    %v2630 = vpack.c.b16 %v2584, %v2582
    %v2631 = vpack.c.b16 %v2587, %v2585
    %v2632 = vpack.c.b16 %v2588, %v2586
    %v2633 = vpack.c.b16 %v2591, %v2589
    %v2634 = vpack.c.b16 %v2592, %v2590
    %v2635 = vpack.c.b16 %v2595, %v2593
    %v2636 = vpack.c.b16 %v2596, %v2594
    %v2637 = vpack.c.b16 %v2599, %v2597
    %v2638 = vpack.c.b16 %v2600, %v2598
    %v2639 = vpack.c.b16 %v2603, %v2601
    %v2640 = vpack.c.b16 %v2604, %v2602
    %v2678 = vsel %vm2049, %v2459, 0
    %2680 = vmatpush.bf16.msra.mxu0 %v2619
    %2681 = vmatpush.bf16.msra.mxu0 %v2617
    %2682 = vmatpush.bf16.msra.mxu0 %v2615
    %2683 = vmatpush.bf16.msra.mxu0 %v2613
    %2684 = vmatpush.bf16.msra.mxu0 %v2611
    %2685 = vmatpush.bf16.msra.mxu0 %v2609
    %2686 = vmatpush.bf16.msra.mxu0 %v2607
    %2687 = vmatpush.bf16.msra.mxu0 %v2605
    %2688 = vmatmul.bf16.gmra.mxu0 %v2457
    %v2689 = vpop.f32.mrf.mxu0
    %v2690 = vadd.f32 0.0, %v2689
    %v2691 = vpop.f32.mrf.mxu0
    %v2692 = vadd.f32 0.0, %v2691
    %2693 = vdwg.mxu0
    %2694 = vmatpush.bf16.msra.mxu0 %v2635
    %2695 = vmatpush.bf16.msra.mxu0 %v2633
    %2696 = vmatpush.bf16.msra.mxu0 %v2631
    %2697 = vmatpush.bf16.msra.mxu0 %v2629
    %2698 = vmatpush.bf16.msra.mxu0 %v2627
    %2699 = vmatpush.bf16.msra.mxu0 %v2625
    %2700 = vmatpush.bf16.msra.mxu0 %v2623
    %2701 = vmatpush.bf16.msra.mxu0 %v2621
    %2702 = vmatmul.bf16.gmra.mxu0 %v2458
    %v2703 = vpop.f32.mrf.mxu0
    %v2704 = vadd.f32 %v2690, %v2703
    %v2705 = vpop.f32.mrf.mxu0
    %v2706 = vadd.f32 %v2692, %v2705
    %2707 = vdwg.mxu0
    %2708 = vmatpush.bf16.msra.mxu0 0
    %2709 = vmatpush.bf16.msra.mxu0 0
    %2710 = vmatpush.bf16.msra.mxu0 0
    %2711 = vmatpush.bf16.msra.mxu0 0
    %2712 = vmatpush.bf16.msra.mxu0 0
    %2713 = vmatpush.bf16.msra.mxu0 0
    %2714 = vmatpush.bf16.msra.mxu0 %v2639
    %2715 = vmatpush.bf16.msra.mxu0 %v2637
    %2716 = vmatmul.bf16.gmra.mxu0 %v2678
    %v2717 = vpop.f32.mrf.mxu0
    %v2718 = vadd.f32 %v2704, %v2717
    %v2719 = vpop.f32.mrf.mxu0
    %v2720 = vadd.f32 %v2706, %v2719
    %2721 = vdwg.mxu0
    %2722 = vmatpush.bf16.msra.mxu0 %v2620
    %2723 = vmatpush.bf16.msra.mxu0 %v2618
    %2724 = vmatpush.bf16.msra.mxu0 %v2616
    %2725 = vmatpush.bf16.msra.mxu0 %v2614
    %2726 = vmatpush.bf16.msra.mxu0 %v2612
    %2727 = vmatpush.bf16.msra.mxu0 %v2610
    %2728 = vmatpush.bf16.msra.mxu0 %v2608
    %2729 = vmatpush.bf16.msra.mxu0 %v2606
    %2730 = vmatmul.bf16.gmra.mxu0 %v2457
    %v2731 = vpop.f32.mrf.mxu0
    %v2732 = vadd.f32 0.0, %v2731
    %v2733 = vpop.f32.mrf.mxu0
    %v2734 = vadd.f32 0.0, %v2733
    %2735 = vdwg.mxu0
    %2736 = vmatpush.bf16.msra.mxu0 %v2636
    %2737 = vmatpush.bf16.msra.mxu0 %v2634
    %2738 = vmatpush.bf16.msra.mxu0 %v2632
    %2739 = vmatpush.bf16.msra.mxu0 %v2630
    %2740 = vmatpush.bf16.msra.mxu0 %v2628
    %2741 = vmatpush.bf16.msra.mxu0 %v2626
    %2742 = vmatpush.bf16.msra.mxu0 %v2624
    %2743 = vmatpush.bf16.msra.mxu0 %v2622
    %2744 = vmatmul.bf16.gmra.mxu0 %v2458
    %v2745 = vpop.f32.mrf.mxu0
    %v2746 = vadd.f32 %v2732, %v2745
    %v2747 = vpop.f32.mrf.mxu0
    %v2748 = vadd.f32 %v2734, %v2747
    %2749 = vdwg.mxu0
    %2750 = vmatpush.bf16.msra.mxu0 0
    %2751 = vmatpush.bf16.msra.mxu0 0
    %2752 = vmatpush.bf16.msra.mxu0 0
    %2753 = vmatpush.bf16.msra.mxu0 0
    %2754 = vmatpush.bf16.msra.mxu0 0
    %2755 = vmatpush.bf16.msra.mxu0 0
    %2756 = vmatpush.bf16.msra.mxu0 %v2640
    %2757 = vmatpush.bf16.msra.mxu0 %v2638
    %2758 = vmatmul.bf16.gmra.mxu0 %v2678
    %v2759 = vpop.f32.mrf.mxu0
    %v2760 = vadd.f32 %v2746, %v2759
    %v2761 = vpop.f32.mrf.mxu0
    %v2762 = vadd.f32 %v2748, %v2761
    %2763 = vdwg.mxu0
    %v2764 = vadd.f32 %v2358, %v2718
    %v2765 = vadd.f32 %v2400, %v2760
    %v2766 = vadd.f32 %v2360, %v2720
    %v2767 = vadd.f32 %v2402, %v2762
    %s2768 = scalar_lea.vmem %s5, 24
    %v2769 = vld [vmem:[%s2768] sm:$0xf]
    %v2770 = vld [vmem:[%s2768 + $0x4] sm:$0x7]
    %v2773 = vunpack.c.l.b16 %v2769
    %v2774 = vunpack.c.l.b16 %v2770
    %v2775 = vpack.c.b16 %v2774, %v2773
    %v2777 = vsel %vm1681, %v2775, 0
    %2779 = vmatpush.bf16.msra.mxu0 0
    %2780 = vmatpush.bf16.msra.mxu0 0
    %2781 = vmatpush.bf16.msra.mxu0 0
    %2782 = vmatpush.bf16.msra.mxu0 0
    %2783 = vmatpush.bf16.msra.mxu0 0
    %2784 = vmatpush.bf16.msra.mxu0 %v1687
    %2785 = vmatpush.bf16.msra.mxu0 %v1668
    %2786 = vmatpush.bf16.msra.mxu0 %v1665
    %2787 = vmatmul.bf16.gmra.mxu0 %v2777
    %v2788 = vpop.f32.mrf.mxu0
    %v2789 = vadd.f32 0.0, %v2788
    %v2790 = vpop.f32.mrf.mxu0
    %v2791 = vadd.f32 0.0, %v2790
    %2792 = vdwg.mxu0
    %2793 = vmatpush.bf16.msra.mxu0 0
    %2794 = vmatpush.bf16.msra.mxu0 0
    %2795 = vmatpush.bf16.msra.mxu0 0
    %2796 = vmatpush.bf16.msra.mxu0 0
    %2797 = vmatpush.bf16.msra.mxu0 0
    %2798 = vmatpush.bf16.msra.mxu0 %v1690
    %2799 = vmatpush.bf16.msra.mxu0 %v1669
    %2800 = vmatpush.bf16.msra.mxu0 %v1666
    %2801 = vmatmul.bf16.gmra.mxu0 %v2777
    %v2802 = vpop.f32.mrf.mxu0
    %v2803 = vadd.f32 0.0, %v2802
    %v2804 = vpop.f32.mrf.mxu0
    %v2805 = vadd.f32 0.0, %v2804
    %2806 = vdwg.mxu0
    %2807 = vmatpush.bf16.msra.mxu0 0
    %2808 = vmatpush.bf16.msra.mxu0 0
    %2809 = vmatpush.bf16.msra.mxu0 0
    %2810 = vmatpush.bf16.msra.mxu0 0
    %2811 = vmatpush.bf16.msra.mxu0 0
    %2812 = vmatpush.bf16.msra.mxu0 %v1693
    %2813 = vmatpush.bf16.msra.mxu0 %v1670
    %2814 = vmatpush.bf16.msra.mxu0 %v1667
    %2815 = vmatmul.bf16.gmra.mxu0 %v2777
    %v2816 = vpop.f32.mrf.mxu0
    %v2817 = vadd.f32 0.0, %v2816
    %v2818 = vpop.f32.mrf.mxu0
    %v2819 = vadd.f32 0.0, %v2818
    %2820 = vdwg.mxu0
    %v2821 = vpack.c.bf16 %v2791, %v2789
    %v2822 = vpack.c.bf16 %v2805, %v2803
    %v2823 = vpack.c.bf16 %v2819, %v2817
    %s2824 = scalar_lea.vmem %s6, 864
    %v2825 = vld [vmem:[%s2824] sm:$0xff]
    %v2826 = vld [vmem:[%s2824 + $0x8] sm:$0xff]
    %v2827 = vld [vmem:[%s2824 + $0x10] sm:$0xff]
    %v2828 = vld [vmem:[%s2824 + $0x18] sm:$0xff]
    %v2829 = vld [vmem:[%s2824 + $0x20] sm:$0xff]
    %v2830 = vld [vmem:[%s2824 + $0x28] sm:$0xff]
    %v2831 = vld [vmem:[%s2824 + $0x30] sm:$0xff]
    %v2832 = vld [vmem:[%s2824 + $0x38] sm:$0xff]
    %v2833 = vld [vmem:[%s2824 + $0x40] sm:$0xff]
    %v2834 = vld [vmem:[%s2824 + $0x48] sm:$0xff]
    %v2835 = vld [vmem:[%s2824 + $0x50] sm:$0xff]
    %v2836 = vld [vmem:[%s2824 + $0x58] sm:$0xff]
    %v2837 = vld [vmem:[%s2824 + $0x60] sm:$0xff]
    %v2838 = vld [vmem:[%s2824 + $0x68] sm:$0xff]
    %v2839 = vld [vmem:[%s2824 + $0x70] sm:$0xff]
    %v2840 = vld [vmem:[%s2824 + $0x78] sm:$0xff]
    %v2841 = vld [vmem:[%s2824 + $0x80] sm:$0xff]
    %v2842 = vld [vmem:[%s2824 + $0x88] sm:$0xff]
    %v2843 = vld [vmem:[%s2824 + $0x90] sm:$0xff]
    %v2844 = vld [vmem:[%s2824 + $0x98] sm:$0xff]
    %v2845 = vld [vmem:[%s2824 + $0xa0] sm:$0xff]
    %v2846 = vld [vmem:[%s2824 + $0xa8] sm:$0xff]
    %v2847 = vld [vmem:[%s2824 + $0xb0] sm:$0xff]
    %v2848 = vld [vmem:[%s2824 + $0xb8] sm:$0xff]
    %v2849 = vld [vmem:[%s2824 + $0xc0] sm:$0xff]
    %v2850 = vld [vmem:[%s2824 + $0xc8] sm:$0xff]
    %v2851 = vld [vmem:[%s2824 + $0xd0] sm:$0xff]
    %v2852 = vld [vmem:[%s2824 + $0xd8] sm:$0xff]
    %v2853 = vld [vmem:[%s2824 + $0xe0] sm:$0xff]
    %v2854 = vld [vmem:[%s2824 + $0xe8] sm:$0xff]
    %v2855 = vld [vmem:[%s2824 + $0xf0] sm:$0xff]
    %v2856 = vld [vmem:[%s2824 + $0xf8] sm:$0xff]
    %v2857 = vld [vmem:[%s2824 + $0x100] sm:$0xff]
    %v2858 = vld [vmem:[%s2824 + $0x108] sm:$0xff]
    %v2859 = vld [vmem:[%s2824 + $0x110] sm:$0xff]
    %v2860 = vld [vmem:[%s2824 + $0x118] sm:$0xff]
    %v2897 = vunpack.c.l.b16 %v2825
    %v2898 = vunpack.c.h.b16 %v2825
    %v2899 = vunpack.c.l.b16 %v2826
    %v2900 = vunpack.c.h.b16 %v2826
    %v2901 = vunpack.c.l.b16 %v2827
    %v2902 = vunpack.c.h.b16 %v2827
    %v2903 = vunpack.c.l.b16 %v2828
    %v2904 = vunpack.c.h.b16 %v2828
    %v2905 = vunpack.c.l.b16 %v2829
    %v2906 = vunpack.c.h.b16 %v2829
    %v2907 = vunpack.c.l.b16 %v2830
    %v2908 = vunpack.c.h.b16 %v2830
    %v2909 = vunpack.c.l.b16 %v2831
    %v2910 = vunpack.c.h.b16 %v2831
    %v2911 = vunpack.c.l.b16 %v2832
    %v2912 = vunpack.c.h.b16 %v2832
    %v2913 = vunpack.c.l.b16 %v2833
    %v2914 = vunpack.c.h.b16 %v2833
    %v2915 = vunpack.c.l.b16 %v2834
    %v2916 = vunpack.c.h.b16 %v2834
    %v2917 = vunpack.c.l.b16 %v2835
    %v2918 = vunpack.c.h.b16 %v2835
    %v2919 = vunpack.c.l.b16 %v2836
    %v2920 = vunpack.c.h.b16 %v2836
    %v2921 = vunpack.c.l.b16 %v2837
    %v2922 = vunpack.c.h.b16 %v2837
    %v2923 = vunpack.c.l.b16 %v2838
    %v2924 = vunpack.c.h.b16 %v2838
    %v2925 = vunpack.c.l.b16 %v2839
    %v2926 = vunpack.c.h.b16 %v2839
    %v2927 = vunpack.c.l.b16 %v2840
    %v2928 = vunpack.c.h.b16 %v2840
    %v2929 = vunpack.c.l.b16 %v2841
    %v2930 = vunpack.c.h.b16 %v2841
    %v2931 = vunpack.c.l.b16 %v2842
    %v2932 = vunpack.c.h.b16 %v2842
    %v2933 = vunpack.c.l.b16 %v2843
    %v2934 = vunpack.c.h.b16 %v2843
    %v2935 = vunpack.c.l.b16 %v2844
    %v2936 = vunpack.c.h.b16 %v2844
    %v2937 = vunpack.c.l.b16 %v2845
    %v2938 = vunpack.c.h.b16 %v2845
    %v2939 = vunpack.c.l.b16 %v2846
    %v2940 = vunpack.c.h.b16 %v2846
    %v2941 = vunpack.c.l.b16 %v2847
    %v2942 = vunpack.c.h.b16 %v2847
    %v2943 = vunpack.c.l.b16 %v2848
    %v2944 = vunpack.c.h.b16 %v2848
    %v2945 = vunpack.c.l.b16 %v2849
    %v2946 = vunpack.c.h.b16 %v2849
    %v2947 = vunpack.c.l.b16 %v2850
    %v2948 = vunpack.c.h.b16 %v2850
    %v2949 = vunpack.c.l.b16 %v2851
    %v2950 = vunpack.c.h.b16 %v2851
    %v2951 = vunpack.c.l.b16 %v2852
    %v2952 = vunpack.c.h.b16 %v2852
    %v2953 = vunpack.c.l.b16 %v2853
    %v2954 = vunpack.c.h.b16 %v2853
    %v2955 = vunpack.c.l.b16 %v2854
    %v2956 = vunpack.c.h.b16 %v2854
    %v2957 = vunpack.c.l.b16 %v2855
    %v2958 = vunpack.c.h.b16 %v2855
    %v2959 = vunpack.c.l.b16 %v2856
    %v2960 = vunpack.c.h.b16 %v2856
    %v2961 = vunpack.c.l.b16 %v2857
    %v2962 = vunpack.c.h.b16 %v2857
    %v2963 = vunpack.c.l.b16 %v2858
    %v2964 = vunpack.c.h.b16 %v2858
    %v2965 = vunpack.c.l.b16 %v2859
    %v2966 = vunpack.c.h.b16 %v2859
    %v2967 = vunpack.c.l.b16 %v2860
    %v2968 = vunpack.c.h.b16 %v2860
    %v2969 = vpack.c.b16 %v2899, %v2897
    %v2970 = vpack.c.b16 %v2900, %v2898
    %v2971 = vpack.c.b16 %v2903, %v2901
    %v2972 = vpack.c.b16 %v2904, %v2902
    %v2973 = vpack.c.b16 %v2907, %v2905
    %v2974 = vpack.c.b16 %v2908, %v2906
    %v2975 = vpack.c.b16 %v2911, %v2909
    %v2976 = vpack.c.b16 %v2912, %v2910
    %v2977 = vpack.c.b16 %v2915, %v2913
    %v2978 = vpack.c.b16 %v2916, %v2914
    %v2979 = vpack.c.b16 %v2919, %v2917
    %v2980 = vpack.c.b16 %v2920, %v2918
    %v2981 = vpack.c.b16 %v2923, %v2921
    %v2982 = vpack.c.b16 %v2924, %v2922
    %v2983 = vpack.c.b16 %v2927, %v2925
    %v2984 = vpack.c.b16 %v2928, %v2926
    %v2985 = vpack.c.b16 %v2931, %v2929
    %v2986 = vpack.c.b16 %v2932, %v2930
    %v2987 = vpack.c.b16 %v2935, %v2933
    %v2988 = vpack.c.b16 %v2936, %v2934
    %v2989 = vpack.c.b16 %v2939, %v2937
    %v2990 = vpack.c.b16 %v2940, %v2938
    %v2991 = vpack.c.b16 %v2943, %v2941
    %v2992 = vpack.c.b16 %v2944, %v2942
    %v2993 = vpack.c.b16 %v2947, %v2945
    %v2994 = vpack.c.b16 %v2948, %v2946
    %v2995 = vpack.c.b16 %v2951, %v2949
    %v2996 = vpack.c.b16 %v2952, %v2950
    %v2997 = vpack.c.b16 %v2955, %v2953
    %v2998 = vpack.c.b16 %v2956, %v2954
    %v2999 = vpack.c.b16 %v2959, %v2957
    %v3000 = vpack.c.b16 %v2960, %v2958
    %v3001 = vpack.c.b16 %v2963, %v2961
    %v3002 = vpack.c.b16 %v2964, %v2962
    %v3003 = vpack.c.b16 %v2967, %v2965
    %v3004 = vpack.c.b16 %v2968, %v2966
    %v3042 = vsel %vm2049, %v2823, 0
    %3044 = vmatpush.bf16.msra.mxu0 %v2983
    %3045 = vmatpush.bf16.msra.mxu0 %v2981
    %3046 = vmatpush.bf16.msra.mxu0 %v2979
    %3047 = vmatpush.bf16.msra.mxu0 %v2977
    %3048 = vmatpush.bf16.msra.mxu0 %v2975
    %3049 = vmatpush.bf16.msra.mxu0 %v2973
    %3050 = vmatpush.bf16.msra.mxu0 %v2971
    %3051 = vmatpush.bf16.msra.mxu0 %v2969
    %3052 = vmatmul.bf16.gmra.mxu0 %v2821
    %v3053 = vpop.f32.mrf.mxu0
    %v3054 = vadd.f32 0.0, %v3053
    %v3055 = vpop.f32.mrf.mxu0
    %v3056 = vadd.f32 0.0, %v3055
    %3057 = vdwg.mxu0
    %3058 = vmatpush.bf16.msra.mxu0 %v2999
    %3059 = vmatpush.bf16.msra.mxu0 %v2997
    %3060 = vmatpush.bf16.msra.mxu0 %v2995
    %3061 = vmatpush.bf16.msra.mxu0 %v2993
    %3062 = vmatpush.bf16.msra.mxu0 %v2991
    %3063 = vmatpush.bf16.msra.mxu0 %v2989
    %3064 = vmatpush.bf16.msra.mxu0 %v2987
    %3065 = vmatpush.bf16.msra.mxu0 %v2985
    %3066 = vmatmul.bf16.gmra.mxu0 %v2822
    %v3067 = vpop.f32.mrf.mxu0
    %v3068 = vadd.f32 %v3054, %v3067
    %v3069 = vpop.f32.mrf.mxu0
    %v3070 = vadd.f32 %v3056, %v3069
    %3071 = vdwg.mxu0
    %3072 = vmatpush.bf16.msra.mxu0 0
    %3073 = vmatpush.bf16.msra.mxu0 0
    %3074 = vmatpush.bf16.msra.mxu0 0
    %3075 = vmatpush.bf16.msra.mxu0 0
    %3076 = vmatpush.bf16.msra.mxu0 0
    %3077 = vmatpush.bf16.msra.mxu0 0
    %3078 = vmatpush.bf16.msra.mxu0 %v3003
    %3079 = vmatpush.bf16.msra.mxu0 %v3001
    %3080 = vmatmul.bf16.gmra.mxu0 %v3042
    %v3081 = vpop.f32.mrf.mxu0
    %v3082 = vadd.f32 %v3068, %v3081
    %v3083 = vpop.f32.mrf.mxu0
    %v3084 = vadd.f32 %v3070, %v3083
    %3085 = vdwg.mxu0
    %3086 = vmatpush.bf16.msra.mxu0 %v2984
    %3087 = vmatpush.bf16.msra.mxu0 %v2982
    %3088 = vmatpush.bf16.msra.mxu0 %v2980
    %3089 = vmatpush.bf16.msra.mxu0 %v2978
    %3090 = vmatpush.bf16.msra.mxu0 %v2976
    %3091 = vmatpush.bf16.msra.mxu0 %v2974
    %3092 = vmatpush.bf16.msra.mxu0 %v2972
    %3093 = vmatpush.bf16.msra.mxu0 %v2970
    %3094 = vmatmul.bf16.gmra.mxu0 %v2821
    %v3095 = vpop.f32.mrf.mxu0
    %v3096 = vadd.f32 0.0, %v3095
    %v3097 = vpop.f32.mrf.mxu0
    %v3098 = vadd.f32 0.0, %v3097
    %3099 = vdwg.mxu0
    %3100 = vmatpush.bf16.msra.mxu0 %v3000
    %3101 = vmatpush.bf16.msra.mxu0 %v2998
    %3102 = vmatpush.bf16.msra.mxu0 %v2996
    %3103 = vmatpush.bf16.msra.mxu0 %v2994
    %3104 = vmatpush.bf16.msra.mxu0 %v2992
    %3105 = vmatpush.bf16.msra.mxu0 %v2990
    %3106 = vmatpush.bf16.msra.mxu0 %v2988
    %3107 = vmatpush.bf16.msra.mxu0 %v2986
    %3108 = vmatmul.bf16.gmra.mxu0 %v2822
    %v3109 = vpop.f32.mrf.mxu0
    %v3110 = vadd.f32 %v3096, %v3109
    %v3111 = vpop.f32.mrf.mxu0
    %v3112 = vadd.f32 %v3098, %v3111
    %3113 = vdwg.mxu0
    %3114 = vmatpush.bf16.msra.mxu0 0
    %3115 = vmatpush.bf16.msra.mxu0 0
    %3116 = vmatpush.bf16.msra.mxu0 0
    %3117 = vmatpush.bf16.msra.mxu0 0
    %3118 = vmatpush.bf16.msra.mxu0 0
    %3119 = vmatpush.bf16.msra.mxu0 0
    %3120 = vmatpush.bf16.msra.mxu0 %v3004
    %3121 = vmatpush.bf16.msra.mxu0 %v3002
    %3122 = vmatmul.bf16.gmra.mxu0 %v3042
    %v3123 = vpop.f32.mrf.mxu0
    %v3124 = vadd.f32 %v3110, %v3123
    %v3125 = vpop.f32.mrf.mxu0
    %v3126 = vadd.f32 %v3112, %v3125
    %3127 = vdwg.mxu0
    %v3128 = vadd.f32 %v2764, %v3082
    %v3129 = vadd.f32 %v2765, %v3124
    %v3130 = vadd.f32 %v2766, %v3084
    %v3131 = vadd.f32 %v2767, %v3126
    %s3132 = scalar_lea.vmem %s5, 32
    %v3133 = vld [vmem:[%s3132] sm:$0xf]
    %v3134 = vld [vmem:[%s3132 + $0x4] sm:$0x7]
    %v3137 = vunpack.c.l.b16 %v3133
    %v3138 = vunpack.c.l.b16 %v3134
    %v3139 = vpack.c.b16 %v3138, %v3137
    %v3141 = vsel %vm1681, %v3139, 0
    %3143 = vmatpush.bf16.msra.mxu0 0
    %3144 = vmatpush.bf16.msra.mxu0 0
    %3145 = vmatpush.bf16.msra.mxu0 0
    %3146 = vmatpush.bf16.msra.mxu0 0
    %3147 = vmatpush.bf16.msra.mxu0 0
    %3148 = vmatpush.bf16.msra.mxu0 %v1687
    %3149 = vmatpush.bf16.msra.mxu0 %v1668
    %3150 = vmatpush.bf16.msra.mxu0 %v1665
    %3151 = vmatmul.bf16.gmra.mxu0 %v3141
    %v3152 = vpop.f32.mrf.mxu0
    %v3153 = vadd.f32 0.0, %v3152
    %v3154 = vpop.f32.mrf.mxu0
    %v3155 = vadd.f32 0.0, %v3154
    %3156 = vdwg.mxu0
    %3157 = vmatpush.bf16.msra.mxu0 0
    %3158 = vmatpush.bf16.msra.mxu0 0
    %3159 = vmatpush.bf16.msra.mxu0 0
    %3160 = vmatpush.bf16.msra.mxu0 0
    %3161 = vmatpush.bf16.msra.mxu0 0
    %3162 = vmatpush.bf16.msra.mxu0 %v1690
    %3163 = vmatpush.bf16.msra.mxu0 %v1669
    %3164 = vmatpush.bf16.msra.mxu0 %v1666
    %3165 = vmatmul.bf16.gmra.mxu0 %v3141
    %v3166 = vpop.f32.mrf.mxu0
    %v3167 = vadd.f32 0.0, %v3166
    %v3168 = vpop.f32.mrf.mxu0
    %v3169 = vadd.f32 0.0, %v3168
    %3170 = vdwg.mxu0
    %3171 = vmatpush.bf16.msra.mxu0 0
    %3172 = vmatpush.bf16.msra.mxu0 0
    %3173 = vmatpush.bf16.msra.mxu0 0
    %3174 = vmatpush.bf16.msra.mxu0 0
    %3175 = vmatpush.bf16.msra.mxu0 0
    %3176 = vmatpush.bf16.msra.mxu0 %v1693
    %3177 = vmatpush.bf16.msra.mxu0 %v1670
    %3178 = vmatpush.bf16.msra.mxu0 %v1667
    %3179 = vmatmul.bf16.gmra.mxu0 %v3141
    %v3180 = vpop.f32.mrf.mxu0
    %v3181 = vadd.f32 0.0, %v3180
    %v3182 = vpop.f32.mrf.mxu0
    %v3183 = vadd.f32 0.0, %v3182
    %3184 = vdwg.mxu0
    %v3185 = vpack.c.bf16 %v3155, %v3153
    %v3186 = vpack.c.bf16 %v3169, %v3167
    %v3187 = vpack.c.bf16 %v3183, %v3181
    %s3188 = scalar_lea.vmem %s6, 1152
    %v3189 = vld [vmem:[%s3188] sm:$0xff]
    %v3190 = vld [vmem:[%s3188 + $0x8] sm:$0xff]
    %v3191 = vld [vmem:[%s3188 + $0x10] sm:$0xff]
    %v3192 = vld [vmem:[%s3188 + $0x18] sm:$0xff]
    %v3193 = vld [vmem:[%s3188 + $0x20] sm:$0xff]
    %v3194 = vld [vmem:[%s3188 + $0x28] sm:$0xff]
    %v3195 = vld [vmem:[%s3188 + $0x30] sm:$0xff]
    %v3196 = vld [vmem:[%s3188 + $0x38] sm:$0xff]
    %v3197 = vld [vmem:[%s3188 + $0x40] sm:$0xff]
    %v3198 = vld [vmem:[%s3188 + $0x48] sm:$0xff]
    %v3199 = vld [vmem:[%s3188 + $0x50] sm:$0xff]
    %v3200 = vld [vmem:[%s3188 + $0x58] sm:$0xff]
    %v3201 = vld [vmem:[%s3188 + $0x60] sm:$0xff]
    %v3202 = vld [vmem:[%s3188 + $0x68] sm:$0xff]
    %v3203 = vld [vmem:[%s3188 + $0x70] sm:$0xff]
    %v3204 = vld [vmem:[%s3188 + $0x78] sm:$0xff]
    %v3205 = vld [vmem:[%s3188 + $0x80] sm:$0xff]
    %v3206 = vld [vmem:[%s3188 + $0x88] sm:$0xff]
    %v3207 = vld [vmem:[%s3188 + $0x90] sm:$0xff]
    %v3208 = vld [vmem:[%s3188 + $0x98] sm:$0xff]
    %v3209 = vld [vmem:[%s3188 + $0xa0] sm:$0xff]
    %v3210 = vld [vmem:[%s3188 + $0xa8] sm:$0xff]
    %v3211 = vld [vmem:[%s3188 + $0xb0] sm:$0xff]
    %v3212 = vld [vmem:[%s3188 + $0xb8] sm:$0xff]
    %v3213 = vld [vmem:[%s3188 + $0xc0] sm:$0xff]
    %v3214 = vld [vmem:[%s3188 + $0xc8] sm:$0xff]
    %v3215 = vld [vmem:[%s3188 + $0xd0] sm:$0xff]
    %v3216 = vld [vmem:[%s3188 + $0xd8] sm:$0xff]
    %v3217 = vld [vmem:[%s3188 + $0xe0] sm:$0xff]
    %v3218 = vld [vmem:[%s3188 + $0xe8] sm:$0xff]
    %v3219 = vld [vmem:[%s3188 + $0xf0] sm:$0xff]
    %v3220 = vld [vmem:[%s3188 + $0xf8] sm:$0xff]
    %v3221 = vld [vmem:[%s3188 + $0x100] sm:$0xff]
    %v3222 = vld [vmem:[%s3188 + $0x108] sm:$0xff]
    %v3223 = vld [vmem:[%s3188 + $0x110] sm:$0xff]
    %v3224 = vld [vmem:[%s3188 + $0x118] sm:$0xff]
    %v3261 = vunpack.c.l.b16 %v3189
    %v3262 = vunpack.c.h.b16 %v3189
    %v3263 = vunpack.c.l.b16 %v3190
    %v3264 = vunpack.c.h.b16 %v3190
    %v3265 = vunpack.c.l.b16 %v3191
    %v3266 = vunpack.c.h.b16 %v3191
    %v3267 = vunpack.c.l.b16 %v3192
    %v3268 = vunpack.c.h.b16 %v3192
    %v3269 = vunpack.c.l.b16 %v3193
    %v3270 = vunpack.c.h.b16 %v3193
    %v3271 = vunpack.c.l.b16 %v3194
    %v3272 = vunpack.c.h.b16 %v3194
    %v3273 = vunpack.c.l.b16 %v3195
    %v3274 = vunpack.c.h.b16 %v3195
    %v3275 = vunpack.c.l.b16 %v3196
    %v3276 = vunpack.c.h.b16 %v3196
    %v3277 = vunpack.c.l.b16 %v3197
    %v3278 = vunpack.c.h.b16 %v3197
    %v3279 = vunpack.c.l.b16 %v3198
    %v3280 = vunpack.c.h.b16 %v3198
    %v3281 = vunpack.c.l.b16 %v3199
    %v3282 = vunpack.c.h.b16 %v3199
    %v3283 = vunpack.c.l.b16 %v3200
    %v3284 = vunpack.c.h.b16 %v3200
    %v3285 = vunpack.c.l.b16 %v3201
    %v3286 = vunpack.c.h.b16 %v3201
    %v3287 = vunpack.c.l.b16 %v3202
    %v3288 = vunpack.c.h.b16 %v3202
    %v3289 = vunpack.c.l.b16 %v3203
    %v3290 = vunpack.c.h.b16 %v3203
    %v3291 = vunpack.c.l.b16 %v3204
    %v3292 = vunpack.c.h.b16 %v3204
    %v3293 = vunpack.c.l.b16 %v3205
    %v3294 = vunpack.c.h.b16 %v3205
    %v3295 = vunpack.c.l.b16 %v3206
    %v3296 = vunpack.c.h.b16 %v3206
    %v3297 = vunpack.c.l.b16 %v3207
    %v3298 = vunpack.c.h.b16 %v3207
    %v3299 = vunpack.c.l.b16 %v3208
    %v3300 = vunpack.c.h.b16 %v3208
    %v3301 = vunpack.c.l.b16 %v3209
    %v3302 = vunpack.c.h.b16 %v3209
    %v3303 = vunpack.c.l.b16 %v3210
    %v3304 = vunpack.c.h.b16 %v3210
    %v3305 = vunpack.c.l.b16 %v3211
    %v3306 = vunpack.c.h.b16 %v3211
    %v3307 = vunpack.c.l.b16 %v3212
    %v3308 = vunpack.c.h.b16 %v3212
    %v3309 = vunpack.c.l.b16 %v3213
    %v3310 = vunpack.c.h.b16 %v3213
    %v3311 = vunpack.c.l.b16 %v3214
    %v3312 = vunpack.c.h.b16 %v3214
    %v3313 = vunpack.c.l.b16 %v3215
    %v3314 = vunpack.c.h.b16 %v3215
    %v3315 = vunpack.c.l.b16 %v3216
    %v3316 = vunpack.c.h.b16 %v3216
    %v3317 = vunpack.c.l.b16 %v3217
    %v3318 = vunpack.c.h.b16 %v3217
    %v3319 = vunpack.c.l.b16 %v3218
    %v3320 = vunpack.c.h.b16 %v3218
    %v3321 = vunpack.c.l.b16 %v3219
    %v3322 = vunpack.c.h.b16 %v3219
    %v3323 = vunpack.c.l.b16 %v3220
    %v3324 = vunpack.c.h.b16 %v3220
    %v3325 = vunpack.c.l.b16 %v3221
    %v3326 = vunpack.c.h.b16 %v3221
    %v3327 = vunpack.c.l.b16 %v3222
    %v3328 = vunpack.c.h.b16 %v3222
    %v3329 = vunpack.c.l.b16 %v3223
    %v3330 = vunpack.c.h.b16 %v3223
    %v3331 = vunpack.c.l.b16 %v3224
    %v3332 = vunpack.c.h.b16 %v3224
    %v3333 = vpack.c.b16 %v3263, %v3261
    %v3334 = vpack.c.b16 %v3264, %v3262
    %v3335 = vpack.c.b16 %v3267, %v3265
    %v3336 = vpack.c.b16 %v3268, %v3266
    %v3337 = vpack.c.b16 %v3271, %v3269
    %v3338 = vpack.c.b16 %v3272, %v3270
    %v3339 = vpack.c.b16 %v3275, %v3273
    %v3340 = vpack.c.b16 %v3276, %v3274
    %v3341 = vpack.c.b16 %v3279, %v3277
    %v3342 = vpack.c.b16 %v3280, %v3278
    %v3343 = vpack.c.b16 %v3283, %v3281
    %v3344 = vpack.c.b16 %v3284, %v3282
    %v3345 = vpack.c.b16 %v3287, %v3285
    %v3346 = vpack.c.b16 %v3288, %v3286
    %v3347 = vpack.c.b16 %v3291, %v3289
    %v3348 = vpack.c.b16 %v3292, %v3290
    %v3349 = vpack.c.b16 %v3295, %v3293
    %v3350 = vpack.c.b16 %v3296, %v3294
    %v3351 = vpack.c.b16 %v3299, %v3297
    %v3352 = vpack.c.b16 %v3300, %v3298
    %v3353 = vpack.c.b16 %v3303, %v3301
    %v3354 = vpack.c.b16 %v3304, %v3302
    %v3355 = vpack.c.b16 %v3307, %v3305
    %v3356 = vpack.c.b16 %v3308, %v3306
    %v3357 = vpack.c.b16 %v3311, %v3309
    %v3358 = vpack.c.b16 %v3312, %v3310
    %v3359 = vpack.c.b16 %v3315, %v3313
    %v3360 = vpack.c.b16 %v3316, %v3314
    %v3361 = vpack.c.b16 %v3319, %v3317
    %v3362 = vpack.c.b16 %v3320, %v3318
    %v3363 = vpack.c.b16 %v3323, %v3321
    %v3364 = vpack.c.b16 %v3324, %v3322
    %v3365 = vpack.c.b16 %v3327, %v3325
    %v3366 = vpack.c.b16 %v3328, %v3326
    %v3367 = vpack.c.b16 %v3331, %v3329
    %v3368 = vpack.c.b16 %v3332, %v3330
    %v3406 = vsel %vm2049, %v3187, 0
    %3408 = vmatpush.bf16.msra.mxu0 %v3347
    %3409 = vmatpush.bf16.msra.mxu0 %v3345
    %3410 = vmatpush.bf16.msra.mxu0 %v3343
    %3411 = vmatpush.bf16.msra.mxu0 %v3341
    %3412 = vmatpush.bf16.msra.mxu0 %v3339
    %3413 = vmatpush.bf16.msra.mxu0 %v3337
    %3414 = vmatpush.bf16.msra.mxu0 %v3335
    %3415 = vmatpush.bf16.msra.mxu0 %v3333
    %3416 = vmatmul.bf16.gmra.mxu0 %v3185
    %v3417 = vpop.f32.mrf.mxu0
    %v3418 = vadd.f32 0.0, %v3417
    %v3419 = vpop.f32.mrf.mxu0
    %v3420 = vadd.f32 0.0, %v3419
    %3421 = vdwg.mxu0
    %3422 = vmatpush.bf16.msra.mxu0 %v3363
    %3423 = vmatpush.bf16.msra.mxu0 %v3361
    %3424 = vmatpush.bf16.msra.mxu0 %v3359
    %3425 = vmatpush.bf16.msra.mxu0 %v3357
    %3426 = vmatpush.bf16.msra.mxu0 %v3355
    %3427 = vmatpush.bf16.msra.mxu0 %v3353
    %3428 = vmatpush.bf16.msra.mxu0 %v3351
    %3429 = vmatpush.bf16.msra.mxu0 %v3349
    %3430 = vmatmul.bf16.gmra.mxu0 %v3186
    %v3431 = vpop.f32.mrf.mxu0
    %v3432 = vadd.f32 %v3418, %v3431
    %v3433 = vpop.f32.mrf.mxu0
    %v3434 = vadd.f32 %v3420, %v3433
    %3435 = vdwg.mxu0
    %3436 = vmatpush.bf16.msra.mxu0 0
    %3437 = vmatpush.bf16.msra.mxu0 0
    %3438 = vmatpush.bf16.msra.mxu0 0
    %3439 = vmatpush.bf16.msra.mxu0 0
    %3440 = vmatpush.bf16.msra.mxu0 0
    %3441 = vmatpush.bf16.msra.mxu0 0
    %3442 = vmatpush.bf16.msra.mxu0 %v3367
    %3443 = vmatpush.bf16.msra.mxu0 %v3365
    %3444 = vmatmul.bf16.gmra.mxu0 %v3406
    %v3445 = vpop.f32.mrf.mxu0
    %v3446 = vadd.f32 %v3432, %v3445
    %v3447 = vpop.f32.mrf.mxu0
    %v3448 = vadd.f32 %v3434, %v3447
    %3449 = vdwg.mxu0
    %3450 = vmatpush.bf16.msra.mxu0 %v3348
    %3451 = vmatpush.bf16.msra.mxu0 %v3346
    %3452 = vmatpush.bf16.msra.mxu0 %v3344
    %3453 = vmatpush.bf16.msra.mxu0 %v3342
    %3454 = vmatpush.bf16.msra.mxu0 %v3340
    %3455 = vmatpush.bf16.msra.mxu0 %v3338
    %3456 = vmatpush.bf16.msra.mxu0 %v3336
    %3457 = vmatpush.bf16.msra.mxu0 %v3334
    %3458 = vmatmul.bf16.gmra.mxu0 %v3185
    %v3459 = vpop.f32.mrf.mxu0
    %v3460 = vadd.f32 0.0, %v3459
    %v3461 = vpop.f32.mrf.mxu0
    %v3462 = vadd.f32 0.0, %v3461
    %3463 = vdwg.mxu0
    %3464 = vmatpush.bf16.msra.mxu0 %v3364
    %3465 = vmatpush.bf16.msra.mxu0 %v3362
    %3466 = vmatpush.bf16.msra.mxu0 %v3360
    %3467 = vmatpush.bf16.msra.mxu0 %v3358
    %3468 = vmatpush.bf16.msra.mxu0 %v3356
    %3469 = vmatpush.bf16.msra.mxu0 %v3354
    %3470 = vmatpush.bf16.msra.mxu0 %v3352
    %3471 = vmatpush.bf16.msra.mxu0 %v3350
    %3472 = vmatmul.bf16.gmra.mxu0 %v3186
    %v3473 = vpop.f32.mrf.mxu0
    %v3474 = vadd.f32 %v3460, %v3473
    %v3475 = vpop.f32.mrf.mxu0
    %v3476 = vadd.f32 %v3462, %v3475
    %3477 = vdwg.mxu0
    %3478 = vmatpush.bf16.msra.mxu0 0
    %3479 = vmatpush.bf16.msra.mxu0 0
    %3480 = vmatpush.bf16.msra.mxu0 0
    %3481 = vmatpush.bf16.msra.mxu0 0
    %3482 = vmatpush.bf16.msra.mxu0 0
    %3483 = vmatpush.bf16.msra.mxu0 0
    %3484 = vmatpush.bf16.msra.mxu0 %v3368
    %3485 = vmatpush.bf16.msra.mxu0 %v3366
    %3486 = vmatmul.bf16.gmra.mxu0 %v3406
    %v3487 = vpop.f32.mrf.mxu0
    %v3488 = vadd.f32 %v3474, %v3487
    %v3489 = vpop.f32.mrf.mxu0
    %v3490 = vadd.f32 %v3476, %v3489
    %3491 = vdwg.mxu0
    %v3492 = vadd.f32 %v3128, %v3446
    %v3493 = vadd.f32 %v3129, %v3488
    %v3494 = vadd.f32 %v3130, %v3448
    %v3495 = vadd.f32 %v3131, %v3490
    %v3496 = vld [vmem:[%s7] sm:$0x3]
    %v3498 = vperm.slane %v3496, 0
    %v3499 = vperm.slane %v3496, 1
    %v3502 = vmul.f32 %v3492, %v3498
    %v3503 = vmul.f32 %v3493, %v3499
    %v3504 = vmul.f32 %v3494, %v3498
    %v3505 = vmul.f32 %v3495, %v3499
    %v3506 = vld [vmem:[%s8] sm:$0x3]
    %v3508 = vperm.slane %v3506, 0
    %v3509 = vperm.slane %v3506, 1
    %v3512 = vadd.f32 %v3502, %v3508
    %v3513 = vadd.f32 %v3503, %v3509
    %v3514 = vadd.f32 %v3504, %v3508
    %v3515 = vadd.f32 %v3505, %v3509
    %v3516 = vmax.f32 %v3512, 0.0
    %v3517 = vmax.f32 %v3513, 0.0
    %v3518 = vmax.f32 %v3514, 0.0
    %v3519 = vmax.f32 %v3515, 0.0
    %v3520 = vpack.c.bf16 %v3518, %v3516
    %v3521 = vpack.c.bf16 %v3519, %v3517
    %v3522 = vld [vmem:[%s9] sm:$0x3]
    %vm3523 = vcmask 113664
    %v3525 = vsel %vm3523, %v3522, 0
    %vm3527 = vcmask 1046528
    %v3529 = vsel %vm3527, %v3520, 0
    %v3532 = vsel %vm3527, %v3521, 0
    %3534 = vmatpush.bf16.msra.mxu0 0
    %3535 = vmatpush.bf16.msra.mxu0 0
    %3536 = vmatpush.bf16.msra.mxu0 0
    %3537 = vmatpush.bf16.msra.mxu0 0
    %3538 = vmatpush.bf16.msra.mxu0 0
    %3539 = vmatpush.bf16.msra.mxu0 0
    %3540 = vmatpush.bf16.msra.mxu0 0
    %3541 = vmatpush.bf16.msra.mxu0 %v3529
    %3542 = vmatmul.bf16.gmra.mxu0 %v3525
    %v3543 = vpop.f32.mrf.mxu0
    %v3544 = vadd.f32 0.0, %v3543
    %v3545 = vpop.f32.mrf.mxu0
    %3546 = vdwg.mxu0
    %3547 = vmatpush.bf16.msra.mxu0 0
    %3548 = vmatpush.bf16.msra.mxu0 0
    %3549 = vmatpush.bf16.msra.mxu0 0
    %3550 = vmatpush.bf16.msra.mxu0 0
    %3551 = vmatpush.bf16.msra.mxu0 0
    %3552 = vmatpush.bf16.msra.mxu0 0
    %3553 = vmatpush.bf16.msra.mxu0 0
    %3554 = vmatpush.bf16.msra.mxu0 %v3532
    %3555 = vmatmul.bf16.gmra.mxu0 %v3525
    %v3556 = vpop.f32.mrf.mxu0
    %v3557 = vadd.f32 0.0, %v3556
    %v3558 = vpop.f32.mrf.mxu0
    %3559 = vdwg.mxu0
    %v3560 = vpack.c.bf16 %v3544, %v3544
    %v3561 = vpack.c.bf16 %v3557, %v3557
    %v3562 = vld [vmem:[%s10] sm:$0xf]
    %v3563 = vld [vmem:[%s10 + $0x4] sm:$0xf]
    %v3564 = vld [vmem:[%s10 + $0x8] sm:$0xf]
    %v3565 = vld [vmem:[%s10 + $0xc] sm:$0xf]
    %v3566 = vld [vmem:[%s10 + $0x10] sm:$0xf]
    %v3567 = vld [vmem:[%s10 + $0x14] sm:$0xf]
    %v3568 = vld [vmem:[%s10 + $0x18] sm:$0xf]
    %v3569 = vld [vmem:[%s10 + $0x1c] sm:$0xf]
    %v3570 = vld [vmem:[%s10 + $0x20] sm:$0xf]
    %v3571 = vld [vmem:[%s10 + $0x24] sm:$0xf]
    %v3572 = vld [vmem:[%s10 + $0x28] sm:$0xf]
    %v3573 = vld [vmem:[%s10 + $0x2c] sm:$0xf]
    %v3574 = vld [vmem:[%s10 + $0x30] sm:$0xf]
    %v3575 = vld [vmem:[%s10 + $0x34] sm:$0xf]
    %v3576 = vld [vmem:[%s10 + $0x38] sm:$0xf]
    %v3577 = vld [vmem:[%s10 + $0x3c] sm:$0xf]
    %v3578 = vld [vmem:[%s10 + $0x40] sm:$0xf]
    %v3579 = vld [vmem:[%s10 + $0x44] sm:$0xf]
    %v3580 = vld [vmem:[%s10 + $0x48] sm:$0xf]
    %v3581 = vld [vmem:[%s10 + $0x4c] sm:$0xf]
    %v3582 = vld [vmem:[%s10 + $0x50] sm:$0xf]
    %v3583 = vld [vmem:[%s10 + $0x54] sm:$0xf]
    %v3584 = vld [vmem:[%s10 + $0x58] sm:$0xf]
    %v3585 = vld [vmem:[%s10 + $0x5c] sm:$0xf]
    %v3586 = vld [vmem:[%s10 + $0x60] sm:$0xf]
    %v3587 = vld [vmem:[%s10 + $0x64] sm:$0xf]
    %v3588 = vld [vmem:[%s10 + $0x68] sm:$0xf]
    %v3589 = vld [vmem:[%s10 + $0x6c] sm:$0xf]
    %s3590 = scalar_lea.vmem %s9, 2
    %v3591 = vld [vmem:[%s3590] sm:$0x3]
    %v3593 = vsel %vm3523, %v3591, 0
    %3595 = vmatpush.bf16.msra.mxu0 0
    %3596 = vmatpush.bf16.msra.mxu0 0
    %3597 = vmatpush.bf16.msra.mxu0 0
    %3598 = vmatpush.bf16.msra.mxu0 0
    %3599 = vmatpush.bf16.msra.mxu0 0
    %3600 = vmatpush.bf16.msra.mxu0 0
    %3601 = vmatpush.bf16.msra.mxu0 0
    %3602 = vmatpush.bf16.msra.mxu0 %v3529
    %3603 = vmatmul.bf16.gmra.mxu0 %v3593
    %v3604 = vpop.f32.mrf.mxu0
    %v3605 = vadd.f32 0.0, %v3604
    %v3606 = vpop.f32.mrf.mxu0
    %3607 = vdwg.mxu0
    %3608 = vmatpush.bf16.msra.mxu0 0
    %3609 = vmatpush.bf16.msra.mxu0 0
    %3610 = vmatpush.bf16.msra.mxu0 0
    %3611 = vmatpush.bf16.msra.mxu0 0
    %3612 = vmatpush.bf16.msra.mxu0 0
    %3613 = vmatpush.bf16.msra.mxu0 0
    %3614 = vmatpush.bf16.msra.mxu0 0
    %3615 = vmatpush.bf16.msra.mxu0 %v3532
    %3616 = vmatmul.bf16.gmra.mxu0 %v3593
    %v3617 = vpop.f32.mrf.mxu0
    %v3618 = vadd.f32 0.0, %v3617
    %v3619 = vpop.f32.mrf.mxu0
    %3620 = vdwg.mxu0
    %v3621 = vpack.c.bf16 %v3605, %v3605
    %v3622 = vpack.c.bf16 %v3618, %v3618
    %s3623 = scalar_lea.vmem %s10, 112
    %v3624 = vld [vmem:[%s3623] sm:$0xf]
    %v3625 = vld [vmem:[%s3623 + $0x4] sm:$0xf]
    %v3626 = vld [vmem:[%s3623 + $0x8] sm:$0xf]
    %v3627 = vld [vmem:[%s3623 + $0xc] sm:$0xf]
    %v3628 = vld [vmem:[%s3623 + $0x10] sm:$0xf]
    %v3629 = vld [vmem:[%s3623 + $0x14] sm:$0xf]
    %v3630 = vld [vmem:[%s3623 + $0x18] sm:$0xf]
    %v3631 = vld [vmem:[%s3623 + $0x1c] sm:$0xf]
    %v3632 = vld [vmem:[%s3623 + $0x20] sm:$0xf]
    %v3633 = vld [vmem:[%s3623 + $0x24] sm:$0xf]
    %v3634 = vld [vmem:[%s3623 + $0x28] sm:$0xf]
    %v3635 = vld [vmem:[%s3623 + $0x2c] sm:$0xf]
    %v3636 = vld [vmem:[%s3623 + $0x30] sm:$0xf]
    %v3637 = vld [vmem:[%s3623 + $0x34] sm:$0xf]
    %v3638 = vld [vmem:[%s3623 + $0x38] sm:$0xf]
    %v3639 = vld [vmem:[%s3623 + $0x3c] sm:$0xf]
    %v3640 = vld [vmem:[%s3623 + $0x40] sm:$0xf]
    %v3641 = vld [vmem:[%s3623 + $0x44] sm:$0xf]
    %v3642 = vld [vmem:[%s3623 + $0x48] sm:$0xf]
    %v3643 = vld [vmem:[%s3623 + $0x4c] sm:$0xf]
    %v3644 = vld [vmem:[%s3623 + $0x50] sm:$0xf]
    %v3645 = vld [vmem:[%s3623 + $0x54] sm:$0xf]
    %v3646 = vld [vmem:[%s3623 + $0x58] sm:$0xf]
    %v3647 = vld [vmem:[%s3623 + $0x5c] sm:$0xf]
    %v3648 = vld [vmem:[%s3623 + $0x60] sm:$0xf]
    %v3649 = vld [vmem:[%s3623 + $0x64] sm:$0xf]
    %v3650 = vld [vmem:[%s3623 + $0x68] sm:$0xf]
    %v3651 = vld [vmem:[%s3623 + $0x6c] sm:$0xf]
    %v3680 = vunpack.c.l.b16 %v3624
    %v3681 = vunpack.c.l.b16 %v3625
    %v3682 = vunpack.c.l.b16 %v3626
    %v3683 = vunpack.c.l.b16 %v3627
    %v3684 = vunpack.c.l.b16 %v3628
    %v3685 = vunpack.c.l.b16 %v3629
    %v3686 = vunpack.c.l.b16 %v3630
    %v3687 = vunpack.c.l.b16 %v3631
    %v3688 = vunpack.c.l.b16 %v3632
    %v3689 = vunpack.c.l.b16 %v3633
    %v3690 = vunpack.c.l.b16 %v3634
    %v3691 = vunpack.c.l.b16 %v3635
    %v3692 = vunpack.c.l.b16 %v3636
    %v3693 = vunpack.c.l.b16 %v3637
    %v3694 = vunpack.c.l.b16 %v3638
    %v3695 = vunpack.c.l.b16 %v3639
    %v3696 = vunpack.c.l.b16 %v3640
    %v3697 = vunpack.c.l.b16 %v3641
    %v3698 = vunpack.c.l.b16 %v3642
    %v3699 = vunpack.c.l.b16 %v3643
    %v3700 = vunpack.c.l.b16 %v3644
    %v3701 = vunpack.c.l.b16 %v3645
    %v3702 = vunpack.c.l.b16 %v3646
    %v3703 = vunpack.c.l.b16 %v3647
    %v3704 = vunpack.c.l.b16 %v3648
    %v3705 = vunpack.c.l.b16 %v3649
    %v3706 = vunpack.c.l.b16 %v3650
    %v3707 = vunpack.c.l.b16 %v3651
    %v3708 = vpack.c.b16 %v3681, %v3680
    %v3709 = vpack.c.b16 %v3683, %v3682
    %v3710 = vpack.c.b16 %v3685, %v3684
    %v3711 = vpack.c.b16 %v3687, %v3686
    %v3712 = vpack.c.b16 %v3689, %v3688
    %v3713 = vpack.c.b16 %v3691, %v3690
    %v3714 = vpack.c.b16 %v3693, %v3692
    %v3715 = vpack.c.b16 %v3695, %v3694
    %v3716 = vpack.c.b16 %v3697, %v3696
    %v3717 = vpack.c.b16 %v3699, %v3698
    %v3718 = vpack.c.b16 %v3701, %v3700
    %v3719 = vpack.c.b16 %v3703, %v3702
    %v3720 = vpack.c.b16 %v3705, %v3704
    %v3721 = vpack.c.b16 %v3707, %v3706
    %vm3736 = vcmask 785408
    %v3738 = vsel %vm3736, %v3622, 0
    %3740 = vmatpush.bf16.msra.mxu0 %v3715
    %3741 = vmatpush.bf16.msra.mxu0 %v3714
    %3742 = vmatpush.bf16.msra.mxu0 %v3713
    %3743 = vmatpush.bf16.msra.mxu0 %v3712
    %3744 = vmatpush.bf16.msra.mxu0 %v3711
    %3745 = vmatpush.bf16.msra.mxu0 %v3710
    %3746 = vmatpush.bf16.msra.mxu0 %v3709
    %3747 = vmatpush.bf16.msra.mxu0 %v3708
    %3748 = vmatmul.bf16.gmra.mxu0 %v3621
    %v3749 = vpop.f32.mrf.mxu0
    %v3750 = vadd.f32 0.0, %v3749
    %v3751 = vpop.f32.mrf.mxu0
    %3752 = vdwg.mxu0
    %3753 = vmatpush.bf16.msra.mxu0 0
    %3754 = vmatpush.bf16.msra.mxu0 0
    %3755 = vmatpush.bf16.msra.mxu0 %v3721
    %3756 = vmatpush.bf16.msra.mxu0 %v3720
    %3757 = vmatpush.bf16.msra.mxu0 %v3719
    %3758 = vmatpush.bf16.msra.mxu0 %v3718
    %3759 = vmatpush.bf16.msra.mxu0 %v3717
    %3760 = vmatpush.bf16.msra.mxu0 %v3716
    %3761 = vmatmul.bf16.gmra.mxu0 %v3738
    %v3762 = vpop.f32.mrf.mxu0
    %v3763 = vadd.f32 %v3750, %v3762
    %v3764 = vpop.f32.mrf.mxu0
    %3765 = vdwg.mxu0
    %v3794 = vunpack.c.l.b16 %v3562
    %v3795 = vunpack.c.l.b16 %v3563
    %v3796 = vunpack.c.l.b16 %v3564
    %v3797 = vunpack.c.l.b16 %v3565
    %v3798 = vunpack.c.l.b16 %v3566
    %v3799 = vunpack.c.l.b16 %v3567
    %v3800 = vunpack.c.l.b16 %v3568
    %v3801 = vunpack.c.l.b16 %v3569
    %v3802 = vunpack.c.l.b16 %v3570
    %v3803 = vunpack.c.l.b16 %v3571
    %v3804 = vunpack.c.l.b16 %v3572
    %v3805 = vunpack.c.l.b16 %v3573
    %v3806 = vunpack.c.l.b16 %v3574
    %v3807 = vunpack.c.l.b16 %v3575
    %v3808 = vunpack.c.l.b16 %v3576
    %v3809 = vunpack.c.l.b16 %v3577
    %v3810 = vunpack.c.l.b16 %v3578
    %v3811 = vunpack.c.l.b16 %v3579
    %v3812 = vunpack.c.l.b16 %v3580
    %v3813 = vunpack.c.l.b16 %v3581
    %v3814 = vunpack.c.l.b16 %v3582
    %v3815 = vunpack.c.l.b16 %v3583
    %v3816 = vunpack.c.l.b16 %v3584
    %v3817 = vunpack.c.l.b16 %v3585
    %v3818 = vunpack.c.l.b16 %v3586
    %v3819 = vunpack.c.l.b16 %v3587
    %v3820 = vunpack.c.l.b16 %v3588
    %v3821 = vunpack.c.l.b16 %v3589
    %v3822 = vpack.c.b16 %v3795, %v3794
    %v3823 = vpack.c.b16 %v3797, %v3796
    %v3824 = vpack.c.b16 %v3799, %v3798
    %v3825 = vpack.c.b16 %v3801, %v3800
    %v3826 = vpack.c.b16 %v3803, %v3802
    %v3827 = vpack.c.b16 %v3805, %v3804
    %v3828 = vpack.c.b16 %v3807, %v3806
    %v3829 = vpack.c.b16 %v3809, %v3808
    %v3830 = vpack.c.b16 %v3811, %v3810
    %v3831 = vpack.c.b16 %v3813, %v3812
    %v3832 = vpack.c.b16 %v3815, %v3814
    %v3833 = vpack.c.b16 %v3817, %v3816
    %v3834 = vpack.c.b16 %v3819, %v3818
    %v3835 = vpack.c.b16 %v3821, %v3820
    %v3851 = vsel %vm3736, %v3561, 0
    %3853 = vmatpush.bf16.msra.mxu0 %v3829
    %3854 = vmatpush.bf16.msra.mxu0 %v3828
    %3855 = vmatpush.bf16.msra.mxu0 %v3827
    %3856 = vmatpush.bf16.msra.mxu0 %v3826
    %3857 = vmatpush.bf16.msra.mxu0 %v3825
    %3858 = vmatpush.bf16.msra.mxu0 %v3824
    %3859 = vmatpush.bf16.msra.mxu0 %v3823
    %3860 = vmatpush.bf16.msra.mxu0 %v3822
    %3861 = vmatmul.bf16.gmra.mxu0 %v3560
    %v3862 = vpop.f32.mrf.mxu0
    %v3863 = vadd.f32 %v3763, %v3862
    %v3864 = vpop.f32.mrf.mxu0
    %3865 = vdwg.mxu0
    %3866 = vmatpush.bf16.msra.mxu0 0
    %3867 = vmatpush.bf16.msra.mxu0 0
    %3868 = vmatpush.bf16.msra.mxu0 %v3835
    %3869 = vmatpush.bf16.msra.mxu0 %v3834
    %3870 = vmatpush.bf16.msra.mxu0 %v3833
    %3871 = vmatpush.bf16.msra.mxu0 %v3832
    %3872 = vmatpush.bf16.msra.mxu0 %v3831
    %3873 = vmatpush.bf16.msra.mxu0 %v3830
    %3874 = vmatmul.bf16.gmra.mxu0 %v3851
    %v3875 = vpop.f32.mrf.mxu0
    %v3876 = vadd.f32 %v3863, %v3875
    %v3877 = vpop.f32.mrf.mxu0
    %3878 = vdwg.mxu0
    %s3879 = scalar_lea.vmem %s9, 4
    %v3880 = vld [vmem:[%s3879] sm:$0x3]
    %v3882 = vsel %vm3523, %v3880, 0
    %3884 = vmatpush.bf16.msra.mxu0 0
    %3885 = vmatpush.bf16.msra.mxu0 0
    %3886 = vmatpush.bf16.msra.mxu0 0
    %3887 = vmatpush.bf16.msra.mxu0 0
    %3888 = vmatpush.bf16.msra.mxu0 0
    %3889 = vmatpush.bf16.msra.mxu0 0
    %3890 = vmatpush.bf16.msra.mxu0 0
    %3891 = vmatpush.bf16.msra.mxu0 %v3529
    %3892 = vmatmul.bf16.gmra.mxu0 %v3882
    %v3893 = vpop.f32.mrf.mxu0
    %v3894 = vadd.f32 0.0, %v3893
    %v3895 = vpop.f32.mrf.mxu0
    %3896 = vdwg.mxu0
    %3897 = vmatpush.bf16.msra.mxu0 0
    %3898 = vmatpush.bf16.msra.mxu0 0
    %3899 = vmatpush.bf16.msra.mxu0 0
    %3900 = vmatpush.bf16.msra.mxu0 0
    %3901 = vmatpush.bf16.msra.mxu0 0
    %3902 = vmatpush.bf16.msra.mxu0 0
    %3903 = vmatpush.bf16.msra.mxu0 0
    %3904 = vmatpush.bf16.msra.mxu0 %v3532
    %3905 = vmatmul.bf16.gmra.mxu0 %v3882
    %v3906 = vpop.f32.mrf.mxu0
    %v3907 = vadd.f32 0.0, %v3906
    %v3908 = vpop.f32.mrf.mxu0
    %3909 = vdwg.mxu0
    %v3910 = vpack.c.bf16 %v3894, %v3894
    %v3911 = vpack.c.bf16 %v3907, %v3907
    %s3912 = scalar_lea.vmem %s10, 224
    %v3913 = vld [vmem:[%s3912] sm:$0xf]
    %v3914 = vld [vmem:[%s3912 + $0x4] sm:$0xf]
    %v3915 = vld [vmem:[%s3912 + $0x8] sm:$0xf]
    %v3916 = vld [vmem:[%s3912 + $0xc] sm:$0xf]
    %v3917 = vld [vmem:[%s3912 + $0x10] sm:$0xf]
    %v3918 = vld [vmem:[%s3912 + $0x14] sm:$0xf]
    %v3919 = vld [vmem:[%s3912 + $0x18] sm:$0xf]
    %v3920 = vld [vmem:[%s3912 + $0x1c] sm:$0xf]
    %v3921 = vld [vmem:[%s3912 + $0x20] sm:$0xf]
    %v3922 = vld [vmem:[%s3912 + $0x24] sm:$0xf]
    %v3923 = vld [vmem:[%s3912 + $0x28] sm:$0xf]
    %v3924 = vld [vmem:[%s3912 + $0x2c] sm:$0xf]
    %v3925 = vld [vmem:[%s3912 + $0x30] sm:$0xf]
    %v3926 = vld [vmem:[%s3912 + $0x34] sm:$0xf]
    %v3927 = vld [vmem:[%s3912 + $0x38] sm:$0xf]
    %v3928 = vld [vmem:[%s3912 + $0x3c] sm:$0xf]
    %v3929 = vld [vmem:[%s3912 + $0x40] sm:$0xf]
    %v3930 = vld [vmem:[%s3912 + $0x44] sm:$0xf]
    %v3931 = vld [vmem:[%s3912 + $0x48] sm:$0xf]
    %v3932 = vld [vmem:[%s3912 + $0x4c] sm:$0xf]
    %v3933 = vld [vmem:[%s3912 + $0x50] sm:$0xf]
    %v3934 = vld [vmem:[%s3912 + $0x54] sm:$0xf]
    %v3935 = vld [vmem:[%s3912 + $0x58] sm:$0xf]
    %v3936 = vld [vmem:[%s3912 + $0x5c] sm:$0xf]
    %v3937 = vld [vmem:[%s3912 + $0x60] sm:$0xf]
    %v3938 = vld [vmem:[%s3912 + $0x64] sm:$0xf]
    %v3939 = vld [vmem:[%s3912 + $0x68] sm:$0xf]
    %v3940 = vld [vmem:[%s3912 + $0x6c] sm:$0xf]
    %v3969 = vunpack.c.l.b16 %v3913
    %v3970 = vunpack.c.l.b16 %v3914
    %v3971 = vunpack.c.l.b16 %v3915
    %v3972 = vunpack.c.l.b16 %v3916
    %v3973 = vunpack.c.l.b16 %v3917
    %v3974 = vunpack.c.l.b16 %v3918
    %v3975 = vunpack.c.l.b16 %v3919
    %v3976 = vunpack.c.l.b16 %v3920
    %v3977 = vunpack.c.l.b16 %v3921
    %v3978 = vunpack.c.l.b16 %v3922
    %v3979 = vunpack.c.l.b16 %v3923
    %v3980 = vunpack.c.l.b16 %v3924
    %v3981 = vunpack.c.l.b16 %v3925
    %v3982 = vunpack.c.l.b16 %v3926
    %v3983 = vunpack.c.l.b16 %v3927
    %v3984 = vunpack.c.l.b16 %v3928
    %v3985 = vunpack.c.l.b16 %v3929
    %v3986 = vunpack.c.l.b16 %v3930
    %v3987 = vunpack.c.l.b16 %v3931
    %v3988 = vunpack.c.l.b16 %v3932
    %v3989 = vunpack.c.l.b16 %v3933
    %v3990 = vunpack.c.l.b16 %v3934
    %v3991 = vunpack.c.l.b16 %v3935
    %v3992 = vunpack.c.l.b16 %v3936
    %v3993 = vunpack.c.l.b16 %v3937
    %v3994 = vunpack.c.l.b16 %v3938
    %v3995 = vunpack.c.l.b16 %v3939
    %v3996 = vunpack.c.l.b16 %v3940
    %v3997 = vpack.c.b16 %v3970, %v3969
    %v3998 = vpack.c.b16 %v3972, %v3971
    %v3999 = vpack.c.b16 %v3974, %v3973
    %v4000 = vpack.c.b16 %v3976, %v3975
    %v4001 = vpack.c.b16 %v3978, %v3977
    %v4002 = vpack.c.b16 %v3980, %v3979
    %v4003 = vpack.c.b16 %v3982, %v3981
    %v4004 = vpack.c.b16 %v3984, %v3983
    %v4005 = vpack.c.b16 %v3986, %v3985
    %v4006 = vpack.c.b16 %v3988, %v3987
    %v4007 = vpack.c.b16 %v3990, %v3989
    %v4008 = vpack.c.b16 %v3992, %v3991
    %v4009 = vpack.c.b16 %v3994, %v3993
    %v4010 = vpack.c.b16 %v3996, %v3995
    %v4026 = vsel %vm3736, %v3911, 0
    %4028 = vmatpush.bf16.msra.mxu0 %v4004
    %4029 = vmatpush.bf16.msra.mxu0 %v4003
    %4030 = vmatpush.bf16.msra.mxu0 %v4002
    %4031 = vmatpush.bf16.msra.mxu0 %v4001
    %4032 = vmatpush.bf16.msra.mxu0 %v4000
    %4033 = vmatpush.bf16.msra.mxu0 %v3999
    %4034 = vmatpush.bf16.msra.mxu0 %v3998
    %4035 = vmatpush.bf16.msra.mxu0 %v3997
    %4036 = vmatmul.bf16.gmra.mxu0 %v3910
    %v4037 = vpop.f32.mrf.mxu0
    %v4038 = vadd.f32 0.0, %v4037
    %v4039 = vpop.f32.mrf.mxu0
    %4040 = vdwg.mxu0
    %4041 = vmatpush.bf16.msra.mxu0 0
    %4042 = vmatpush.bf16.msra.mxu0 0
    %4043 = vmatpush.bf16.msra.mxu0 %v4010
    %4044 = vmatpush.bf16.msra.mxu0 %v4009
    %4045 = vmatpush.bf16.msra.mxu0 %v4008
    %4046 = vmatpush.bf16.msra.mxu0 %v4007
    %4047 = vmatpush.bf16.msra.mxu0 %v4006
    %4048 = vmatpush.bf16.msra.mxu0 %v4005
    %4049 = vmatmul.bf16.gmra.mxu0 %v4026
    %v4050 = vpop.f32.mrf.mxu0
    %v4051 = vadd.f32 %v4038, %v4050
    %v4052 = vpop.f32.mrf.mxu0
    %4053 = vdwg.mxu0
    %v4054 = vadd.f32 %v3876, %v4051
    %s4055 = scalar_lea.vmem %s9, 6
    %v4056 = vld [vmem:[%s4055] sm:$0x3]
    %v4058 = vsel %vm3523, %v4056, 0
    %4060 = vmatpush.bf16.msra.mxu0 0
    %4061 = vmatpush.bf16.msra.mxu0 0
    %4062 = vmatpush.bf16.msra.mxu0 0
    %4063 = vmatpush.bf16.msra.mxu0 0
    %4064 = vmatpush.bf16.msra.mxu0 0
    %4065 = vmatpush.bf16.msra.mxu0 0
    %4066 = vmatpush.bf16.msra.mxu0 0
    %4067 = vmatpush.bf16.msra.mxu0 %v3529
    %4068 = vmatmul.bf16.gmra.mxu0 %v4058
    %v4069 = vpop.f32.mrf.mxu0
    %v4070 = vadd.f32 0.0, %v4069
    %v4071 = vpop.f32.mrf.mxu0
    %4072 = vdwg.mxu0
    %4073 = vmatpush.bf16.msra.mxu0 0
    %4074 = vmatpush.bf16.msra.mxu0 0
    %4075 = vmatpush.bf16.msra.mxu0 0
    %4076 = vmatpush.bf16.msra.mxu0 0
    %4077 = vmatpush.bf16.msra.mxu0 0
    %4078 = vmatpush.bf16.msra.mxu0 0
    %4079 = vmatpush.bf16.msra.mxu0 0
    %4080 = vmatpush.bf16.msra.mxu0 %v3532
    %4081 = vmatmul.bf16.gmra.mxu0 %v4058
    %v4082 = vpop.f32.mrf.mxu0
    %v4083 = vadd.f32 0.0, %v4082
    %v4084 = vpop.f32.mrf.mxu0
    %4085 = vdwg.mxu0
    %v4086 = vpack.c.bf16 %v4070, %v4070
    %v4087 = vpack.c.bf16 %v4083, %v4083
    %s4088 = scalar_lea.vmem %s10, 336
    %v4089 = vld [vmem:[%s4088] sm:$0xf]
    %v4090 = vld [vmem:[%s4088 + $0x4] sm:$0xf]
    %v4091 = vld [vmem:[%s4088 + $0x8] sm:$0xf]
    %v4092 = vld [vmem:[%s4088 + $0xc] sm:$0xf]
    %v4093 = vld [vmem:[%s4088 + $0x10] sm:$0xf]
    %v4094 = vld [vmem:[%s4088 + $0x14] sm:$0xf]
    %v4095 = vld [vmem:[%s4088 + $0x18] sm:$0xf]
    %v4096 = vld [vmem:[%s4088 + $0x1c] sm:$0xf]
    %v4097 = vld [vmem:[%s4088 + $0x20] sm:$0xf]
    %v4098 = vld [vmem:[%s4088 + $0x24] sm:$0xf]
    %v4099 = vld [vmem:[%s4088 + $0x28] sm:$0xf]
    %v4100 = vld [vmem:[%s4088 + $0x2c] sm:$0xf]
    %v4101 = vld [vmem:[%s4088 + $0x30] sm:$0xf]
    %v4102 = vld [vmem:[%s4088 + $0x34] sm:$0xf]
    %v4103 = vld [vmem:[%s4088 + $0x38] sm:$0xf]
    %v4104 = vld [vmem:[%s4088 + $0x3c] sm:$0xf]
    %v4105 = vld [vmem:[%s4088 + $0x40] sm:$0xf]
    %v4106 = vld [vmem:[%s4088 + $0x44] sm:$0xf]
    %v4107 = vld [vmem:[%s4088 + $0x48] sm:$0xf]
    %v4108 = vld [vmem:[%s4088 + $0x4c] sm:$0xf]
    %v4109 = vld [vmem:[%s4088 + $0x50] sm:$0xf]
    %v4110 = vld [vmem:[%s4088 + $0x54] sm:$0xf]
    %v4111 = vld [vmem:[%s4088 + $0x58] sm:$0xf]
    %v4112 = vld [vmem:[%s4088 + $0x5c] sm:$0xf]
    %v4113 = vld [vmem:[%s4088 + $0x60] sm:$0xf]
    %v4114 = vld [vmem:[%s4088 + $0x64] sm:$0xf]
    %v4115 = vld [vmem:[%s4088 + $0x68] sm:$0xf]
    %v4116 = vld [vmem:[%s4088 + $0x6c] sm:$0xf]
    %v4145 = vunpack.c.l.b16 %v4089
    %v4146 = vunpack.c.l.b16 %v4090
    %v4147 = vunpack.c.l.b16 %v4091
    %v4148 = vunpack.c.l.b16 %v4092
    %v4149 = vunpack.c.l.b16 %v4093
    %v4150 = vunpack.c.l.b16 %v4094
    %v4151 = vunpack.c.l.b16 %v4095
    %v4152 = vunpack.c.l.b16 %v4096
    %v4153 = vunpack.c.l.b16 %v4097
    %v4154 = vunpack.c.l.b16 %v4098
    %v4155 = vunpack.c.l.b16 %v4099
    %v4156 = vunpack.c.l.b16 %v4100
    %v4157 = vunpack.c.l.b16 %v4101
    %v4158 = vunpack.c.l.b16 %v4102
    %v4159 = vunpack.c.l.b16 %v4103
    %v4160 = vunpack.c.l.b16 %v4104
    %v4161 = vunpack.c.l.b16 %v4105
    %v4162 = vunpack.c.l.b16 %v4106
    %v4163 = vunpack.c.l.b16 %v4107
    %v4164 = vunpack.c.l.b16 %v4108
    %v4165 = vunpack.c.l.b16 %v4109
    %v4166 = vunpack.c.l.b16 %v4110
    %v4167 = vunpack.c.l.b16 %v4111
    %v4168 = vunpack.c.l.b16 %v4112
    %v4169 = vunpack.c.l.b16 %v4113
    %v4170 = vunpack.c.l.b16 %v4114
    %v4171 = vunpack.c.l.b16 %v4115
    %v4172 = vunpack.c.l.b16 %v4116
    %v4173 = vpack.c.b16 %v4146, %v4145
    %v4174 = vpack.c.b16 %v4148, %v4147
    %v4175 = vpack.c.b16 %v4150, %v4149
    %v4176 = vpack.c.b16 %v4152, %v4151
    %v4177 = vpack.c.b16 %v4154, %v4153
    %v4178 = vpack.c.b16 %v4156, %v4155
    %v4179 = vpack.c.b16 %v4158, %v4157
    %v4180 = vpack.c.b16 %v4160, %v4159
    %v4181 = vpack.c.b16 %v4162, %v4161
    %v4182 = vpack.c.b16 %v4164, %v4163
    %v4183 = vpack.c.b16 %v4166, %v4165
    %v4184 = vpack.c.b16 %v4168, %v4167
    %v4185 = vpack.c.b16 %v4170, %v4169
    %v4186 = vpack.c.b16 %v4172, %v4171
    %v4202 = vsel %vm3736, %v4087, 0
    %4204 = vmatpush.bf16.msra.mxu0 %v4180
    %4205 = vmatpush.bf16.msra.mxu0 %v4179
    %4206 = vmatpush.bf16.msra.mxu0 %v4178
    %4207 = vmatpush.bf16.msra.mxu0 %v4177
    %4208 = vmatpush.bf16.msra.mxu0 %v4176
    %4209 = vmatpush.bf16.msra.mxu0 %v4175
    %4210 = vmatpush.bf16.msra.mxu0 %v4174
    %4211 = vmatpush.bf16.msra.mxu0 %v4173
    %4212 = vmatmul.bf16.gmra.mxu0 %v4086
    %v4213 = vpop.f32.mrf.mxu0
    %v4214 = vadd.f32 0.0, %v4213
    %v4215 = vpop.f32.mrf.mxu0
    %4216 = vdwg.mxu0
    %4217 = vmatpush.bf16.msra.mxu0 0
    %4218 = vmatpush.bf16.msra.mxu0 0
    %4219 = vmatpush.bf16.msra.mxu0 %v4186
    %4220 = vmatpush.bf16.msra.mxu0 %v4185
    %4221 = vmatpush.bf16.msra.mxu0 %v4184
    %4222 = vmatpush.bf16.msra.mxu0 %v4183
    %4223 = vmatpush.bf16.msra.mxu0 %v4182
    %4224 = vmatpush.bf16.msra.mxu0 %v4181
    %4225 = vmatmul.bf16.gmra.mxu0 %v4202
    %v4226 = vpop.f32.mrf.mxu0
    %v4227 = vadd.f32 %v4214, %v4226
    %v4228 = vpop.f32.mrf.mxu0
    %4229 = vdwg.mxu0
    %v4230 = vadd.f32 %v4054, %v4227
    %s4231 = scalar_lea.vmem %s9, 8
    %v4232 = vld [vmem:[%s4231] sm:$0x3]
    %v4234 = vsel %vm3523, %v4232, 0
    %4236 = vmatpush.bf16.msra.mxu0 0
    %4237 = vmatpush.bf16.msra.mxu0 0
    %4238 = vmatpush.bf16.msra.mxu0 0
    %4239 = vmatpush.bf16.msra.mxu0 0
    %4240 = vmatpush.bf16.msra.mxu0 0
    %4241 = vmatpush.bf16.msra.mxu0 0
    %4242 = vmatpush.bf16.msra.mxu0 0
    %4243 = vmatpush.bf16.msra.mxu0 %v3529
    %4244 = vmatmul.bf16.gmra.mxu0 %v4234
    %v4245 = vpop.f32.mrf.mxu0
    %v4246 = vadd.f32 0.0, %v4245
    %v4247 = vpop.f32.mrf.mxu0
    %4248 = vdwg.mxu0
    %4249 = vmatpush.bf16.msra.mxu0 0
    %4250 = vmatpush.bf16.msra.mxu0 0
    %4251 = vmatpush.bf16.msra.mxu0 0
    %4252 = vmatpush.bf16.msra.mxu0 0
    %4253 = vmatpush.bf16.msra.mxu0 0
    %4254 = vmatpush.bf16.msra.mxu0 0
    %4255 = vmatpush.bf16.msra.mxu0 0
    %4256 = vmatpush.bf16.msra.mxu0 %v3532
    %4257 = vmatmul.bf16.gmra.mxu0 %v4234
    %v4258 = vpop.f32.mrf.mxu0
    %v4259 = vadd.f32 0.0, %v4258
    %v4260 = vpop.f32.mrf.mxu0
    %4261 = vdwg.mxu0
    %v4262 = vpack.c.bf16 %v4246, %v4246
    %v4263 = vpack.c.bf16 %v4259, %v4259
    %s4264 = scalar_lea.vmem %s10, 448
    %v4265 = vld [vmem:[%s4264] sm:$0xf]
    %v4266 = vld [vmem:[%s4264 + $0x4] sm:$0xf]
    %v4267 = vld [vmem:[%s4264 + $0x8] sm:$0xf]
    %v4268 = vld [vmem:[%s4264 + $0xc] sm:$0xf]
    %v4269 = vld [vmem:[%s4264 + $0x10] sm:$0xf]
    %v4270 = vld [vmem:[%s4264 + $0x14] sm:$0xf]
    %v4271 = vld [vmem:[%s4264 + $0x18] sm:$0xf]
    %v4272 = vld [vmem:[%s4264 + $0x1c] sm:$0xf]
    %v4273 = vld [vmem:[%s4264 + $0x20] sm:$0xf]
    %v4274 = vld [vmem:[%s4264 + $0x24] sm:$0xf]
    %v4275 = vld [vmem:[%s4264 + $0x28] sm:$0xf]
    %v4276 = vld [vmem:[%s4264 + $0x2c] sm:$0xf]
    %v4277 = vld [vmem:[%s4264 + $0x30] sm:$0xf]
    %v4278 = vld [vmem:[%s4264 + $0x34] sm:$0xf]
    %v4279 = vld [vmem:[%s4264 + $0x38] sm:$0xf]
    %v4280 = vld [vmem:[%s4264 + $0x3c] sm:$0xf]
    %v4281 = vld [vmem:[%s4264 + $0x40] sm:$0xf]
    %v4282 = vld [vmem:[%s4264 + $0x44] sm:$0xf]
    %v4283 = vld [vmem:[%s4264 + $0x48] sm:$0xf]
    %v4284 = vld [vmem:[%s4264 + $0x4c] sm:$0xf]
    %v4285 = vld [vmem:[%s4264 + $0x50] sm:$0xf]
    %v4286 = vld [vmem:[%s4264 + $0x54] sm:$0xf]
    %v4287 = vld [vmem:[%s4264 + $0x58] sm:$0xf]
    %v4288 = vld [vmem:[%s4264 + $0x5c] sm:$0xf]
    %v4289 = vld [vmem:[%s4264 + $0x60] sm:$0xf]
    %v4290 = vld [vmem:[%s4264 + $0x64] sm:$0xf]
    %v4291 = vld [vmem:[%s4264 + $0x68] sm:$0xf]
    %v4292 = vld [vmem:[%s4264 + $0x6c] sm:$0xf]
    %v4321 = vunpack.c.l.b16 %v4265
    %v4322 = vunpack.c.l.b16 %v4266
    %v4323 = vunpack.c.l.b16 %v4267
    %v4324 = vunpack.c.l.b16 %v4268
    %v4325 = vunpack.c.l.b16 %v4269
    %v4326 = vunpack.c.l.b16 %v4270
    %v4327 = vunpack.c.l.b16 %v4271
    %v4328 = vunpack.c.l.b16 %v4272
    %v4329 = vunpack.c.l.b16 %v4273
    %v4330 = vunpack.c.l.b16 %v4274
    %v4331 = vunpack.c.l.b16 %v4275
    %v4332 = vunpack.c.l.b16 %v4276
    %v4333 = vunpack.c.l.b16 %v4277
    %v4334 = vunpack.c.l.b16 %v4278
    %v4335 = vunpack.c.l.b16 %v4279
    %v4336 = vunpack.c.l.b16 %v4280
    %v4337 = vunpack.c.l.b16 %v4281
    %v4338 = vunpack.c.l.b16 %v4282
    %v4339 = vunpack.c.l.b16 %v4283
    %v4340 = vunpack.c.l.b16 %v4284
    %v4341 = vunpack.c.l.b16 %v4285
    %v4342 = vunpack.c.l.b16 %v4286
    %v4343 = vunpack.c.l.b16 %v4287
    %v4344 = vunpack.c.l.b16 %v4288
    %v4345 = vunpack.c.l.b16 %v4289
    %v4346 = vunpack.c.l.b16 %v4290
    %v4347 = vunpack.c.l.b16 %v4291
    %v4348 = vunpack.c.l.b16 %v4292
    %v4349 = vpack.c.b16 %v4322, %v4321
    %v4350 = vpack.c.b16 %v4324, %v4323
    %v4351 = vpack.c.b16 %v4326, %v4325
    %v4352 = vpack.c.b16 %v4328, %v4327
    %v4353 = vpack.c.b16 %v4330, %v4329
    %v4354 = vpack.c.b16 %v4332, %v4331
    %v4355 = vpack.c.b16 %v4334, %v4333
    %v4356 = vpack.c.b16 %v4336, %v4335
    %v4357 = vpack.c.b16 %v4338, %v4337
    %v4358 = vpack.c.b16 %v4340, %v4339
    %v4359 = vpack.c.b16 %v4342, %v4341
    %v4360 = vpack.c.b16 %v4344, %v4343
    %v4361 = vpack.c.b16 %v4346, %v4345
    %v4362 = vpack.c.b16 %v4348, %v4347
    %v4378 = vsel %vm3736, %v4263, 0
    %4380 = vmatpush.bf16.msra.mxu0 %v4356
    %4381 = vmatpush.bf16.msra.mxu0 %v4355
    %4382 = vmatpush.bf16.msra.mxu0 %v4354
    %4383 = vmatpush.bf16.msra.mxu0 %v4353
    %4384 = vmatpush.bf16.msra.mxu0 %v4352
    %4385 = vmatpush.bf16.msra.mxu0 %v4351
    %4386 = vmatpush.bf16.msra.mxu0 %v4350
    %4387 = vmatpush.bf16.msra.mxu0 %v4349
    %4388 = vmatmul.bf16.gmra.mxu0 %v4262
    %v4389 = vpop.f32.mrf.mxu0
    %v4390 = vadd.f32 0.0, %v4389
    %v4391 = vpop.f32.mrf.mxu0
    %4392 = vdwg.mxu0
    %4393 = vmatpush.bf16.msra.mxu0 0
    %4394 = vmatpush.bf16.msra.mxu0 0
    %4395 = vmatpush.bf16.msra.mxu0 %v4362
    %4396 = vmatpush.bf16.msra.mxu0 %v4361
    %4397 = vmatpush.bf16.msra.mxu0 %v4360
    %4398 = vmatpush.bf16.msra.mxu0 %v4359
    %4399 = vmatpush.bf16.msra.mxu0 %v4358
    %4400 = vmatpush.bf16.msra.mxu0 %v4357
    %4401 = vmatmul.bf16.gmra.mxu0 %v4378
    %v4402 = vpop.f32.mrf.mxu0
    %v4403 = vadd.f32 %v4390, %v4402
    %v4404 = vpop.f32.mrf.mxu0
    %4405 = vdwg.mxu0
    %v4406 = vadd.f32 %v4230, %v4403
    %v4407 = vld [vmem:[%s11] sm:$0x1]
    %v4409 = vperm.slane %v4407, 0
    %v4411 = vmul.f32 %v4406, %v4409
    %v4412 = vld [vmem:[%s12] sm:$0x1]
    %v4414 = vperm.slane %v4412, 0
    %v4416 = vadd.f32 %v4411, %v4414
    %v4417 = vmax.f32 %v4416, 0.0
    %v4418 = vpack.c.bf16 %v4417, %v4417
    %v4419 = vld [vmem:[%s13] sm:$0x1]
    %vm4420 = vcmask 31744
    %v4422 = vsel %vm4420, %v4419, 0
    %v4425 = vsel %vm1685, %v4418, 0
    %4427 = vmatpush.bf16.msra.mxu0 0
    %4428 = vmatpush.bf16.msra.mxu0 0
    %4429 = vmatpush.bf16.msra.mxu0 0
    %4430 = vmatpush.bf16.msra.mxu0 0
    %4431 = vmatpush.bf16.msra.mxu0 0
    %4432 = vmatpush.bf16.msra.mxu0 0
    %4433 = vmatpush.bf16.msra.mxu0 0
    %4434 = vmatpush.bf16.msra.mxu0 %v4425
    %4435 = vmatmul.bf16.gmra.mxu0 %v4422
    %v4436 = vpop.f32.mrf.mxu0
    %v4437 = vadd.f32 0.0, %v4436
    %v4438 = vpop.f32.mrf.mxu0
    %4439 = vdwg.mxu0
    %v4440 = vpack.c.bf16 %v4437, %v4437
    %v4441 = vld [vmem:[%s14] sm:$0xf]
    %v4442 = vld [vmem:[%s14 + $0x4] sm:$0xf]
    %v4443 = vld [vmem:[%s14 + $0x8] sm:$0xf]
    %v4444 = vld [vmem:[%s14 + $0xc] sm:$0xf]
    %v4445 = vld [vmem:[%s14 + $0x10] sm:$0xf]
    %v4446 = vld [vmem:[%s14 + $0x14] sm:$0xf]
    %v4447 = vld [vmem:[%s14 + $0x18] sm:$0xf]
    %v4448 = vld [vmem:[%s14 + $0x1c] sm:$0xf]
    %s4449 = scalar_lea.vmem %s13, 1
    %v4450 = vld [vmem:[%s4449] sm:$0x1]
    %v4452 = vsel %vm4420, %v4450, 0
    %4454 = vmatpush.bf16.msra.mxu0 0
    %4455 = vmatpush.bf16.msra.mxu0 0
    %4456 = vmatpush.bf16.msra.mxu0 0
    %4457 = vmatpush.bf16.msra.mxu0 0
    %4458 = vmatpush.bf16.msra.mxu0 0
    %4459 = vmatpush.bf16.msra.mxu0 0
    %4460 = vmatpush.bf16.msra.mxu0 0
    %4461 = vmatpush.bf16.msra.mxu0 %v4425
    %4462 = vmatmul.bf16.gmra.mxu0 %v4452
    %v4463 = vpop.f32.mrf.mxu0
    %v4464 = vadd.f32 0.0, %v4463
    %v4465 = vpop.f32.mrf.mxu0
    %4466 = vdwg.mxu0
    %v4467 = vpack.c.bf16 %v4464, %v4464
    %s4468 = scalar_lea.vmem %s14, 32
    %v4469 = vld [vmem:[%s4468] sm:$0xf]
    %v4470 = vld [vmem:[%s4468 + $0x4] sm:$0xf]
    %v4471 = vld [vmem:[%s4468 + $0x8] sm:$0xf]
    %v4472 = vld [vmem:[%s4468 + $0xc] sm:$0xf]
    %v4473 = vld [vmem:[%s4468 + $0x10] sm:$0xf]
    %v4474 = vld [vmem:[%s4468 + $0x14] sm:$0xf]
    %v4475 = vld [vmem:[%s4468 + $0x18] sm:$0xf]
    %v4476 = vld [vmem:[%s4468 + $0x1c] sm:$0xf]
    %v4485 = vunpack.c.l.b16 %v4469
    %v4486 = vunpack.c.l.b16 %v4470
    %v4487 = vunpack.c.l.b16 %v4471
    %v4488 = vunpack.c.l.b16 %v4472
    %v4489 = vunpack.c.l.b16 %v4473
    %v4490 = vunpack.c.l.b16 %v4474
    %v4491 = vunpack.c.l.b16 %v4475
    %v4492 = vunpack.c.l.b16 %v4476
    %v4493 = vpack.c.b16 %v4486, %v4485
    %v4494 = vpack.c.b16 %v4488, %v4487
    %v4495 = vpack.c.b16 %v4490, %v4489
    %v4496 = vpack.c.b16 %v4492, %v4491
    %vm4501 = vcmask 523264
    %v4503 = vsel %vm4501, %v4467, 0
    %4505 = vmatpush.bf16.msra.mxu0 0
    %4506 = vmatpush.bf16.msra.mxu0 0
    %4507 = vmatpush.bf16.msra.mxu0 0
    %4508 = vmatpush.bf16.msra.mxu0 0
    %4509 = vmatpush.bf16.msra.mxu0 %v4496
    %4510 = vmatpush.bf16.msra.mxu0 %v4495
    %4511 = vmatpush.bf16.msra.mxu0 %v4494
    %4512 = vmatpush.bf16.msra.mxu0 %v4493
    %4513 = vmatmul.bf16.gmra.mxu0 %v4503
    %v4514 = vpop.f32.mrf.mxu0
    %v4515 = vadd.f32 0.0, %v4514
    %v4516 = vpop.f32.mrf.mxu0
    %4517 = vdwg.mxu0
    %v4526 = vunpack.c.l.b16 %v4441
    %v4527 = vunpack.c.l.b16 %v4442
    %v4528 = vunpack.c.l.b16 %v4443
    %v4529 = vunpack.c.l.b16 %v4444
    %v4530 = vunpack.c.l.b16 %v4445
    %v4531 = vunpack.c.l.b16 %v4446
    %v4532 = vunpack.c.l.b16 %v4447
    %v4533 = vunpack.c.l.b16 %v4448
    %v4534 = vpack.c.b16 %v4527, %v4526
    %v4535 = vpack.c.b16 %v4529, %v4528
    %v4536 = vpack.c.b16 %v4531, %v4530
    %v4537 = vpack.c.b16 %v4533, %v4532
    %v4543 = vsel %vm4501, %v4440, 0
    %4545 = vmatpush.bf16.msra.mxu0 0
    %4546 = vmatpush.bf16.msra.mxu0 0
    %4547 = vmatpush.bf16.msra.mxu0 0
    %4548 = vmatpush.bf16.msra.mxu0 0
    %4549 = vmatpush.bf16.msra.mxu0 %v4537
    %4550 = vmatpush.bf16.msra.mxu0 %v4536
    %4551 = vmatpush.bf16.msra.mxu0 %v4535
    %4552 = vmatpush.bf16.msra.mxu0 %v4534
    %4553 = vmatmul.bf16.gmra.mxu0 %v4543
    %v4554 = vpop.f32.mrf.mxu0
    %v4555 = vadd.f32 %v4515, %v4554
    %v4556 = vpop.f32.mrf.mxu0
    %4557 = vdwg.mxu0
    %v4558 = vld [vmem:[%s15] sm:$0x1]
    %v4560 = vperm.slane %v4558, 0
    %v4562 = vmul.f32 %v4555, %v4560
    %v4563 = vld [vmem:[%s16] sm:$0x1]
    %v4565 = vperm.slane %v4563, 0
    %v4567 = vadd.f32 %v4562, %v4565
    %vm4568 = vcmask 9216
    %4569 = vst.msk [vmem:[#allocation2] sm:$0x3] %vm4568, %v4567
    // Predicated region
    $region70: #{dqn_forward.1} parent=1 // pred_check
      _
    $region71: #{dqn_forward.1} parent=1 // pred_check_branch
      %4571 = sbr.rel (0) target = $region73
    $region72: #{dqn_forward.1} parent=1 // pred_region
      %4573 = vsyncadd [#allocation3], 0
      %s4575 = sshll.u32 [#allocation2], 4
      %s4576 = int_to_ptr.vmem [resolvable:$true] %s4575
      %s4577 = sshll.u32 %s17, 4
      %s4578 = int_to_ptr.hbm [resolvable:$true] %s4577
      %4580 = dma.vmem_to_hbm [thread:$0]  %s4576, 32, %s4578, [#allocation3]
    $region73: #{dqn_forward.1} parent=1 // pred_fallthru
      _
    // Predicated region
    $region74: #{dqn_forward.1} parent=1 // pred_check
      _
    $region75: #{dqn_forward.1} parent=1 // pred_check_branch
      %4582 = sbr.rel (0) target = $region77
    $region76: #{dqn_forward.1} parent=1 // pred_region
      %4584 = dma.done [#allocation3], 32
    $region77: #{dqn_forward.1} parent=1 // pred_fallthru
      _
    %4585 = vsyncpa [#allocation3], 1

</llo_original>
